<compile_context>
chip_gen: v7x
topology: tpu7x:2x2x1
jax: 0.10.0
libtpu: 0.0.40
codegen_flags: <defaults>
</compile_context>

<pallas_src>
import jax
import jax.numpy as jnp
import numpy as np
from jax.experimental import pallas as pl
from jax.experimental.pallas import tpu as pltpu

EPS = 1e-5   # nn.BatchNorm2d default eps
PAD = 2      # canvas border = max padding / roll reach in the module


# ---------------------------------------------------------------------------
# Fused Pallas kernel
# ---------------------------------------------------------------------------
def _make_kernel(Wc, inv_cnt_full, inv_cnt_small):
    """Build the fused GlobalBranch kernel.

    Wc: canvas row stride (W + 2*PAD).
    inv_cnt_full / inv_cnt_small: 1 / (#valid positions) for the 16x16 and
    14x14 layers respectively (BN batch-statistic denominators).
    """

    def kernel(x_ref, w1_ref, w5_ref, wa_ref, wb_ref, prm_ref, msk_ref, o_ref):
        f32, bf16 = jnp.float32, jnp.bfloat16

        x = x_ref[...]                      # (8, P)   f32 input canvas
        prm = prm_ref[...]                  # (40, 3)  packed [bias, gamma, beta]
        msk = msk_ref[...]                  # (2, P)   validity masks
        m_full, m_small = msk[0:1, :], msk[1:2, :]

        def shift(a, d):
            # shifted[:, n] = a[:, n + d]  (static canvas window shift along lanes)
            return a if d == 0 else jnp.roll(a, -d, axis=1)

        def relu_bn(y, rows, mask, inv_cnt, mask_out=True):
            # y: (C, P) raw conv output; rows: (C, 3) packed [bias, gamma, beta]
            b, g, beta = rows[:, 0:1], rows[:, 1:2], rows[:, 2:3]
            y = jnp.maximum(y + b, 0.0) * mask          # bias + ReLU, zero border
            mu = jnp.sum(y, axis=1, keepdims=True) * inv_cnt
            d = (y - mu) * mask                         # two-pass (masked) variance
            var = jnp.sum(d * d, axis=1, keepdims=True) * inv_cnt
            out = d * jax.lax.rsqrt(var + EPS) * g + beta
            return out * mask if mask_out else out

        def conv(a, w, ksz, pad):
            # Stack all K*K rolled canvases along the contraction axis (f32,
            # tile-aligned chunks), cast to bf16 once, single deep MXU dot.
            chunks = []
            for di in range(ksz):
                for dj in range(ksz):
                    chunks.append(shift(a, (di - pad) * Wc + (dj - pad)))
            rhs = jnp.concatenate(chunks, axis=0).astype(bf16)   # (K*K*Cin, P)
            return jnp.dot(w, rhs, preferred_element_type=f32)   # (Cout, P)

        # -- merged 1x1: rows 0:8 = branch5x5[0] hidden, rows 8:12 = branch1x1
        y12 = jnp.dot(w1_ref[...], x.astype(bf16), preferred_element_type=f32)
        h = relu_bn(y12[0:8, :], prm[0:8], m_full, inv_cnt_full)       # (8, P)

        # -- branch5x5[1]: 5x5 conv pad 2; then one joint 8-row relu_bn over
        #    [branch1x1 raw ; branch5x5 raw] -> the concatenated tensor.
        x2_raw = conv(h, w5_ref[...], 5, 2)                            # (4, P)
        conc = relu_bn(jnp.concatenate([y12[8:12, :], x2_raw], axis=0),
                       prm[8:16], m_full, inv_cnt_full)                # (8, P)

        # -- conv[0]: 3x3, padding 0 -> 16 ch, 14x14 valid ---------------------
        ya = relu_bn(conv(conc, wa_ref[...], 3, 0),
                     prm[16:32], m_small, inv_cnt_small)               # (16, P)

        # -- conv[1]: 3x3, padding 1 -> 8 ch, 14x14 valid.  Output mask skipped:
        #    every stride-2 pool window stays inside the valid region
        #    (statically asserted in the wrapper).
        yb = relu_bn(conv(ya, wb_ref[...], 3, 1),
                     prm[32:40], m_small, inv_cnt_small, mask_out=False)

        # -- MaxPool2d(3, 2), separable: column max then row max ---------------
        cm = jnp.maximum(jnp.maximum(yb, shift(yb, 1)), shift(yb, 2))
        o_ref[...] = jnp.maximum(jnp.maximum(cm, shift(cm, Wc)),
                                 shift(cm, 2 * Wc))   # caller picks stride-2 grid

    return kernel


# ---------------------------------------------------------------------------
# Wrapper: one pallas_call for the whole branch
# ---------------------------------------------------------------------------
def global_branch_forward(params, x_nchw):
    """GlobalBranch forward. x_nchw: (B, 8, H, W) f32 -> (B, 8, Hp, Wp) NCHW."""
    B, cin, H, W = x_nchw.shape
    assert cin == 8, "GlobalBranch expects 8 input channels"
    Hc, Wc = H + 2 * PAD, W + 2 * PAD
    P_img = B * Hc * Wc
    P = ((P_img + 127) // 128) * 128               # lane-dense (multiple of 128)
    H2, W2 = H - 2, W - 2                          # after the 3x3 / pad-0 conv
    Hp, Wp = (H2 - 3) // 2 + 1, (W2 - 3) // 2 + 1  # after MaxPool2d(3, 2)

    # Static canvas-reach guards: every roll-based conv tap must stay inside a
    # single image's canvas so jnp.roll wrap never reaches a valid output.
    for ksz, pad in ((1, 0), (5, 2), (3, 0), (3, 1)):
        assert pad <= PAD and (ksz - 1 - pad) <= PAD, "canvas border too small"
    # Pool windows (stride 2, k=3) must stay inside the 14x14 valid region so
    # the final relu_bn may skip its output mask.
    assert 2 * (Hp - 1) + 2 <= H2 - 1 and 2 * (Wp - 1) + 2 <= W2 - 1

    # ---- input canvas: (Cin, P), zero border of PAD + zero lane pad ----------
    xc = jnp.pad(jnp.transpose(x_nchw, (1, 0, 2, 3)),
                 ((0, 0), (0, 0), (PAD, PAD), (PAD, PAD)))
    xc = xc.reshape(cin, P_img).astype(jnp.float32)
    xc = jnp.pad(xc, ((0, 0), (0, P - P_img)))

    # ---- weights: pre-transposed to (Cout, K*K*Cin) for tap-stacked dots -----
    mm = jnp.bfloat16

    def taps(w):   # (Cout,Cin,KH,KW) -> (Cout, KH*KW*Cin), tap-major columns
        co, ci, kh, kw = w.shape
        return jnp.transpose(w, (0, 2, 3, 1)).reshape(co, kh * kw * ci).astype(mm)

    p = params
    # merged 1x1: hidden (8 ch) on tile-aligned rows 0:8, branch1x1 on 8:12
    w1 = jnp.concatenate([p["branch5x5_a"]["w"].reshape(8, cin),
                          p["branch1x1"]["w"].reshape(4, cin)], axis=0).astype(mm)
    w5 = taps(p["branch5x5_b"]["w"])          # (4, 200)
    wa = taps(p["conv_a"]["w"])               # (16, 72)
    wb = taps(p["conv_b"]["w"])               # (8, 144)

    # ---- one packed (40, 3) [bias, gamma, beta] operand for all 5 BN layers --
    def pgb(q):
        return jnp.stack([q["b"], q["gamma"], q["beta"]], axis=1)
    prm = jnp.concatenate([pgb(p["branch5x5_a"]), pgb(p["branch1x1"]),
                           pgb(p["branch5x5_b"]), pgb(p["conv_a"]),
                           pgb(p["conv_b"])], axis=0).astype(jnp.float32)

    # ---- validity masks on the canvas (trace-time constants) -----------------
    def mask(h, w):
        m = np.zeros((B, Hc, Wc), np.float32)
        m[:, PAD:PAD + h, PAD:PAD + w] = 1.0
        return np.pad(m.reshape(P_img), (0, P - P_img))
    masks = jnp.asarray(np.stack([mask(H, W), mask(H2, W2)]))   # (2, P)

    # ---- cost estimate so XLA can schedule around the custom call ------------
    flops = int(2 * P * (12 * 8 + 4 * 200 + 16 * 72 + 8 * 144))
    bytes_acc = int(4 * (cin * P + 8 * P + 2 * P + prm.size)
                    + 2 * (w1.size + w5.size + wa.size + wb.size))
    cost = pl.CostEstimate(flops=flops, transcendentals=44,
                           bytes_accessed=bytes_acc)

    kernel = _make_kernel(Wc, 1.0 / (B * H * W), 1.0 / (B * H2 * W2))
    pooled = pl.pallas_call(
        kernel,
        out_shape=jax.ShapeDtypeStruct((8, P), jnp.float32),
        grid=(1,),
        in_specs=[
            pl.BlockSpec((cin, P), lambda i: (0, 0)),    # input canvas
            pl.BlockSpec((12, cin), lambda i: (0, 0)),   # merged 1x1 weights
            pl.BlockSpec((4, 200), lambda i: (0, 0)),    # 5x5 stacked taps
            pl.BlockSpec((16, 72), lambda i: (0, 0)),    # conv[0] stacked taps
            pl.BlockSpec((8, 144), lambda i: (0, 0)),    # conv[1] stacked taps
            pl.BlockSpec((40, 3), lambda i: (0, 0)),     # packed bias/gamma/beta
            pl.BlockSpec((2, P), lambda i: (0, 0)),      # validity masks
        ],
        out_specs=pl.BlockSpec((8, P), lambda i: (0, 0)),
        compiler_params=pltpu.CompilerParams(dimension_semantics=("arbitrary",)),
        cost_estimate=cost,
    )(xc, w1, w5, wa, wb, prm, masks)

    # stride-2 pick of the pooled 6x6 grid + back to NCHW (tiny wrapper glue)
    out = pooled[:, :P_img].reshape(8, B, Hc, Wc)[:, :, PAD:PAD + 2 * Hp:2,
                                                  PAD:PAD + 2 * Wp:2]
    return jnp.transpose(out, (1, 0, 2, 3))


# ---------------------------------------------------------------------------
# Pure-JAX reference (mirrors the bf16 MXU-operand cast, f32 accumulation)
# ---------------------------------------------------------------------------
def _cabn_ref(x, q, padding):
    y = jax.lax.conv_general_dilated(
        x.astype(jnp.bfloat16), q["w"].astype(jnp.bfloat16),
        window_strides=(1, 1), padding=[(padding, padding)] * 2,
        dimension_numbers=("NCHW", "OIHW", "NCHW"),
        preferred_element_type=jnp.float32)
    y = jnp.maximum(y + q["b"][None, :, None, None], 0.0)
    mu = jnp.mean(y, axis=(0, 2, 3), keepdims=True)
    var = jnp.mean((y - mu) ** 2, axis=(0, 2, 3), keepdims=True)
    yn = (y - mu) * jax.lax.rsqrt(var + EPS)
    return yn * q["gamma"][None, :, None, None] + q["beta"][None, :, None, None]


def global_branch_reference(params, x):
    x1 = _cabn_ref(x, params["branch1x1"], 0)
    h = _cabn_ref(x, params["branch5x5_a"], 0)
    x2 = _cabn_ref(h, params["branch5x5_b"], 2)
    out = jnp.concatenate([x1, x2], axis=1)
    out = _cabn_ref(out, params["conv_a"], 0)
    out = _cabn_ref(out, params["conv_b"], 1)
    return jax.lax.reduce_window(out, -jnp.inf, jax.lax.max,
                                 (1, 1, 3, 3), (1, 1, 2, 2), "VALID")


# ---------------------------------------------------------------------------
# Params / main
# ---------------------------------------------------------------------------
def init_global_branch_params(key):
    def conv_bn(k, cout, cin, ksz):
        k1, k2, k3, k4 = jax.random.split(k, 4)
        return dict(
            w=0.1 * jax.random.normal(k1, (cout, cin, ksz, ksz), jnp.float32),
            b=0.1 * jax.random.normal(k2, (cout,), jnp.float32),
            gamma=1.0 + 0.1 * jax.random.normal(k3, (cout,), jnp.float32),
            beta=0.1 * jax.random.normal(k4, (cout,), jnp.float32),
        )

    ks = jax.random.split(key, 5)
    return dict(
        branch1x1=conv_bn(ks[0], 4, 8, 1),     # ConvActBatNorm(8, 4, k=1)
        branch5x5_a=conv_bn(ks[1], 8, 8, 1),   # ConvActBatNorm(8, 8, k=1)
        branch5x5_b=conv_bn(ks[2], 4, 8, 5),   # ConvActBatNorm(8, 4, k=5, pad=2)
        conv_a=conv_bn(ks[3], 16, 8, 3),       # ConvActBatNorm(8, 16, k=3)
        conv_b=conv_bn(ks[4], 8, 16, 3),       # ConvActBatNorm(16, 8, k=3, pad=1)
    )


if __name__ == "__main__":
    key = jax.random.PRNGKey(0)
    kp, kx = jax.random.split(key)
    params = init_global_branch_params(kp)
    x = jax.random.normal(kx, (2, 8, 16, 16), jnp.float32)   # NCHW like PyTorch

    out = jax.jit(global_branch_forward)(params, x)
    out = jax.block_until_ready(out)
    assert out.shape == (2, 8, 6, 6), out.shape
    assert bool(jnp.all(jnp.isfinite(out)))

    ref = jax.block_until_ready(jax.jit(global_branch_reference)(params, x))
    np.testing.assert_allclose(np.asarray(out), np.asarray(ref),
                               rtol=2e-2, atol=2e-2)
    print("KERNEL_OK")
</pallas_src>

<mosaic_0001>
module attributes {stable_mosaic.version = 11 : i64} {
  func.func @kernel(%arg0: i32, %arg1: memref<8x896xf32, #tpu.memory_space<vmem>>, %arg2: memref<12x8xbf16, #tpu.memory_space<vmem>>, %arg3: memref<4x200xbf16, #tpu.memory_space<vmem>>, %arg4: memref<16x72xbf16, #tpu.memory_space<vmem>>, %arg5: memref<8x144xbf16, #tpu.memory_space<vmem>>, %arg6: memref<40x3xf32, #tpu.memory_space<vmem>>, %arg7: memref<2x896xf32, #tpu.memory_space<vmem>>, %arg8: memref<8x896xf32, #tpu.memory_space<vmem>>) attributes {dimension_semantics = [#tpu.dimension_semantics<arbitrary>], iteration_bounds = array<i64: 1>, scalar_prefetch = 0 : i64, scratch_operands = 0 : i64, tpu.core_type = #tpu.core_type<tc>, window_params = [{pipeline_mode = #tpu.pipeline_mode<synchronous>, transform_indices = @transform_0, window_bounds = array<i64: 8, 896>}, {pipeline_mode = #tpu.pipeline_mode<synchronous>, transform_indices = @transform_1, window_bounds = array<i64: 12, 8>}, {pipeline_mode = #tpu.pipeline_mode<synchronous>, transform_indices = @transform_2, window_bounds = array<i64: 4, 200>}, {pipeline_mode = #tpu.pipeline_mode<synchronous>, transform_indices = @transform_3, window_bounds = array<i64: 16, 72>}, {pipeline_mode = #tpu.pipeline_mode<synchronous>, transform_indices = @transform_4, window_bounds = array<i64: 8, 144>}, {pipeline_mode = #tpu.pipeline_mode<synchronous>, transform_indices = @transform_5, window_bounds = array<i64: 40, 3>}, {pipeline_mode = #tpu.pipeline_mode<synchronous>, transform_indices = @transform_6, window_bounds = array<i64: 2, 896>}, {pipeline_mode = #tpu.pipeline_mode<synchronous>, transform_indices = @transform_7, window_bounds = array<i64: 8, 896>}]} {
    %c0 = arith.constant 0 : index
    %c0_0 = arith.constant 0 : index
    %0 = vector.load %arg1[%c0, %c0_0] : memref<8x896xf32, #tpu.memory_space<vmem>>, vector<8x896xf32>
    %c0_1 = arith.constant 0 : index
    %c0_2 = arith.constant 0 : index
    %1 = vector.load %arg6[%c0_1, %c0_2] : memref<40x3xf32, #tpu.memory_space<vmem>>, vector<40x3xf32>
    %c0_3 = arith.constant 0 : index
    %c0_4 = arith.constant 0 : index
    %2 = vector.load %arg7[%c0_3, %c0_4] : memref<2x896xf32, #tpu.memory_space<vmem>>, vector<2x896xf32>
    %3 = vector.extract_strided_slice %2 {offsets = [0, 0], sizes = [1, 896], strides = [1, 1]} : vector<2x896xf32> to vector<1x896xf32>
    %4 = vector.extract_strided_slice %2 {offsets = [1, 0], sizes = [1, 896], strides = [1, 1]} : vector<2x896xf32> to vector<1x896xf32>
    %c0_5 = arith.constant 0 : index
    %c0_6 = arith.constant 0 : index
    %5 = vector.load %arg2[%c0_5, %c0_6] : memref<12x8xbf16, #tpu.memory_space<vmem>>, vector<12x8xbf16>
    %6 = arith.truncf %0 : vector<8x896xf32> to vector<8x896xbf16>
    %cst = arith.constant dense<0.000000e+00> : vector<12x896xf32>
    %7 = tpu.matmul %5, %6, %cst {dimension_numbers = #tpu.dot_dimension_numbers<[1], [0], [0], [1], [0, 0, 1, 1], [], []>} : vector<12x8xbf16>, vector<8x896xbf16>, vector<12x896xf32> -> vector<12x896xf32>
    %8 = vector.extract_strided_slice %7 {offsets = [0, 0], sizes = [8, 896], strides = [1, 1]} : vector<12x896xf32> to vector<8x896xf32>
    %9 = vector.extract_strided_slice %1 {offsets = [0, 0], sizes = [8, 3], strides = [1, 1]} : vector<40x3xf32> to vector<8x3xf32>
    %10 = vector.extract_strided_slice %9 {offsets = [0, 0], sizes = [8, 1], strides = [1, 1]} : vector<8x3xf32> to vector<8x1xf32>
    %11 = vector.extract_strided_slice %9 {offsets = [0, 1], sizes = [8, 1], strides = [1, 1]} : vector<8x3xf32> to vector<8x1xf32>
    %12 = vector.extract_strided_slice %9 {offsets = [0, 2], sizes = [8, 1], strides = [1, 1]} : vector<8x3xf32> to vector<8x1xf32>
    %13 = vector.broadcast %10 : vector<8x1xf32> to vector<8x896xf32>
    %14 = arith.addf %8, %13 : vector<8x896xf32>
    %cst_7 = arith.constant 0.000000e+00 : f32
    %15 = vector.broadcast %cst_7 : f32 to vector<8x896xf32>
    %16 = arith.maximumf %14, %15 : vector<8x896xf32>
    %17 = vector.broadcast %3 : vector<1x896xf32> to vector<8x896xf32>
    %18 = arith.mulf %16, %17 : vector<8x896xf32>
    %cst_8 = arith.constant dense<0.000000e+00> : vector<8xf32>
    %19 = vector.multi_reduction <add>, %18, %cst_8 [1] : vector<8x896xf32> to vector<8xf32>
    %20 = vector.shape_cast %19 : vector<8xf32> to vector<8x1xf32>
    %cst_9 = arith.constant 0.001953125 : f32
    %21 = vector.broadcast %cst_9 : f32 to vector<8x1xf32>
    %22 = arith.mulf %20, %21 : vector<8x1xf32>
    %23 = vector.broadcast %22 : vector<8x1xf32> to vector<8x896xf32>
    %24 = arith.subf %18, %23 : vector<8x896xf32>
    %25 = vector.broadcast %3 : vector<1x896xf32> to vector<8x896xf32>
    %26 = arith.mulf %24, %25 : vector<8x896xf32>
    %27 = arith.mulf %26, %26 : vector<8x896xf32>
    %cst_10 = arith.constant dense<0.000000e+00> : vector<8xf32>
    %28 = vector.multi_reduction <add>, %27, %cst_10 [1] : vector<8x896xf32> to vector<8xf32>
    %29 = vector.shape_cast %28 : vector<8xf32> to vector<8x1xf32>
    %cst_11 = arith.constant 0.001953125 : f32
    %30 = vector.broadcast %cst_11 : f32 to vector<8x1xf32>
    %31 = arith.mulf %29, %30 : vector<8x1xf32>
    %cst_12 = arith.constant 9.99999974E-6 : f32
    %32 = vector.broadcast %cst_12 : f32 to vector<8x1xf32>
    %33 = arith.addf %31, %32 : vector<8x1xf32>
    %34 = math.rsqrt %33 : vector<8x1xf32>
    %35 = vector.broadcast %34 : vector<8x1xf32> to vector<8x896xf32>
    %36 = arith.mulf %26, %35 : vector<8x896xf32>
    %37 = vector.broadcast %11 : vector<8x1xf32> to vector<8x896xf32>
    %38 = arith.mulf %36, %37 : vector<8x896xf32>
    %39 = vector.broadcast %12 : vector<8x1xf32> to vector<8x896xf32>
    %40 = arith.addf %38, %39 : vector<8x896xf32>
    %41 = vector.broadcast %3 : vector<1x896xf32> to vector<8x896xf32>
    %42 = arith.mulf %40, %41 : vector<8x896xf32>
    %c0_13 = arith.constant 0 : index
    %c0_14 = arith.constant 0 : index
    %43 = vector.load %arg3[%c0_13, %c0_14] : memref<4x200xbf16, #tpu.memory_space<vmem>>, vector<4x200xbf16>
    %44 = vector.extract_strided_slice %42 {offsets = [0, 854], sizes = [8, 42], strides = [1, 1]} : vector<8x896xf32> to vector<8x42xf32>
    %45 = vector.extract_strided_slice %42 {offsets = [0, 0], sizes = [8, 854], strides = [1, 1]} : vector<8x896xf32> to vector<8x854xf32>
    %46 = tpu.concatenate %44, %45 in 1 : vector<8x42xf32>, vector<8x854xf32> -> vector<8x896xf32>
    %47 = vector.extract_strided_slice %42 {offsets = [0, 855], sizes = [8, 41], strides = [1, 1]} : vector<8x896xf32> to vector<8x41xf32>
    %48 = vector.extract_strided_slice %42 {offsets = [0, 0], sizes = [8, 855], strides = [1, 1]} : vector<8x896xf32> to vector<8x855xf32>
    %49 = tpu.concatenate %47, %48 in 1 : vector<8x41xf32>, vector<8x855xf32> -> vector<8x896xf32>
    %50 = vector.extract_strided_slice %42 {offsets = [0, 856], sizes = [8, 40], strides = [1, 1]} : vector<8x896xf32> to vector<8x40xf32>
    %51 = vector.extract_strided_slice %42 {offsets = [0, 0], sizes = [8, 856], strides = [1, 1]} : vector<8x896xf32> to vector<8x856xf32>
    %52 = tpu.concatenate %50, %51 in 1 : vector<8x40xf32>, vector<8x856xf32> -> vector<8x896xf32>
    %53 = vector.extract_strided_slice %42 {offsets = [0, 857], sizes = [8, 39], strides = [1, 1]} : vector<8x896xf32> to vector<8x39xf32>
    %54 = vector.extract_strided_slice %42 {offsets = [0, 0], sizes = [8, 857], strides = [1, 1]} : vector<8x896xf32> to vector<8x857xf32>
    %55 = tpu.concatenate %53, %54 in 1 : vector<8x39xf32>, vector<8x857xf32> -> vector<8x896xf32>
    %56 = vector.extract_strided_slice %42 {offsets = [0, 858], sizes = [8, 38], strides = [1, 1]} : vector<8x896xf32> to vector<8x38xf32>
    %57 = vector.extract_strided_slice %42 {offsets = [0, 0], sizes = [8, 858], strides = [1, 1]} : vector<8x896xf32> to vector<8x858xf32>
    %58 = tpu.concatenate %56, %57 in 1 : vector<8x38xf32>, vector<8x858xf32> -> vector<8x896xf32>
    %59 = vector.extract_strided_slice %42 {offsets = [0, 874], sizes = [8, 22], strides = [1, 1]} : vector<8x896xf32> to vector<8x22xf32>
    %60 = vector.extract_strided_slice %42 {offsets = [0, 0], sizes = [8, 874], strides = [1, 1]} : vector<8x896xf32> to vector<8x874xf32>
    %61 = tpu.concatenate %59, %60 in 1 : vector<8x22xf32>, vector<8x874xf32> -> vector<8x896xf32>
    %62 = vector.extract_strided_slice %42 {offsets = [0, 875], sizes = [8, 21], strides = [1, 1]} : vector<8x896xf32> to vector<8x21xf32>
    %63 = vector.extract_strided_slice %42 {offsets = [0, 0], sizes = [8, 875], strides = [1, 1]} : vector<8x896xf32> to vector<8x875xf32>
    %64 = tpu.concatenate %62, %63 in 1 : vector<8x21xf32>, vector<8x875xf32> -> vector<8x896xf32>
    %65 = vector.extract_strided_slice %42 {offsets = [0, 876], sizes = [8, 20], strides = [1, 1]} : vector<8x896xf32> to vector<8x20xf32>
    %66 = vector.extract_strided_slice %42 {offsets = [0, 0], sizes = [8, 876], strides = [1, 1]} : vector<8x896xf32> to vector<8x876xf32>
    %67 = tpu.concatenate %65, %66 in 1 : vector<8x20xf32>, vector<8x876xf32> -> vector<8x896xf32>
    %68 = vector.extract_strided_slice %42 {offsets = [0, 877], sizes = [8, 19], strides = [1, 1]} : vector<8x896xf32> to vector<8x19xf32>
    %69 = vector.extract_strided_slice %42 {offsets = [0, 0], sizes = [8, 877], strides = [1, 1]} : vector<8x896xf32> to vector<8x877xf32>
    %70 = tpu.concatenate %68, %69 in 1 : vector<8x19xf32>, vector<8x877xf32> -> vector<8x896xf32>
    %71 = vector.extract_strided_slice %42 {offsets = [0, 878], sizes = [8, 18], strides = [1, 1]} : vector<8x896xf32> to vector<8x18xf32>
    %72 = vector.extract_strided_slice %42 {offsets = [0, 0], sizes = [8, 878], strides = [1, 1]} : vector<8x896xf32> to vector<8x878xf32>
    %73 = tpu.concatenate %71, %72 in 1 : vector<8x18xf32>, vector<8x878xf32> -> vector<8x896xf32>
    %74 = vector.extract_strided_slice %42 {offsets = [0, 894], sizes = [8, 2], strides = [1, 1]} : vector<8x896xf32> to vector<8x2xf32>
    %75 = vector.extract_strided_slice %42 {offsets = [0, 0], sizes = [8, 894], strides = [1, 1]} : vector<8x896xf32> to vector<8x894xf32>
    %76 = tpu.concatenate %74, %75 in 1 : vector<8x2xf32>, vector<8x894xf32> -> vector<8x896xf32>
    %77 = vector.extract_strided_slice %42 {offsets = [0, 895], sizes = [8, 1], strides = [1, 1]} : vector<8x896xf32> to vector<8x1xf32>
    %78 = vector.extract_strided_slice %42 {offsets = [0, 0], sizes = [8, 895], strides = [1, 1]} : vector<8x896xf32> to vector<8x895xf32>
    %79 = tpu.concatenate %77, %78 in 1 : vector<8x1xf32>, vector<8x895xf32> -> vector<8x896xf32>
    %80 = vector.extract_strided_slice %42 {offsets = [0, 1], sizes = [8, 895], strides = [1, 1]} : vector<8x896xf32> to vector<8x895xf32>
    %81 = vector.extract_strided_slice %42 {offsets = [0, 0], sizes = [8, 1], strides = [1, 1]} : vector<8x896xf32> to vector<8x1xf32>
    %82 = tpu.concatenate %80, %81 in 1 : vector<8x895xf32>, vector<8x1xf32> -> vector<8x896xf32>
    %83 = vector.extract_strided_slice %42 {offsets = [0, 2], sizes = [8, 894], strides = [1, 1]} : vector<8x896xf32> to vector<8x894xf32>
    %84 = vector.extract_strided_slice %42 {offsets = [0, 0], sizes = [8, 2], strides = [1, 1]} : vector<8x896xf32> to vector<8x2xf32>
    %85 = tpu.concatenate %83, %84 in 1 : vector<8x894xf32>, vector<8x2xf32> -> vector<8x896xf32>
    %86 = vector.extract_strided_slice %42 {offsets = [0, 18], sizes = [8, 878], strides = [1, 1]} : vector<8x896xf32> to vector<8x878xf32>
    %87 = vector.extract_strided_slice %42 {offsets = [0, 0], sizes = [8, 18], strides = [1, 1]} : vector<8x896xf32> to vector<8x18xf32>
    %88 = tpu.concatenate %86, %87 in 1 : vector<8x878xf32>, vector<8x18xf32> -> vector<8x896xf32>
    %89 = vector.extract_strided_slice %42 {offsets = [0, 19], sizes = [8, 877], strides = [1, 1]} : vector<8x896xf32> to vector<8x877xf32>
    %90 = vector.extract_strided_slice %42 {offsets = [0, 0], sizes = [8, 19], strides = [1, 1]} : vector<8x896xf32> to vector<8x19xf32>
    %91 = tpu.concatenate %89, %90 in 1 : vector<8x877xf32>, vector<8x19xf32> -> vector<8x896xf32>
    %92 = vector.extract_strided_slice %42 {offsets = [0, 20], sizes = [8, 876], strides = [1, 1]} : vector<8x896xf32> to vector<8x876xf32>
    %93 = vector.extract_strided_slice %42 {offsets = [0, 0], sizes = [8, 20], strides = [1, 1]} : vector<8x896xf32> to vector<8x20xf32>
    %94 = tpu.concatenate %92, %93 in 1 : vector<8x876xf32>, vector<8x20xf32> -> vector<8x896xf32>
    %95 = vector.extract_strided_slice %42 {offsets = [0, 21], sizes = [8, 875], strides = [1, 1]} : vector<8x896xf32> to vector<8x875xf32>
    %96 = vector.extract_strided_slice %42 {offsets = [0, 0], sizes = [8, 21], strides = [1, 1]} : vector<8x896xf32> to vector<8x21xf32>
    %97 = tpu.concatenate %95, %96 in 1 : vector<8x875xf32>, vector<8x21xf32> -> vector<8x896xf32>
    %98 = vector.extract_strided_slice %42 {offsets = [0, 22], sizes = [8, 874], strides = [1, 1]} : vector<8x896xf32> to vector<8x874xf32>
    %99 = vector.extract_strided_slice %42 {offsets = [0, 0], sizes = [8, 22], strides = [1, 1]} : vector<8x896xf32> to vector<8x22xf32>
    %100 = tpu.concatenate %98, %99 in 1 : vector<8x874xf32>, vector<8x22xf32> -> vector<8x896xf32>
    %101 = vector.extract_strided_slice %42 {offsets = [0, 38], sizes = [8, 858], strides = [1, 1]} : vector<8x896xf32> to vector<8x858xf32>
    %102 = vector.extract_strided_slice %42 {offsets = [0, 0], sizes = [8, 38], strides = [1, 1]} : vector<8x896xf32> to vector<8x38xf32>
    %103 = tpu.concatenate %101, %102 in 1 : vector<8x858xf32>, vector<8x38xf32> -> vector<8x896xf32>
    %104 = vector.extract_strided_slice %42 {offsets = [0, 39], sizes = [8, 857], strides = [1, 1]} : vector<8x896xf32> to vector<8x857xf32>
    %105 = vector.extract_strided_slice %42 {offsets = [0, 0], sizes = [8, 39], strides = [1, 1]} : vector<8x896xf32> to vector<8x39xf32>
    %106 = tpu.concatenate %104, %105 in 1 : vector<8x857xf32>, vector<8x39xf32> -> vector<8x896xf32>
    %107 = vector.extract_strided_slice %42 {offsets = [0, 40], sizes = [8, 856], strides = [1, 1]} : vector<8x896xf32> to vector<8x856xf32>
    %108 = vector.extract_strided_slice %42 {offsets = [0, 0], sizes = [8, 40], strides = [1, 1]} : vector<8x896xf32> to vector<8x40xf32>
    %109 = tpu.concatenate %107, %108 in 1 : vector<8x856xf32>, vector<8x40xf32> -> vector<8x896xf32>
    %110 = vector.extract_strided_slice %42 {offsets = [0, 41], sizes = [8, 855], strides = [1, 1]} : vector<8x896xf32> to vector<8x855xf32>
    %111 = vector.extract_strided_slice %42 {offsets = [0, 0], sizes = [8, 41], strides = [1, 1]} : vector<8x896xf32> to vector<8x41xf32>
    %112 = tpu.concatenate %110, %111 in 1 : vector<8x855xf32>, vector<8x41xf32> -> vector<8x896xf32>
    %113 = vector.extract_strided_slice %42 {offsets = [0, 42], sizes = [8, 854], strides = [1, 1]} : vector<8x896xf32> to vector<8x854xf32>
    %114 = vector.extract_strided_slice %42 {offsets = [0, 0], sizes = [8, 42], strides = [1, 1]} : vector<8x896xf32> to vector<8x42xf32>
    %115 = tpu.concatenate %113, %114 in 1 : vector<8x854xf32>, vector<8x42xf32> -> vector<8x896xf32>
    %116 = tpu.concatenate %46, %49, %52, %55, %58, %61, %64, %67, %70, %73, %76, %79, %42, %82, %85, %88 in 0 : vector<8x896xf32>, vector<8x896xf32>, vector<8x896xf32>, vector<8x896xf32>, vector<8x896xf32>, vector<8x896xf32>, vector<8x896xf32>, vector<8x896xf32>, vector<8x896xf32>, vector<8x896xf32>, vector<8x896xf32>, vector<8x896xf32>, vector<8x896xf32>, vector<8x896xf32>, vector<8x896xf32>, vector<8x896xf32> -> vector<128x896xf32>
    %117 = tpu.concatenate %91, %94, %97, %100, %103, %106, %109, %112, %115 in 0 : vector<8x896xf32>, vector<8x896xf32>, vector<8x896xf32>, vector<8x896xf32>, vector<8x896xf32>, vector<8x896xf32>, vector<8x896xf32>, vector<8x896xf32>, vector<8x896xf32> -> vector<72x896xf32>
    %118 = tpu.concatenate %116, %117 in 0 : vector<128x896xf32>, vector<72x896xf32> -> vector<200x896xf32>
    %119 = arith.truncf %118 : vector<200x896xf32> to vector<200x896xbf16>
    %cst_15 = arith.constant dense<0.000000e+00> : vector<4x896xf32>
    %120 = tpu.matmul %43, %119, %cst_15 {dimension_numbers = #tpu.dot_dimension_numbers<[1], [0], [0], [1], [0, 0, 1, 1], [], []>} : vector<4x200xbf16>, vector<200x896xbf16>, vector<4x896xf32> -> vector<4x896xf32>
    %121 = vector.extract_strided_slice %7 {offsets = [8, 0], sizes = [4, 896], strides = [1, 1]} : vector<12x896xf32> to vector<4x896xf32>
    %122 = tpu.concatenate %121, %120 in 0 : vector<4x896xf32>, vector<4x896xf32> -> vector<8x896xf32>
    %123 = vector.extract_strided_slice %1 {offsets = [8, 0], sizes = [8, 3], strides = [1, 1]} : vector<40x3xf32> to vector<8x3xf32>
    %124 = vector.extract_strided_slice %123 {offsets = [0, 0], sizes = [8, 1], strides = [1, 1]} : vector<8x3xf32> to vector<8x1xf32>
    %125 = vector.extract_strided_slice %123 {offsets = [0, 1], sizes = [8, 1], strides = [1, 1]} : vector<8x3xf32> to vector<8x1xf32>
    %126 = vector.extract_strided_slice %123 {offsets = [0, 2], sizes = [8, 1], strides = [1, 1]} : vector<8x3xf32> to vector<8x1xf32>
    %127 = vector.broadcast %124 : vector<8x1xf32> to vector<8x896xf32>
    %128 = arith.addf %122, %127 : vector<8x896xf32>
    %cst_16 = arith.constant 0.000000e+00 : f32
    %129 = vector.broadcast %cst_16 : f32 to vector<8x896xf32>
    %130 = arith.maximumf %128, %129 : vector<8x896xf32>
    %131 = vector.broadcast %3 : vector<1x896xf32> to vector<8x896xf32>
    %132 = arith.mulf %130, %131 : vector<8x896xf32>
    %cst_17 = arith.constant dense<0.000000e+00> : vector<8xf32>
    %133 = vector.multi_reduction <add>, %132, %cst_17 [1] : vector<8x896xf32> to vector<8xf32>
    %134 = vector.shape_cast %133 : vector<8xf32> to vector<8x1xf32>
    %cst_18 = arith.constant 0.001953125 : f32
    %135 = vector.broadcast %cst_18 : f32 to vector<8x1xf32>
    %136 = arith.mulf %134, %135 : vector<8x1xf32>
    %137 = vector.broadcast %136 : vector<8x1xf32> to vector<8x896xf32>
    %138 = arith.subf %132, %137 : vector<8x896xf32>
    %139 = vector.broadcast %3 : vector<1x896xf32> to vector<8x896xf32>
    %140 = arith.mulf %138, %139 : vector<8x896xf32>
    %141 = arith.mulf %140, %140 : vector<8x896xf32>
    %cst_19 = arith.constant dense<0.000000e+00> : vector<8xf32>
    %142 = vector.multi_reduction <add>, %141, %cst_19 [1] : vector<8x896xf32> to vector<8xf32>
    %143 = vector.shape_cast %142 : vector<8xf32> to vector<8x1xf32>
    %cst_20 = arith.constant 0.001953125 : f32
    %144 = vector.broadcast %cst_20 : f32 to vector<8x1xf32>
    %145 = arith.mulf %143, %144 : vector<8x1xf32>
    %cst_21 = arith.constant 9.99999974E-6 : f32
    %146 = vector.broadcast %cst_21 : f32 to vector<8x1xf32>
    %147 = arith.addf %145, %146 : vector<8x1xf32>
    %148 = math.rsqrt %147 : vector<8x1xf32>
    %149 = vector.broadcast %148 : vector<8x1xf32> to vector<8x896xf32>
    %150 = arith.mulf %140, %149 : vector<8x896xf32>
    %151 = vector.broadcast %125 : vector<8x1xf32> to vector<8x896xf32>
    %152 = arith.mulf %150, %151 : vector<8x896xf32>
    %153 = vector.broadcast %126 : vector<8x1xf32> to vector<8x896xf32>
    %154 = arith.addf %152, %153 : vector<8x896xf32>
    %155 = vector.broadcast %3 : vector<1x896xf32> to vector<8x896xf32>
    %156 = arith.mulf %154, %155 : vector<8x896xf32>
    %c0_22 = arith.constant 0 : index
    %c0_23 = arith.constant 0 : index
    %157 = vector.load %arg4[%c0_22, %c0_23] : memref<16x72xbf16, #tpu.memory_space<vmem>>, vector<16x72xbf16>
    %158 = vector.extract_strided_slice %156 {offsets = [0, 1], sizes = [8, 895], strides = [1, 1]} : vector<8x896xf32> to vector<8x895xf32>
    %159 = vector.extract_strided_slice %156 {offsets = [0, 0], sizes = [8, 1], strides = [1, 1]} : vector<8x896xf32> to vector<8x1xf32>
    %160 = tpu.concatenate %158, %159 in 1 : vector<8x895xf32>, vector<8x1xf32> -> vector<8x896xf32>
    %161 = vector.extract_strided_slice %156 {offsets = [0, 2], sizes = [8, 894], strides = [1, 1]} : vector<8x896xf32> to vector<8x894xf32>
    %162 = vector.extract_strided_slice %156 {offsets = [0, 0], sizes = [8, 2], strides = [1, 1]} : vector<8x896xf32> to vector<8x2xf32>
    %163 = tpu.concatenate %161, %162 in 1 : vector<8x894xf32>, vector<8x2xf32> -> vector<8x896xf32>
    %164 = vector.extract_strided_slice %156 {offsets = [0, 20], sizes = [8, 876], strides = [1, 1]} : vector<8x896xf32> to vector<8x876xf32>
    %165 = vector.extract_strided_slice %156 {offsets = [0, 0], sizes = [8, 20], strides = [1, 1]} : vector<8x896xf32> to vector<8x20xf32>
    %166 = tpu.concatenate %164, %165 in 1 : vector<8x876xf32>, vector<8x20xf32> -> vector<8x896xf32>
    %167 = vector.extract_strided_slice %156 {offsets = [0, 21], sizes = [8, 875], strides = [1, 1]} : vector<8x896xf32> to vector<8x875xf32>
    %168 = vector.extract_strided_slice %156 {offsets = [0, 0], sizes = [8, 21], strides = [1, 1]} : vector<8x896xf32> to vector<8x21xf32>
    %169 = tpu.concatenate %167, %168 in 1 : vector<8x875xf32>, vector<8x21xf32> -> vector<8x896xf32>
    %170 = vector.extract_strided_slice %156 {offsets = [0, 22], sizes = [8, 874], strides = [1, 1]} : vector<8x896xf32> to vector<8x874xf32>
    %171 = vector.extract_strided_slice %156 {offsets = [0, 0], sizes = [8, 22], strides = [1, 1]} : vector<8x896xf32> to vector<8x22xf32>
    %172 = tpu.concatenate %170, %171 in 1 : vector<8x874xf32>, vector<8x22xf32> -> vector<8x896xf32>
    %173 = vector.extract_strided_slice %156 {offsets = [0, 40], sizes = [8, 856], strides = [1, 1]} : vector<8x896xf32> to vector<8x856xf32>
    %174 = vector.extract_strided_slice %156 {offsets = [0, 0], sizes = [8, 40], strides = [1, 1]} : vector<8x896xf32> to vector<8x40xf32>
    %175 = tpu.concatenate %173, %174 in 1 : vector<8x856xf32>, vector<8x40xf32> -> vector<8x896xf32>
    %176 = vector.extract_strided_slice %156 {offsets = [0, 41], sizes = [8, 855], strides = [1, 1]} : vector<8x896xf32> to vector<8x855xf32>
    %177 = vector.extract_strided_slice %156 {offsets = [0, 0], sizes = [8, 41], strides = [1, 1]} : vector<8x896xf32> to vector<8x41xf32>
    %178 = tpu.concatenate %176, %177 in 1 : vector<8x855xf32>, vector<8x41xf32> -> vector<8x896xf32>
    %179 = vector.extract_strided_slice %156 {offsets = [0, 42], sizes = [8, 854], strides = [1, 1]} : vector<8x896xf32> to vector<8x854xf32>
    %180 = vector.extract_strided_slice %156 {offsets = [0, 0], sizes = [8, 42], strides = [1, 1]} : vector<8x896xf32> to vector<8x42xf32>
    %181 = tpu.concatenate %179, %180 in 1 : vector<8x854xf32>, vector<8x42xf32> -> vector<8x896xf32>
    %182 = tpu.concatenate %156, %160, %163, %166, %169, %172, %175, %178, %181 in 0 : vector<8x896xf32>, vector<8x896xf32>, vector<8x896xf32>, vector<8x896xf32>, vector<8x896xf32>, vector<8x896xf32>, vector<8x896xf32>, vector<8x896xf32>, vector<8x896xf32> -> vector<72x896xf32>
    %183 = arith.truncf %182 : vector<72x896xf32> to vector<72x896xbf16>
    %cst_24 = arith.constant dense<0.000000e+00> : vector<16x896xf32>
    %184 = tpu.matmul %157, %183, %cst_24 {dimension_numbers = #tpu.dot_dimension_numbers<[1], [0], [0], [1], [0, 0, 1, 1], [], []>} : vector<16x72xbf16>, vector<72x896xbf16>, vector<16x896xf32> -> vector<16x896xf32>
    %185 = vector.extract_strided_slice %1 {offsets = [16, 0], sizes = [16, 3], strides = [1, 1]} : vector<40x3xf32> to vector<16x3xf32>
    %186 = vector.extract_strided_slice %185 {offsets = [0, 0], sizes = [16, 1], strides = [1, 1]} : vector<16x3xf32> to vector<16x1xf32>
    %187 = vector.extract_strided_slice %185 {offsets = [0, 1], sizes = [16, 1], strides = [1, 1]} : vector<16x3xf32> to vector<16x1xf32>
    %188 = vector.extract_strided_slice %185 {offsets = [0, 2], sizes = [16, 1], strides = [1, 1]} : vector<16x3xf32> to vector<16x1xf32>
    %189 = vector.broadcast %186 : vector<16x1xf32> to vector<16x896xf32>
    %190 = arith.addf %184, %189 : vector<16x896xf32>
    %cst_25 = arith.constant 0.000000e+00 : f32
    %191 = vector.broadcast %cst_25 : f32 to vector<16x896xf32>
    %192 = arith.maximumf %190, %191 : vector<16x896xf32>
    %193 = vector.broadcast %4 : vector<1x896xf32> to vector<16x896xf32>
    %194 = arith.mulf %192, %193 : vector<16x896xf32>
    %cst_26 = arith.constant dense<0.000000e+00> : vector<16xf32>
    %195 = vector.multi_reduction <add>, %194, %cst_26 [1] : vector<16x896xf32> to vector<16xf32>
    %196 = vector.shape_cast %195 : vector<16xf32> to vector<16x1xf32>
    %cst_27 = arith.constant 0.00255102036 : f32
    %197 = vector.broadcast %cst_27 : f32 to vector<16x1xf32>
    %198 = arith.mulf %196, %197 : vector<16x1xf32>
    %199 = vector.broadcast %198 : vector<16x1xf32> to vector<16x896xf32>
    %200 = arith.subf %194, %199 : vector<16x896xf32>
    %201 = vector.broadcast %4 : vector<1x896xf32> to vector<16x896xf32>
    %202 = arith.mulf %200, %201 : vector<16x896xf32>
    %203 = arith.mulf %202, %202 : vector<16x896xf32>
    %cst_28 = arith.constant dense<0.000000e+00> : vector<16xf32>
    %204 = vector.multi_reduction <add>, %203, %cst_28 [1] : vector<16x896xf32> to vector<16xf32>
    %205 = vector.shape_cast %204 : vector<16xf32> to vector<16x1xf32>
    %cst_29 = arith.constant 0.00255102036 : f32
    %206 = vector.broadcast %cst_29 : f32 to vector<16x1xf32>
    %207 = arith.mulf %205, %206 : vector<16x1xf32>
    %cst_30 = arith.constant 9.99999974E-6 : f32
    %208 = vector.broadcast %cst_30 : f32 to vector<16x1xf32>
    %209 = arith.addf %207, %208 : vector<16x1xf32>
    %210 = math.rsqrt %209 : vector<16x1xf32>
    %211 = vector.broadcast %210 : vector<16x1xf32> to vector<16x896xf32>
    %212 = arith.mulf %202, %211 : vector<16x896xf32>
    %213 = vector.broadcast %187 : vector<16x1xf32> to vector<16x896xf32>
    %214 = arith.mulf %212, %213 : vector<16x896xf32>
    %215 = vector.broadcast %188 : vector<16x1xf32> to vector<16x896xf32>
    %216 = arith.addf %214, %215 : vector<16x896xf32>
    %217 = vector.broadcast %4 : vector<1x896xf32> to vector<16x896xf32>
    %218 = arith.mulf %216, %217 : vector<16x896xf32>
    %c0_31 = arith.constant 0 : index
    %c0_32 = arith.constant 0 : index
    %219 = vector.load %arg5[%c0_31, %c0_32] : memref<8x144xbf16, #tpu.memory_space<vmem>>, vector<8x144xbf16>
    %220 = vector.extract_strided_slice %218 {offsets = [0, 875], sizes = [16, 21], strides = [1, 1]} : vector<16x896xf32> to vector<16x21xf32>
    %221 = vector.extract_strided_slice %218 {offsets = [0, 0], sizes = [16, 875], strides = [1, 1]} : vector<16x896xf32> to vector<16x875xf32>
    %222 = tpu.concatenate %220, %221 in 1 : vector<16x21xf32>, vector<16x875xf32> -> vector<16x896xf32>
    %223 = vector.extract_strided_slice %218 {offsets = [0, 876], sizes = [16, 20], strides = [1, 1]} : vector<16x896xf32> to vector<16x20xf32>
    %224 = vector.extract_strided_slice %218 {offsets = [0, 0], sizes = [16, 876], strides = [1, 1]} : vector<16x896xf32> to vector<16x876xf32>
    %225 = tpu.concatenate %223, %224 in 1 : vector<16x20xf32>, vector<16x876xf32> -> vector<16x896xf32>
    %226 = vector.extract_strided_slice %218 {offsets = [0, 877], sizes = [16, 19], strides = [1, 1]} : vector<16x896xf32> to vector<16x19xf32>
    %227 = vector.extract_strided_slice %218 {offsets = [0, 0], sizes = [16, 877], strides = [1, 1]} : vector<16x896xf32> to vector<16x877xf32>
    %228 = tpu.concatenate %226, %227 in 1 : vector<16x19xf32>, vector<16x877xf32> -> vector<16x896xf32>
    %229 = vector.extract_strided_slice %218 {offsets = [0, 895], sizes = [16, 1], strides = [1, 1]} : vector<16x896xf32> to vector<16x1xf32>
    %230 = vector.extract_strided_slice %218 {offsets = [0, 0], sizes = [16, 895], strides = [1, 1]} : vector<16x896xf32> to vector<16x895xf32>
    %231 = tpu.concatenate %229, %230 in 1 : vector<16x1xf32>, vector<16x895xf32> -> vector<16x896xf32>
    %232 = vector.extract_strided_slice %218 {offsets = [0, 1], sizes = [16, 895], strides = [1, 1]} : vector<16x896xf32> to vector<16x895xf32>
    %233 = vector.extract_strided_slice %218 {offsets = [0, 0], sizes = [16, 1], strides = [1, 1]} : vector<16x896xf32> to vector<16x1xf32>
    %234 = tpu.concatenate %232, %233 in 1 : vector<16x895xf32>, vector<16x1xf32> -> vector<16x896xf32>
    %235 = vector.extract_strided_slice %218 {offsets = [0, 19], sizes = [16, 877], strides = [1, 1]} : vector<16x896xf32> to vector<16x877xf32>
    %236 = vector.extract_strided_slice %218 {offsets = [0, 0], sizes = [16, 19], strides = [1, 1]} : vector<16x896xf32> to vector<16x19xf32>
    %237 = tpu.concatenate %235, %236 in 1 : vector<16x877xf32>, vector<16x19xf32> -> vector<16x896xf32>
    %238 = vector.extract_strided_slice %218 {offsets = [0, 20], sizes = [16, 876], strides = [1, 1]} : vector<16x896xf32> to vector<16x876xf32>
    %239 = vector.extract_strided_slice %218 {offsets = [0, 0], sizes = [16, 20], strides = [1, 1]} : vector<16x896xf32> to vector<16x20xf32>
    %240 = tpu.concatenate %238, %239 in 1 : vector<16x876xf32>, vector<16x20xf32> -> vector<16x896xf32>
    %241 = vector.extract_strided_slice %218 {offsets = [0, 21], sizes = [16, 875], strides = [1, 1]} : vector<16x896xf32> to vector<16x875xf32>
    %242 = vector.extract_strided_slice %218 {offsets = [0, 0], sizes = [16, 21], strides = [1, 1]} : vector<16x896xf32> to vector<16x21xf32>
    %243 = tpu.concatenate %241, %242 in 1 : vector<16x875xf32>, vector<16x21xf32> -> vector<16x896xf32>
    %244 = tpu.concatenate %222, %225, %228, %231, %218, %234, %237, %240, %243 in 0 : vector<16x896xf32>, vector<16x896xf32>, vector<16x896xf32>, vector<16x896xf32>, vector<16x896xf32>, vector<16x896xf32>, vector<16x896xf32>, vector<16x896xf32>, vector<16x896xf32> -> vector<144x896xf32>
    %245 = arith.truncf %244 : vector<144x896xf32> to vector<144x896xbf16>
    %cst_33 = arith.constant dense<0.000000e+00> : vector<8x896xf32>
    %246 = tpu.matmul %219, %245, %cst_33 {dimension_numbers = #tpu.dot_dimension_numbers<[1], [0], [0], [1], [0, 0, 1, 1], [], []>} : vector<8x144xbf16>, vector<144x896xbf16>, vector<8x896xf32> -> vector<8x896xf32>
    %247 = vector.extract_strided_slice %1 {offsets = [32, 0], sizes = [8, 3], strides = [1, 1]} : vector<40x3xf32> to vector<8x3xf32>
    %248 = vector.extract_strided_slice %247 {offsets = [0, 0], sizes = [8, 1], strides = [1, 1]} : vector<8x3xf32> to vector<8x1xf32>
    %249 = vector.extract_strided_slice %247 {offsets = [0, 1], sizes = [8, 1], strides = [1, 1]} : vector<8x3xf32> to vector<8x1xf32>
    %250 = vector.extract_strided_slice %247 {offsets = [0, 2], sizes = [8, 1], strides = [1, 1]} : vector<8x3xf32> to vector<8x1xf32>
    %251 = vector.broadcast %248 : vector<8x1xf32> to vector<8x896xf32>
    %252 = arith.addf %246, %251 : vector<8x896xf32>
    %cst_34 = arith.constant 0.000000e+00 : f32
    %253 = vector.broadcast %cst_34 : f32 to vector<8x896xf32>
    %254 = arith.maximumf %252, %253 : vector<8x896xf32>
    %255 = vector.broadcast %4 : vector<1x896xf32> to vector<8x896xf32>
    %256 = arith.mulf %254, %255 : vector<8x896xf32>
    %cst_35 = arith.constant dense<0.000000e+00> : vector<8xf32>
    %257 = vector.multi_reduction <add>, %256, %cst_35 [1] : vector<8x896xf32> to vector<8xf32>
    %258 = vector.shape_cast %257 : vector<8xf32> to vector<8x1xf32>
    %cst_36 = arith.constant 0.00255102036 : f32
    %259 = vector.broadcast %cst_36 : f32 to vector<8x1xf32>
    %260 = arith.mulf %258, %259 : vector<8x1xf32>
    %261 = vector.broadcast %260 : vector<8x1xf32> to vector<8x896xf32>
    %262 = arith.subf %256, %261 : vector<8x896xf32>
    %263 = vector.broadcast %4 : vector<1x896xf32> to vector<8x896xf32>
    %264 = arith.mulf %262, %263 : vector<8x896xf32>
    %265 = arith.mulf %264, %264 : vector<8x896xf32>
    %cst_37 = arith.constant dense<0.000000e+00> : vector<8xf32>
    %266 = vector.multi_reduction <add>, %265, %cst_37 [1] : vector<8x896xf32> to vector<8xf32>
    %267 = vector.shape_cast %266 : vector<8xf32> to vector<8x1xf32>
    %cst_38 = arith.constant 0.00255102036 : f32
    %268 = vector.broadcast %cst_38 : f32 to vector<8x1xf32>
    %269 = arith.mulf %267, %268 : vector<8x1xf32>
    %cst_39 = arith.constant 9.99999974E-6 : f32
    %270 = vector.broadcast %cst_39 : f32 to vector<8x1xf32>
    %271 = arith.addf %269, %270 : vector<8x1xf32>
    %272 = math.rsqrt %271 : vector<8x1xf32>
    %273 = vector.broadcast %272 : vector<8x1xf32> to vector<8x896xf32>
    %274 = arith.mulf %264, %273 : vector<8x896xf32>
    %275 = vector.broadcast %249 : vector<8x1xf32> to vector<8x896xf32>
    %276 = arith.mulf %274, %275 : vector<8x896xf32>
    %277 = vector.broadcast %250 : vector<8x1xf32> to vector<8x896xf32>
    %278 = arith.addf %276, %277 : vector<8x896xf32>
    %279 = vector.extract_strided_slice %278 {offsets = [0, 1], sizes = [8, 895], strides = [1, 1]} : vector<8x896xf32> to vector<8x895xf32>
    %280 = vector.extract_strided_slice %278 {offsets = [0, 0], sizes = [8, 1], strides = [1, 1]} : vector<8x896xf32> to vector<8x1xf32>
    %281 = tpu.concatenate %279, %280 in 1 : vector<8x895xf32>, vector<8x1xf32> -> vector<8x896xf32>
    %282 = arith.maximumf %278, %281 : vector<8x896xf32>
    %283 = vector.extract_strided_slice %278 {offsets = [0, 2], sizes = [8, 894], strides = [1, 1]} : vector<8x896xf32> to vector<8x894xf32>
    %284 = vector.extract_strided_slice %278 {offsets = [0, 0], sizes = [8, 2], strides = [1, 1]} : vector<8x896xf32> to vector<8x2xf32>
    %285 = tpu.concatenate %283, %284 in 1 : vector<8x894xf32>, vector<8x2xf32> -> vector<8x896xf32>
    %286 = arith.maximumf %282, %285 : vector<8x896xf32>
    %287 = vector.extract_strided_slice %286 {offsets = [0, 20], sizes = [8, 876], strides = [1, 1]} : vector<8x896xf32> to vector<8x876xf32>
    %288 = vector.extract_strided_slice %286 {offsets = [0, 0], sizes = [8, 20], strides = [1, 1]} : vector<8x896xf32> to vector<8x20xf32>
    %289 = tpu.concatenate %287, %288 in 1 : vector<8x876xf32>, vector<8x20xf32> -> vector<8x896xf32>
    %290 = arith.maximumf %286, %289 : vector<8x896xf32>
    %291 = vector.extract_strided_slice %286 {offsets = [0, 40], sizes = [8, 856], strides = [1, 1]} : vector<8x896xf32> to vector<8x856xf32>
    %292 = vector.extract_strided_slice %286 {offsets = [0, 0], sizes = [8, 40], strides = [1, 1]} : vector<8x896xf32> to vector<8x40xf32>
    %293 = tpu.concatenate %291, %292 in 1 : vector<8x856xf32>, vector<8x40xf32> -> vector<8x896xf32>
    %294 = arith.maximumf %290, %293 : vector<8x896xf32>
    %c0_40 = arith.constant 0 : index
    %c0_41 = arith.constant 0 : index
    %295 = vector.load %arg8[%c0_40, %c0_41] : memref<8x896xf32, #tpu.memory_space<vmem>>, vector<8x896xf32>
    tpu.vector_store %arg8[%c0_40, %c0_41], %294 {strides = array<i32>} : memref<8x896xf32, #tpu.memory_space<vmem>>, vector<8x896xf32>,
    return
  }
  func.func @transform_0(%arg0: i32) -> (i32, i32) {
    %c0_i32 = arith.constant 0 : i32
    %c0_i32_0 = arith.constant 0 : i32
    %c0_i32_1 = arith.constant 0 : i32
    return %c0_i32, %c0_i32_0 : i32, i32
  }
  func.func @transform_1(%arg0: i32) -> (i32, i32) {
    %c0_i32 = arith.constant 0 : i32
    %c0_i32_0 = arith.constant 0 : i32
    %c0_i32_1 = arith.constant 0 : i32
    return %c0_i32, %c0_i32_0 : i32, i32
  }
  func.func @transform_2(%arg0: i32) -> (i32, i32) {
    %c0_i32 = arith.constant 0 : i32
    %c0_i32_0 = arith.constant 0 : i32
    %c0_i32_1 = arith.constant 0 : i32
    return %c0_i32, %c0_i32_0 : i32, i32
  }
  func.func @transform_3(%arg0: i32) -> (i32, i32) {
    %c0_i32 = arith.constant 0 : i32
    %c0_i32_0 = arith.constant 0 : i32
    %c0_i32_1 = arith.constant 0 : i32
    return %c0_i32, %c0_i32_0 : i32, i32
  }
  func.func @transform_4(%arg0: i32) -> (i32, i32) {
    %c0_i32 = arith.constant 0 : i32
    %c0_i32_0 = arith.constant 0 : i32
    %c0_i32_1 = arith.constant 0 : i32
    return %c0_i32, %c0_i32_0 : i32, i32
  }
  func.func @transform_5(%arg0: i32) -> (i32, i32) {
    %c0_i32 = arith.constant 0 : i32
    %c0_i32_0 = arith.constant 0 : i32
    %c0_i32_1 = arith.constant 0 : i32
    return %c0_i32, %c0_i32_0 : i32, i32
  }
  func.func @transform_6(%arg0: i32) -> (i32, i32) {
    %c0_i32 = arith.constant 0 : i32
    %c0_i32_0 = arith.constant 0 : i32
    %c0_i32_1 = arith.constant 0 : i32
    return %c0_i32, %c0_i32_0 : i32, i32
  }
  func.func @transform_7(%arg0: i32) -> (i32, i32) {
    %c0_i32 = arith.constant 0 : i32
    %c0_i32_0 = arith.constant 0 : i32
    %c0_i32_1 = arith.constant 0 : i32
    return %c0_i32, %c0_i32_0 : i32, i32
  }
}

</mosaic_0001>

<llo_original>
// kernel: global_branch_forward.1
$region0: #{global_branch_forward.1}
  #allocation0 [shape = 'u32[]', space=smem, size = 0x4, offset = 0x4, fixed_abs, tag = 'smem constant byte address 0x4 - core index']
  #allocation1 [shape = 'u32[144,128]{1,0:T(1,128)}', space=vmem, size = 0x12000, scoped, tag = 'internal scratch']
  %s0 = inlined_call_operand.vmem [shape: f32[8,896], index: 0, kind: input, shape index: {}]
  %s1 = inlined_call_operand.vmem [shape: bf16[12,8], index: 1, kind: input, shape index: {}]
  %s2 = inlined_call_operand.vmem [shape: bf16[4,200], index: 2, kind: input, shape index: {}]
  %s3 = inlined_call_operand.vmem [shape: bf16[16,72], index: 3, kind: input, shape index: {}]
  %s4 = inlined_call_operand.vmem [shape: bf16[8,144], index: 4, kind: input, shape index: {}]
  %s5 = inlined_call_operand.vmem [shape: f32[40,3], index: 5, kind: input, shape index: {}]
  %s6 = inlined_call_operand.vmem [shape: f32[2,896], index: 6, kind: input, shape index: {}]
  %s7 = inlined_call_operand.vmem [shape: f32[8,896], index: 7, kind: output, shape index: {}]
  %s8 = sld [smem:[#allocation0]]
  $region38: #{global_branch_forward.1} parent=0
    _
  %s10 = ssub.s32 1, %s8
  %s11 = scalar_select 0, %s10, %s8
  // Predicated region
  $region2: #{global_branch_forward.1} parent=0 // pred_check
    _
  $region3: #{global_branch_forward.1} parent=0 // pred_check_branch
    %13 = sbr.rel (0) target = $region5
  $region4: #{global_branch_forward.1} parent=0 // pred_region
    _
  $region5: #{global_branch_forward.1} parent=0 // pred_fallthru
    _
  // Predicated region
  $region6: #{global_branch_forward.1} parent=0 // pred_check
    _
  $region7: #{global_branch_forward.1} parent=0 // pred_check_branch
    %15 = sbr.rel (0) target = $region9
  $region8: #{global_branch_forward.1} parent=0 // pred_region
    _
  $region9: #{global_branch_forward.1} parent=0 // pred_fallthru
    _
  // Predicated region
  $region10: #{global_branch_forward.1} parent=0 // pred_check
    _
  $region11: #{global_branch_forward.1} parent=0 // pred_check_branch
    %17 = sbr.rel (0) target = $region13
  $region12: #{global_branch_forward.1} parent=0 // pred_region
    _
  $region13: #{global_branch_forward.1} parent=0 // pred_fallthru
    _
  // Predicated region
  $region14: #{global_branch_forward.1} parent=0 // pred_check
    _
  $region15: #{global_branch_forward.1} parent=0 // pred_check_branch
    %19 = sbr.rel (0) target = $region17
  $region16: #{global_branch_forward.1} parent=0 // pred_region
    _
  $region17: #{global_branch_forward.1} parent=0 // pred_fallthru
    _
  // Predicated region
  $region18: #{global_branch_forward.1} parent=0 // pred_check
    _
  $region19: #{global_branch_forward.1} parent=0 // pred_check_branch
    %21 = sbr.rel (0) target = $region21
  $region20: #{global_branch_forward.1} parent=0 // pred_region
    _
  $region21: #{global_branch_forward.1} parent=0 // pred_fallthru
    _
  // Predicated region
  $region22: #{global_branch_forward.1} parent=0 // pred_check
    _
  $region23: #{global_branch_forward.1} parent=0 // pred_check_branch
    %23 = sbr.rel (0) target = $region25
  $region24: #{global_branch_forward.1} parent=0 // pred_region
    _
  $region25: #{global_branch_forward.1} parent=0 // pred_fallthru
    _
  // Predicated region
  $region26: #{global_branch_forward.1} parent=0 // pred_check
    _
  $region27: #{global_branch_forward.1} parent=0 // pred_check_branch
    %25 = sbr.rel (0) target = $region29
  $region28: #{global_branch_forward.1} parent=0 // pred_region
    _
  $region29: #{global_branch_forward.1} parent=0 // pred_fallthru
    _
  %v27 = vld [vmem:[%s0] sm:$0xff]
  %v28 = vld [vmem:[%s0 + $0x8] sm:$0xff]
  %v29 = vld [vmem:[%s0 + $0x10] sm:$0xff]
  %v30 = vld [vmem:[%s0 + $0x18] sm:$0xff]
  %v31 = vld [vmem:[%s0 + $0x20] sm:$0xff]
  %v32 = vld [vmem:[%s0 + $0x28] sm:$0xff]
  %v33 = vld [vmem:[%s0 + $0x30] sm:$0xff]
  %v34 = vld [vmem:[%s5] sm:$0xff]
  %v35 = vld [vmem:[%s5 + $0x8] sm:$0xff]
  %v36 = vld [vmem:[%s5 + $0x10] sm:$0xff]
  %v37 = vld [vmem:[%s5 + $0x18] sm:$0xff]
  %v38 = vld [vmem:[%s5 + $0x20] sm:$0xff]
  %v39 = vld [vmem:[%s6] sm:$0xff]
  %v40 = vld [vmem:[%s6 + $0x8] sm:$0x3f]
  %v41 = vld [vmem:[%s1] sm:$0xf]
  %v42 = vld [vmem:[%s1 + $0x4] sm:$0x3]
  %v43 = vpack.c.bf16 %v27, %v27
  %v44 = vpack.c.bf16 %v28, %v28
  %v45 = vpack.c.bf16 %v29, %v29
  %v46 = vpack.c.bf16 %v30, %v30
  %v47 = vpack.c.bf16 %v31, %v31
  %v48 = vpack.c.bf16 %v32, %v32
  %v49 = vpack.c.bf16 %v33, %v33
  %v52 = vunpack.c.l.b16 %v41
  %v53 = vunpack.c.l.b16 %v42
  %v54 = vpack.c.b16 %v53, %v52
  %vm55 = vcmask 64512
  %v57 = vsel %vm55, %v54, 0
  %vm59 = vcmask 1043456
  %v61 = vsel %vm59, %v43, 0
  %v64 = vsel %vm59, %v44, 0
  %v67 = vsel %vm59, %v45, 0
  %v70 = vsel %vm59, %v46, 0
  %v73 = vsel %vm59, %v47, 0
  %v76 = vsel %vm59, %v48, 0
  %v79 = vsel %vm59, %v49, 0
  %81 = vmatprep.subr.bf16.mxu0 %v64
  %82 = vmatpush1.bf16.msra.mxu0 %v61
  %83 = vmatprep.subr.bf16.mxu0 0
  %84 = vmatpush1.bf16.msra.mxu0 0
  %85 = vmatprep.subr.bf16.mxu0 0
  %86 = vmatpush1.bf16.msra.mxu0 0
  %87 = vmatprep.subr.bf16.mxu0 0
  %88 = vmatpush1.bf16.msra.mxu0 0
  %89 = vmatprep.subr.bf16.mxu0 0
  %90 = vmatpush1.bf16.msra.mxu0 0
  %91 = vmatprep.subr.bf16.mxu0 0
  %92 = vmatpush1.bf16.msra.mxu0 0
  %93 = vmatprep.subr.bf16.mxu0 0
  %94 = vmatpush1.bf16.msra.mxu0 0
  %95 = vmatprep.subr.bf16.mxu0 0
  %96 = vmatpush1.bf16.msra.mxu0 0
  %97 = vmatprep.subr.bf16.mxu0 0
  %98 = vmatpush1.bf16.msra.mxu0 0
  %99 = vmatprep.subr.bf16.mxu0 0
  %100 = vmatpush1.bf16.msra.mxu0 0
  %101 = vmatprep.subr.bf16.mxu0 0
  %102 = vmatpush1.bf16.msra.mxu0 0
  %103 = vmatprep.subr.bf16.mxu0 0
  %104 = vmatpush1.bf16.msra.mxu0 0
  %105 = vmatprep.subr.bf16.mxu0 0
  %106 = vmatpush1.bf16.msra.mxu0 0
  %107 = vmatprep.subr.bf16.mxu0 0
  %108 = vmatpush1.bf16.msra.mxu0 0
  %109 = vmatprep.subr.bf16.mxu0 0
  %110 = vmatpush1.bf16.msra.mxu0 0
  %111 = vmatprep.subr.bf16.mxu0 0
  %112 = vmatpush1.bf16.msra.mxu0 0
  %113 = vmatprep.mubr.bf16.mxu0 0
  %114 = vmatmul.mubr.bf16.gmra.mrb[0].mxu0 %v57
  %v115 = vpop.f32.mrb[0].mxu0
  %v116 = vadd.f32 0.0, %v115
  %v117 = vpop.f32.mrb[0].mxu0
  %v118 = vadd.f32 0.0, %v117
  %v119 = vpop.f32.mrb[0].mxu0
  %v120 = vadd.f32 0.0, %v119
  %v121 = vpop.f32.mrb[0].mxu0
  %v122 = vadd.f32 0.0, %v121
  %123 = vdwg.mxu0
  %124 = vmatprep.subr.bf16.mxu0 %v70
  %125 = vmatpush1.bf16.msra.mxu0 %v67
  %126 = vmatprep.subr.bf16.mxu0 0
  %127 = vmatpush1.bf16.msra.mxu0 0
  %128 = vmatprep.subr.bf16.mxu0 0
  %129 = vmatpush1.bf16.msra.mxu0 0
  %130 = vmatprep.subr.bf16.mxu0 0
  %131 = vmatpush1.bf16.msra.mxu0 0
  %132 = vmatprep.subr.bf16.mxu0 0
  %133 = vmatpush1.bf16.msra.mxu0 0
  %134 = vmatprep.subr.bf16.mxu0 0
  %135 = vmatpush1.bf16.msra.mxu0 0
  %136 = vmatprep.subr.bf16.mxu0 0
  %137 = vmatpush1.bf16.msra.mxu0 0
  %138 = vmatprep.subr.bf16.mxu0 0
  %139 = vmatpush1.bf16.msra.mxu0 0
  %140 = vmatprep.subr.bf16.mxu0 0
  %141 = vmatpush1.bf16.msra.mxu0 0
  %142 = vmatprep.subr.bf16.mxu0 0
  %143 = vmatpush1.bf16.msra.mxu0 0
  %144 = vmatprep.subr.bf16.mxu0 0
  %145 = vmatpush1.bf16.msra.mxu0 0
  %146 = vmatprep.subr.bf16.mxu0 0
  %147 = vmatpush1.bf16.msra.mxu0 0
  %148 = vmatprep.subr.bf16.mxu0 0
  %149 = vmatpush1.bf16.msra.mxu0 0
  %150 = vmatprep.subr.bf16.mxu0 0
  %151 = vmatpush1.bf16.msra.mxu0 0
  %152 = vmatprep.subr.bf16.mxu0 0
  %153 = vmatpush1.bf16.msra.mxu0 0
  %154 = vmatprep.subr.bf16.mxu0 0
  %155 = vmatpush1.bf16.msra.mxu0 0
  %156 = vmatprep.mubr.bf16.mxu0 0
  %157 = vmatmul.mubr.bf16.gmra.mrb[0].mxu0 %v57
  %v158 = vpop.f32.mrb[0].mxu0
  %v159 = vadd.f32 0.0, %v158
  %v160 = vpop.f32.mrb[0].mxu0
  %v161 = vadd.f32 0.0, %v160
  %v162 = vpop.f32.mrb[0].mxu0
  %v163 = vadd.f32 0.0, %v162
  %v164 = vpop.f32.mrb[0].mxu0
  %v165 = vadd.f32 0.0, %v164
  %166 = vdwg.mxu0
  %167 = vmatprep.subr.bf16.mxu0 %v76
  %168 = vmatpush1.bf16.msra.mxu0 %v73
  %169 = vmatprep.subr.bf16.mxu0 0
  %170 = vmatpush1.bf16.msra.mxu0 0
  %171 = vmatprep.subr.bf16.mxu0 0
  %172 = vmatpush1.bf16.msra.mxu0 0
  %173 = vmatprep.subr.bf16.mxu0 0
  %174 = vmatpush1.bf16.msra.mxu0 0
  %175 = vmatprep.subr.bf16.mxu0 0
  %176 = vmatpush1.bf16.msra.mxu0 0
  %177 = vmatprep.subr.bf16.mxu0 0
  %178 = vmatpush1.bf16.msra.mxu0 0
  %179 = vmatprep.subr.bf16.mxu0 0
  %180 = vmatpush1.bf16.msra.mxu0 0
  %181 = vmatprep.subr.bf16.mxu0 0
  %182 = vmatpush1.bf16.msra.mxu0 0
  %183 = vmatprep.subr.bf16.mxu0 0
  %184 = vmatpush1.bf16.msra.mxu0 0
  %185 = vmatprep.subr.bf16.mxu0 0
  %186 = vmatpush1.bf16.msra.mxu0 0
  %187 = vmatprep.subr.bf16.mxu0 0
  %188 = vmatpush1.bf16.msra.mxu0 0
  %189 = vmatprep.subr.bf16.mxu0 0
  %190 = vmatpush1.bf16.msra.mxu0 0
  %191 = vmatprep.subr.bf16.mxu0 0
  %192 = vmatpush1.bf16.msra.mxu0 0
  %193 = vmatprep.subr.bf16.mxu0 0
  %194 = vmatpush1.bf16.msra.mxu0 0
  %195 = vmatprep.subr.bf16.mxu0 0
  %196 = vmatpush1.bf16.msra.mxu0 0
  %197 = vmatprep.subr.bf16.mxu0 0
  %198 = vmatpush1.bf16.msra.mxu0 0
  %199 = vmatprep.mubr.bf16.mxu0 0
  %200 = vmatmul.mubr.bf16.gmra.mrb[0].mxu0 %v57
  %v201 = vpop.f32.mrb[0].mxu0
  %v202 = vadd.f32 0.0, %v201
  %v203 = vpop.f32.mrb[0].mxu0
  %v204 = vadd.f32 0.0, %v203
  %v205 = vpop.f32.mrb[0].mxu0
  %v206 = vadd.f32 0.0, %v205
  %v207 = vpop.f32.mrb[0].mxu0
  %v208 = vadd.f32 0.0, %v207
  %209 = vdwg.mxu0
  %210 = vmatprep.subr.bf16.mxu0 0
  %211 = vmatpush1.bf16.msra.mxu0 %v79
  %212 = vmatprep.subr.bf16.mxu0 0
  %213 = vmatpush1.bf16.msra.mxu0 0
  %214 = vmatprep.subr.bf16.mxu0 0
  %215 = vmatpush1.bf16.msra.mxu0 0
  %216 = vmatprep.subr.bf16.mxu0 0
  %217 = vmatpush1.bf16.msra.mxu0 0
  %218 = vmatprep.subr.bf16.mxu0 0
  %219 = vmatpush1.bf16.msra.mxu0 0
  %220 = vmatprep.subr.bf16.mxu0 0
  %221 = vmatpush1.bf16.msra.mxu0 0
  %222 = vmatprep.subr.bf16.mxu0 0
  %223 = vmatpush1.bf16.msra.mxu0 0
  %224 = vmatprep.subr.bf16.mxu0 0
  %225 = vmatpush1.bf16.msra.mxu0 0
  %226 = vmatprep.subr.bf16.mxu0 0
  %227 = vmatpush1.bf16.msra.mxu0 0
  %228 = vmatprep.subr.bf16.mxu0 0
  %229 = vmatpush1.bf16.msra.mxu0 0
  %230 = vmatprep.subr.bf16.mxu0 0
  %231 = vmatpush1.bf16.msra.mxu0 0
  %232 = vmatprep.subr.bf16.mxu0 0
  %233 = vmatpush1.bf16.msra.mxu0 0
  %234 = vmatprep.subr.bf16.mxu0 0
  %235 = vmatpush1.bf16.msra.mxu0 0
  %236 = vmatprep.subr.bf16.mxu0 0
  %237 = vmatpush1.bf16.msra.mxu0 0
  %238 = vmatprep.subr.bf16.mxu0 0
  %239 = vmatpush1.bf16.msra.mxu0 0
  %240 = vmatprep.subr.bf16.mxu0 0
  %241 = vmatpush1.bf16.msra.mxu0 0
  %242 = vmatprep.mubr.bf16.mxu0 0
  %243 = vmatmul.mubr.bf16.gmra.mrb[0].mxu0 %v57
  %v244 = vpop.f32.mrb[0].mxu0
  %v245 = vadd.f32 0.0, %v244
  %v246 = vpop.f32.mrb[0].mxu0
  %v247 = vpop.f32.mrb[0].mxu0
  %v248 = vadd.f32 0.0, %v247
  %v249 = vpop.f32.mrb[0].mxu0
  %250 = vdwg.mxu0
  %252 = vset.pattern.permute.xlu0 0
  %253 = vperm.xlu0 %252, %v34
  %v254 = vpop.permute.xlu0 %253
  %v256 = vadd.f32 %v116, %v254
  %v257 = vadd.f32 %v118, %v254
  %v258 = vadd.f32 %v159, %v254
  %v259 = vadd.f32 %v161, %v254
  %v260 = vadd.f32 %v202, %v254
  %v261 = vadd.f32 %v204, %v254
  %v262 = vadd.f32 %v245, %v254
  %v263 = vmax.f32 %v256, 0.0
  %v264 = vmax.f32 %v257, 0.0
  %v265 = vmax.f32 %v258, 0.0
  %v266 = vmax.f32 %v259, 0.0
  %v267 = vmax.f32 %v260, 0.0
  %v268 = vmax.f32 %v261, 0.0
  %v269 = vmax.f32 %v262, 0.0
  %v272 = vlaneseq
  %v273 = vshrl.u32 %v272, 7
  %v274 = vsub.s32 0, %v273
  %v275 = vrot.slane %v39, %v274
  %v276 = vlaneseq
  %v277 = vshrl.u32 %v276, 7
  %v278 = vsub.s32 2, %v277
  %v279 = vrot.slane %v39, %v278
  %v280 = vlaneseq
  %v281 = vshrl.u32 %v280, 7
  %v282 = vsub.s32 4, %v281
  %v283 = vrot.slane %v39, %v282
  %v284 = vlaneseq
  %v285 = vshrl.u32 %v284, 7
  %v286 = vsub.s32 6, %v285
  %v287 = vrot.slane %v39, %v286
  %v288 = vlaneseq
  %v289 = vshrl.u32 %v288, 7
  %v290 = vsub.s32 0, %v289
  %v291 = vrot.slane %v40, %v290
  %v292 = vlaneseq
  %v293 = vshrl.u32 %v292, 7
  %v294 = vsub.s32 2, %v293
  %v295 = vrot.slane %v40, %v294
  %v296 = vlaneseq
  %v297 = vshrl.u32 %v296, 7
  %v298 = vsub.s32 4, %v297
  %v299 = vrot.slane %v40, %v298
  %v307 = vlaneseq
  %v308 = vshrl.u32 %v307, 7
  %v309 = vsub.s32 0, %v308
  %v310 = vrot.slane %v275, %v309
  %v311 = vlaneseq
  %v312 = vshrl.u32 %v311, 7
  %v313 = vsub.s32 0, %v312
  %v314 = vrot.slane %v279, %v313
  %v315 = vlaneseq
  %v316 = vshrl.u32 %v315, 7
  %v317 = vsub.s32 0, %v316
  %v318 = vrot.slane %v283, %v317
  %v319 = vlaneseq
  %v320 = vshrl.u32 %v319, 7
  %v321 = vsub.s32 0, %v320
  %v322 = vrot.slane %v287, %v321
  %v323 = vlaneseq
  %v324 = vshrl.u32 %v323, 7
  %v325 = vsub.s32 0, %v324
  %v326 = vrot.slane %v291, %v325
  %v327 = vlaneseq
  %v328 = vshrl.u32 %v327, 7
  %v329 = vsub.s32 0, %v328
  %v330 = vrot.slane %v295, %v329
  %v331 = vlaneseq
  %v332 = vshrl.u32 %v331, 7
  %v333 = vsub.s32 0, %v332
  %v334 = vrot.slane %v299, %v333
  %v335 = vmul.f32 %v263, %v310
  %v336 = vmul.f32 %v264, %v314
  %v337 = vmul.f32 %v265, %v318
  %v338 = vmul.f32 %v266, %v322
  %v339 = vmul.f32 %v267, %v326
  %v340 = vmul.f32 %v268, %v330
  %v341 = vmul.f32 %v269, %v334
  %v342 = vadd.f32 %v335, %v336
  %v343 = vadd.f32 %v342, %v337
  %v344 = vadd.f32 %v343, %v338
  %v345 = vadd.f32 %v344, %v339
  %v346 = vadd.f32 %v345, %v340
  %v347 = vadd.f32 %v346, %v341
  %348 = vadd.xlane.f32.xlu0 %v347
  %v349 = vpop.xlane.xlu0 %348
  %v350 = vmul.f32 %v349, 0.001953125
  %v351 = vsub.f32 %v335, %v350
  %v352 = vsub.f32 %v336, %v350
  %v353 = vsub.f32 %v337, %v350
  %v354 = vsub.f32 %v338, %v350
  %v355 = vsub.f32 %v339, %v350
  %v356 = vsub.f32 %v340, %v350
  %v357 = vsub.f32 %v341, %v350
  %v358 = vmul.f32 %v351, %v310
  %v359 = vmul.f32 %v352, %v314
  %v360 = vmul.f32 %v353, %v318
  %v361 = vmul.f32 %v354, %v322
  %v362 = vmul.f32 %v355, %v326
  %v363 = vmul.f32 %v356, %v330
  %v364 = vmul.f32 %v357, %v334
  %v365 = vmul.f32 %v358, %v358
  %v366 = vmul.f32 %v359, %v359
  %v367 = vmul.f32 %v360, %v360
  %v368 = vmul.f32 %v361, %v361
  %v369 = vmul.f32 %v362, %v362
  %v370 = vmul.f32 %v363, %v363
  %v371 = vmul.f32 %v364, %v364
  %v372 = vadd.f32 %v365, %v366
  %v373 = vadd.f32 %v372, %v367
  %v374 = vadd.f32 %v373, %v368
  %v375 = vadd.f32 %v374, %v369
  %v376 = vadd.f32 %v375, %v370
  %v377 = vadd.f32 %v376, %v371
  %378 = vadd.xlane.f32.xlu0 %v377
  %v379 = vpop.xlane.xlu0 %378
  %v380 = vmul.f32 %v379, 0.001953125
  %v381 = vadd.f32 %v380, 1e-05
  %v382 = vrsqrt.pop %v381
  %v383 = vmul.f32 %v358, %v382
  %v384 = vmul.f32 %v359, %v382
  %v385 = vmul.f32 %v360, %v382
  %v386 = vmul.f32 %v361, %v382
  %v387 = vmul.f32 %v362, %v382
  %v388 = vmul.f32 %v363, %v382
  %v389 = vmul.f32 %v364, %v382
  %390 = vset.pattern.permute.xlu0 1
  %391 = vperm.xlu0 %390, %v34
  %v392 = vpop.permute.xlu0 %391
  %v394 = vmul.f32 %v383, %v392
  %v395 = vmul.f32 %v384, %v392
  %v396 = vmul.f32 %v385, %v392
  %v397 = vmul.f32 %v386, %v392
  %v398 = vmul.f32 %v387, %v392
  %v399 = vmul.f32 %v388, %v392
  %v400 = vmul.f32 %v389, %v392
  %401 = vset.pattern.permute.xlu0 2
  %402 = vperm.xlu0 %401, %v34
  %v403 = vpop.permute.xlu0 %402
  %v405 = vadd.f32 %v394, %v403
  %v406 = vadd.f32 %v395, %v403
  %v407 = vadd.f32 %v396, %v403
  %v408 = vadd.f32 %v397, %v403
  %v409 = vadd.f32 %v398, %v403
  %v410 = vadd.f32 %v399, %v403
  %v411 = vadd.f32 %v400, %v403
  %v412 = vmul.f32 %v405, %v310
  %v413 = vmul.f32 %v406, %v314
  %v414 = vmul.f32 %v407, %v318
  %v415 = vmul.f32 %v408, %v322
  %v416 = vmul.f32 %v409, %v326
  %v417 = vmul.f32 %v410, %v330
  %v418 = vmul.f32 %v411, %v334
  %v419 = vld [vmem:[%s2] sm:$0xf]
  %421 = vrot.lane.b32.xlu0 %v418, 42
  %v422 = vpop.permute.xlu0 %421
  %430 = vrot.lane.b32.xlu0 %v412, 42
  %v431 = vpop.permute.xlu0 %430
  %432 = vrot.lane.b32.xlu0 %v413, 42
  %v433 = vpop.permute.xlu0 %432
  %434 = vrot.lane.b32.xlu0 %v414, 42
  %v435 = vpop.permute.xlu0 %434
  %436 = vrot.lane.b32.xlu0 %v415, 42
  %v437 = vpop.permute.xlu0 %436
  %438 = vrot.lane.b32.xlu0 %v416, 42
  %v439 = vpop.permute.xlu0 %438
  %440 = vrot.lane.b32.xlu0 %v417, 42
  %v441 = vpop.permute.xlu0 %440
  %vm442 = vcmask 343040
  %v443 = vsel %vm442, %v431, %v433
  %v444 = vsel %vm442, %v433, %v435
  %v445 = vsel %vm442, %v435, %v437
  %v446 = vsel %vm442, %v437, %v439
  %v447 = vsel %vm442, %v439, %v441
  %v448 = vsel %vm442, %v441, %v422
  %v456 = vsel %vm442, %v422, %v431
  %457 = vrot.lane.b32.xlu0 %v418, 41
  %v458 = vpop.permute.xlu0 %457
  %460 = vrot.lane.b32.xlu0 %v412, 41
  %v461 = vpop.permute.xlu0 %460
  %462 = vrot.lane.b32.xlu0 %v413, 41
  %v463 = vpop.permute.xlu0 %462
  %464 = vrot.lane.b32.xlu0 %v414, 41
  %v465 = vpop.permute.xlu0 %464
  %466 = vrot.lane.b32.xlu0 %v415, 41
  %v467 = vpop.permute.xlu0 %466
  %468 = vrot.lane.b32.xlu0 %v416, 41
  %v469 = vpop.permute.xlu0 %468
  %470 = vrot.lane.b32.xlu0 %v417, 41
  %v471 = vpop.permute.xlu0 %470
  %vm472 = vcmask 334848
  %v473 = vsel %vm472, %v461, %v463
  %v474 = vsel %vm472, %v463, %v465
  %v475 = vsel %vm472, %v465, %v467
  %v476 = vsel %vm472, %v467, %v469
  %v477 = vsel %vm472, %v469, %v471
  %v478 = vsel %vm472, %v471, %v458
  %v486 = vsel %vm472, %v458, %v461
  %487 = vrot.lane.b32.xlu0 %v418, 40
  %v488 = vpop.permute.xlu0 %487
  %490 = vrot.lane.b32.xlu0 %v412, 40
  %v491 = vpop.permute.xlu0 %490
  %492 = vrot.lane.b32.xlu0 %v413, 40
  %v493 = vpop.permute.xlu0 %492
  %494 = vrot.lane.b32.xlu0 %v414, 40
  %v495 = vpop.permute.xlu0 %494
  %496 = vrot.lane.b32.xlu0 %v415, 40
  %v497 = vpop.permute.xlu0 %496
  %498 = vrot.lane.b32.xlu0 %v416, 40
  %v499 = vpop.permute.xlu0 %498
  %500 = vrot.lane.b32.xlu0 %v417, 40
  %v501 = vpop.permute.xlu0 %500
  %vm502 = vcmask 326656
  %v503 = vsel %vm502, %v491, %v493
  %v504 = vsel %vm502, %v493, %v495
  %v505 = vsel %vm502, %v495, %v497
  %v506 = vsel %vm502, %v497, %v499
  %v507 = vsel %vm502, %v499, %v501
  %v508 = vsel %vm502, %v501, %v488
  %v516 = vsel %vm502, %v488, %v491
  %517 = vrot.lane.b32.xlu0 %v418, 39
  %v518 = vpop.permute.xlu0 %517
  %520 = vrot.lane.b32.xlu0 %v412, 39
  %v521 = vpop.permute.xlu0 %520
  %522 = vrot.lane.b32.xlu0 %v413, 39
  %v523 = vpop.permute.xlu0 %522
  %524 = vrot.lane.b32.xlu0 %v414, 39
  %v525 = vpop.permute.xlu0 %524
  %526 = vrot.lane.b32.xlu0 %v415, 39
  %v527 = vpop.permute.xlu0 %526
  %528 = vrot.lane.b32.xlu0 %v416, 39
  %v529 = vpop.permute.xlu0 %528
  %530 = vrot.lane.b32.xlu0 %v417, 39
  %v531 = vpop.permute.xlu0 %530
  %vm532 = vcmask 318464
  %v533 = vsel %vm532, %v521, %v523
  %v534 = vsel %vm532, %v523, %v525
  %v535 = vsel %vm532, %v525, %v527
  %v536 = vsel %vm532, %v527, %v529
  %v537 = vsel %vm532, %v529, %v531
  %v538 = vsel %vm532, %v531, %v518
  %v546 = vsel %vm532, %v518, %v521
  %547 = vrot.lane.b32.xlu0 %v418, 38
  %v548 = vpop.permute.xlu0 %547
  %550 = vrot.lane.b32.xlu0 %v412, 38
  %v551 = vpop.permute.xlu0 %550
  %552 = vrot.lane.b32.xlu0 %v413, 38
  %v553 = vpop.permute.xlu0 %552
  %554 = vrot.lane.b32.xlu0 %v414, 38
  %v555 = vpop.permute.xlu0 %554
  %556 = vrot.lane.b32.xlu0 %v415, 38
  %v557 = vpop.permute.xlu0 %556
  %558 = vrot.lane.b32.xlu0 %v416, 38
  %v559 = vpop.permute.xlu0 %558
  %560 = vrot.lane.b32.xlu0 %v417, 38
  %v561 = vpop.permute.xlu0 %560
  %vm562 = vcmask 310272
  %v563 = vsel %vm562, %v551, %v553
  %v564 = vsel %vm562, %v553, %v555
  %v565 = vsel %vm562, %v555, %v557
  %v566 = vsel %vm562, %v557, %v559
  %v567 = vsel %vm562, %v559, %v561
  %v568 = vsel %vm562, %v561, %v548
  %v576 = vsel %vm562, %v548, %v551
  %577 = vrot.lane.b32.xlu0 %v418, 22
  %v578 = vpop.permute.xlu0 %577
  %580 = vrot.lane.b32.xlu0 %v412, 22
  %v581 = vpop.permute.xlu0 %580
  %582 = vrot.lane.b32.xlu0 %v413, 22
  %v583 = vpop.permute.xlu0 %582
  %584 = vrot.lane.b32.xlu0 %v414, 22
  %v585 = vpop.permute.xlu0 %584
  %586 = vrot.lane.b32.xlu0 %v415, 22
  %v587 = vpop.permute.xlu0 %586
  %588 = vrot.lane.b32.xlu0 %v416, 22
  %v589 = vpop.permute.xlu0 %588
  %590 = vrot.lane.b32.xlu0 %v417, 22
  %v591 = vpop.permute.xlu0 %590
  %vm592 = vcmask 179200
  %v593 = vsel %vm592, %v581, %v583
  %v594 = vsel %vm592, %v583, %v585
  %v595 = vsel %vm592, %v585, %v587
  %v596 = vsel %vm592, %v587, %v589
  %v597 = vsel %vm592, %v589, %v591
  %v598 = vsel %vm592, %v591, %v578
  %v606 = vsel %vm592, %v578, %v581
  %607 = vrot.lane.b32.xlu0 %v418, 21
  %v608 = vpop.permute.xlu0 %607
  %610 = vrot.lane.b32.xlu0 %v412, 21
  %v611 = vpop.permute.xlu0 %610
  %612 = vrot.lane.b32.xlu0 %v413, 21
  %v613 = vpop.permute.xlu0 %612
  %614 = vrot.lane.b32.xlu0 %v414, 21
  %v615 = vpop.permute.xlu0 %614
  %616 = vrot.lane.b32.xlu0 %v415, 21
  %v617 = vpop.permute.xlu0 %616
  %618 = vrot.lane.b32.xlu0 %v416, 21
  %v619 = vpop.permute.xlu0 %618
  %620 = vrot.lane.b32.xlu0 %v417, 21
  %v621 = vpop.permute.xlu0 %620
  %vm622 = vcmask 171008
  %v623 = vsel %vm622, %v611, %v613
  %v624 = vsel %vm622, %v613, %v615
  %v625 = vsel %vm622, %v615, %v617
  %v626 = vsel %vm622, %v617, %v619
  %v627 = vsel %vm622, %v619, %v621
  %v628 = vsel %vm622, %v621, %v608
  %v636 = vsel %vm622, %v608, %v611
  %637 = vrot.lane.b32.xlu0 %v418, 20
  %v638 = vpop.permute.xlu0 %637
  %640 = vrot.lane.b32.xlu0 %v412, 20
  %v641 = vpop.permute.xlu0 %640
  %642 = vrot.lane.b32.xlu0 %v413, 20
  %v643 = vpop.permute.xlu0 %642
  %644 = vrot.lane.b32.xlu0 %v414, 20
  %v645 = vpop.permute.xlu0 %644
  %646 = vrot.lane.b32.xlu0 %v415, 20
  %v647 = vpop.permute.xlu0 %646
  %648 = vrot.lane.b32.xlu0 %v416, 20
  %v649 = vpop.permute.xlu0 %648
  %650 = vrot.lane.b32.xlu0 %v417, 20
  %v651 = vpop.permute.xlu0 %650
  %vm652 = vcmask 162816
  %v653 = vsel %vm652, %v641, %v643
  %v654 = vsel %vm652, %v643, %v645
  %v655 = vsel %vm652, %v645, %v647
  %v656 = vsel %vm652, %v647, %v649
  %v657 = vsel %vm652, %v649, %v651
  %v658 = vsel %vm652, %v651, %v638
  %v666 = vsel %vm652, %v638, %v641
  %667 = vrot.lane.b32.xlu0 %v418, 19
  %v668 = vpop.permute.xlu0 %667
  %670 = vrot.lane.b32.xlu0 %v412, 19
  %v671 = vpop.permute.xlu0 %670
  %672 = vrot.lane.b32.xlu0 %v413, 19
  %v673 = vpop.permute.xlu0 %672
  %674 = vrot.lane.b32.xlu0 %v414, 19
  %v675 = vpop.permute.xlu0 %674
  %676 = vrot.lane.b32.xlu0 %v415, 19
  %v677 = vpop.permute.xlu0 %676
  %678 = vrot.lane.b32.xlu0 %v416, 19
  %v679 = vpop.permute.xlu0 %678
  %680 = vrot.lane.b32.xlu0 %v417, 19
  %v681 = vpop.permute.xlu0 %680
  %vm682 = vcmask 154624
  %v683 = vsel %vm682, %v671, %v673
  %v684 = vsel %vm682, %v673, %v675
  %v685 = vsel %vm682, %v675, %v677
  %v686 = vsel %vm682, %v677, %v679
  %v687 = vsel %vm682, %v679, %v681
  %v688 = vsel %vm682, %v681, %v668
  %v696 = vsel %vm682, %v668, %v671
  %697 = vrot.lane.b32.xlu0 %v418, 18
  %v698 = vpop.permute.xlu0 %697
  %700 = vrot.lane.b32.xlu0 %v412, 18
  %v701 = vpop.permute.xlu0 %700
  %702 = vrot.lane.b32.xlu0 %v413, 18
  %v703 = vpop.permute.xlu0 %702
  %704 = vrot.lane.b32.xlu0 %v414, 18
  %v705 = vpop.permute.xlu0 %704
  %706 = vrot.lane.b32.xlu0 %v415, 18
  %v707 = vpop.permute.xlu0 %706
  %708 = vrot.lane.b32.xlu0 %v416, 18
  %v709 = vpop.permute.xlu0 %708
  %710 = vrot.lane.b32.xlu0 %v417, 18
  %v711 = vpop.permute.xlu0 %710
  %vm712 = vcmask 146432
  %v713 = vsel %vm712, %v701, %v703
  %v714 = vsel %vm712, %v703, %v705
  %v715 = vsel %vm712, %v705, %v707
  %v716 = vsel %vm712, %v707, %v709
  %v717 = vsel %vm712, %v709, %v711
  %v718 = vsel %vm712, %v711, %v698
  %v726 = vsel %vm712, %v698, %v701
  %727 = vrot.lane.b32.xlu0 %v418, 2
  %v728 = vpop.permute.xlu0 %727
  %730 = vrot.lane.b32.xlu0 %v412, 2
  %v731 = vpop.permute.xlu0 %730
  %732 = vrot.lane.b32.xlu0 %v413, 2
  %v733 = vpop.permute.xlu0 %732
  %734 = vrot.lane.b32.xlu0 %v414, 2
  %v735 = vpop.permute.xlu0 %734
  %736 = vrot.lane.b32.xlu0 %v415, 2
  %v737 = vpop.permute.xlu0 %736
  %738 = vrot.lane.b32.xlu0 %v416, 2
  %v739 = vpop.permute.xlu0 %738
  %740 = vrot.lane.b32.xlu0 %v417, 2
  %v741 = vpop.permute.xlu0 %740
  %vm742 = vcmask 15360
  %v743 = vsel %vm742, %v731, %v733
  %v744 = vsel %vm742, %v733, %v735
  %v745 = vsel %vm742, %v735, %v737
  %v746 = vsel %vm742, %v737, %v739
  %v747 = vsel %vm742, %v739, %v741
  %v748 = vsel %vm742, %v741, %v728
  %v756 = vsel %vm742, %v728, %v731
  %757 = vrot.lane.b32.xlu0 %v418, 1
  %v758 = vpop.permute.xlu0 %757
  %760 = vrot.lane.b32.xlu0 %v412, 1
  %v761 = vpop.permute.xlu0 %760
  %762 = vrot.lane.b32.xlu0 %v413, 1
  %v763 = vpop.permute.xlu0 %762
  %764 = vrot.lane.b32.xlu0 %v414, 1
  %v765 = vpop.permute.xlu0 %764
  %766 = vrot.lane.b32.xlu0 %v415, 1
  %v767 = vpop.permute.xlu0 %766
  %768 = vrot.lane.b32.xlu0 %v416, 1
  %v769 = vpop.permute.xlu0 %768
  %770 = vrot.lane.b32.xlu0 %v417, 1
  %v771 = vpop.permute.xlu0 %770
  %vm772 = vcmask 7168
  %v773 = vsel %vm772, %v761, %v763
  %v774 = vsel %vm772, %v763, %v765
  %v775 = vsel %vm772, %v765, %v767
  %v776 = vsel %vm772, %v767, %v769
  %v777 = vsel %vm772, %v769, %v771
  %v778 = vsel %vm772, %v771, %v758
  %v786 = vsel %vm772, %v758, %v761
  %787 = vrot.lane.b32.xlu0 %v412, 127
  %v788 = vpop.permute.xlu0 %787
  %789 = vrot.lane.b32.xlu0 %v413, 127
  %v790 = vpop.permute.xlu0 %789
  %791 = vrot.lane.b32.xlu0 %v414, 127
  %v792 = vpop.permute.xlu0 %791
  %793 = vrot.lane.b32.xlu0 %v415, 127
  %v794 = vpop.permute.xlu0 %793
  %795 = vrot.lane.b32.xlu0 %v416, 127
  %v796 = vpop.permute.xlu0 %795
  %797 = vrot.lane.b32.xlu0 %v417, 127
  %v798 = vpop.permute.xlu0 %797
  %799 = vrot.lane.b32.xlu0 %v418, 127
  %v800 = vpop.permute.xlu0 %799
  %vm801 = vcmask 1039360
  %v802 = vsel %vm801, %v788, %v790
  %v803 = vsel %vm801, %v790, %v792
  %v804 = vsel %vm801, %v792, %v794
  %v805 = vsel %vm801, %v794, %v796
  %v806 = vsel %vm801, %v796, %v798
  %v807 = vsel %vm801, %v798, %v800
  %v816 = vsel %vm801, %v800, %v788
  %817 = vrot.lane.b32.xlu0 %v412, 126
  %v818 = vpop.permute.xlu0 %817
  %819 = vrot.lane.b32.xlu0 %v413, 126
  %v820 = vpop.permute.xlu0 %819
  %821 = vrot.lane.b32.xlu0 %v414, 126
  %v822 = vpop.permute.xlu0 %821
  %823 = vrot.lane.b32.xlu0 %v415, 126
  %v824 = vpop.permute.xlu0 %823
  %825 = vrot.lane.b32.xlu0 %v416, 126
  %v826 = vpop.permute.xlu0 %825
  %827 = vrot.lane.b32.xlu0 %v417, 126
  %v828 = vpop.permute.xlu0 %827
  %829 = vrot.lane.b32.xlu0 %v418, 126
  %v830 = vpop.permute.xlu0 %829
  %vm831 = vcmask 1031168
  %v832 = vsel %vm831, %v818, %v820
  %v833 = vsel %vm831, %v820, %v822
  %v834 = vsel %vm831, %v822, %v824
  %v835 = vsel %vm831, %v824, %v826
  %v836 = vsel %vm831, %v826, %v828
  %v837 = vsel %vm831, %v828, %v830
  %v846 = vsel %vm831, %v830, %v818
  %847 = vrot.lane.b32.xlu0 %v412, 110
  %v848 = vpop.permute.xlu0 %847
  %849 = vrot.lane.b32.xlu0 %v413, 110
  %v850 = vpop.permute.xlu0 %849
  %851 = vrot.lane.b32.xlu0 %v414, 110
  %v852 = vpop.permute.xlu0 %851
  %853 = vrot.lane.b32.xlu0 %v415, 110
  %v854 = vpop.permute.xlu0 %853
  %855 = vrot.lane.b32.xlu0 %v416, 110
  %v856 = vpop.permute.xlu0 %855
  %857 = vrot.lane.b32.xlu0 %v417, 110
  %v858 = vpop.permute.xlu0 %857
  %859 = vrot.lane.b32.xlu0 %v418, 110
  %v860 = vpop.permute.xlu0 %859
  %vm861 = vcmask 900096
  %v862 = vsel %vm861, %v848, %v850
  %v863 = vsel %vm861, %v850, %v852
  %v864 = vsel %vm861, %v852, %v854
  %v865 = vsel %vm861, %v854, %v856
  %v866 = vsel %vm861, %v856, %v858
  %v867 = vsel %vm861, %v858, %v860
  %v876 = vsel %vm861, %v860, %v848
  %877 = vrot.lane.b32.xlu0 %v412, 109
  %v878 = vpop.permute.xlu0 %877
  %879 = vrot.lane.b32.xlu0 %v413, 109
  %v880 = vpop.permute.xlu0 %879
  %881 = vrot.lane.b32.xlu0 %v414, 109
  %v882 = vpop.permute.xlu0 %881
  %883 = vrot.lane.b32.xlu0 %v415, 109
  %v884 = vpop.permute.xlu0 %883
  %885 = vrot.lane.b32.xlu0 %v416, 109
  %v886 = vpop.permute.xlu0 %885
  %887 = vrot.lane.b32.xlu0 %v417, 109
  %v888 = vpop.permute.xlu0 %887
  %889 = vrot.lane.b32.xlu0 %v418, 109
  %v890 = vpop.permute.xlu0 %889
  %vm891 = vcmask 891904
  %v892 = vsel %vm891, %v878, %v880
  %v893 = vsel %vm891, %v880, %v882
  %v894 = vsel %vm891, %v882, %v884
  %v895 = vsel %vm891, %v884, %v886
  %v896 = vsel %vm891, %v886, %v888
  %v897 = vsel %vm891, %v888, %v890
  %v906 = vsel %vm891, %v890, %v878
  %907 = vrot.lane.b32.xlu0 %v412, 108
  %v908 = vpop.permute.xlu0 %907
  %909 = vrot.lane.b32.xlu0 %v413, 108
  %v910 = vpop.permute.xlu0 %909
  %911 = vrot.lane.b32.xlu0 %v414, 108
  %v912 = vpop.permute.xlu0 %911
  %913 = vrot.lane.b32.xlu0 %v415, 108
  %v914 = vpop.permute.xlu0 %913
  %915 = vrot.lane.b32.xlu0 %v416, 108
  %v916 = vpop.permute.xlu0 %915
  %917 = vrot.lane.b32.xlu0 %v417, 108
  %v918 = vpop.permute.xlu0 %917
  %919 = vrot.lane.b32.xlu0 %v418, 108
  %v920 = vpop.permute.xlu0 %919
  %vm921 = vcmask 883712
  %v922 = vsel %vm921, %v908, %v910
  %v923 = vsel %vm921, %v910, %v912
  %v924 = vsel %vm921, %v912, %v914
  %v925 = vsel %vm921, %v914, %v916
  %v926 = vsel %vm921, %v916, %v918
  %v927 = vsel %vm921, %v918, %v920
  %v936 = vsel %vm921, %v920, %v908
  %937 = vrot.lane.b32.xlu0 %v412, 107
  %v938 = vpop.permute.xlu0 %937
  %939 = vrot.lane.b32.xlu0 %v413, 107
  %v940 = vpop.permute.xlu0 %939
  %941 = vrot.lane.b32.xlu0 %v414, 107
  %v942 = vpop.permute.xlu0 %941
  %943 = vrot.lane.b32.xlu0 %v415, 107
  %v944 = vpop.permute.xlu0 %943
  %945 = vrot.lane.b32.xlu0 %v416, 107
  %v946 = vpop.permute.xlu0 %945
  %947 = vrot.lane.b32.xlu0 %v417, 107
  %v948 = vpop.permute.xlu0 %947
  %949 = vrot.lane.b32.xlu0 %v418, 107
  %v950 = vpop.permute.xlu0 %949
  %vm951 = vcmask 875520
  %v952 = vsel %vm951, %v938, %v940
  %v953 = vsel %vm951, %v940, %v942
  %v954 = vsel %vm951, %v942, %v944
  %v955 = vsel %vm951, %v944, %v946
  %v956 = vsel %vm951, %v946, %v948
  %v957 = vsel %vm951, %v948, %v950
  %v966 = vsel %vm951, %v950, %v938
  %967 = vrot.lane.b32.xlu0 %v412, 106
  %v968 = vpop.permute.xlu0 %967
  %969 = vrot.lane.b32.xlu0 %v413, 106
  %v970 = vpop.permute.xlu0 %969
  %971 = vrot.lane.b32.xlu0 %v414, 106
  %v972 = vpop.permute.xlu0 %971
  %973 = vrot.lane.b32.xlu0 %v415, 106
  %v974 = vpop.permute.xlu0 %973
  %975 = vrot.lane.b32.xlu0 %v416, 106
  %v976 = vpop.permute.xlu0 %975
  %977 = vrot.lane.b32.xlu0 %v417, 106
  %v978 = vpop.permute.xlu0 %977
  %979 = vrot.lane.b32.xlu0 %v418, 106
  %v980 = vpop.permute.xlu0 %979
  %vm981 = vcmask 867328
  %v982 = vsel %vm981, %v968, %v970
  %v983 = vsel %vm981, %v970, %v972
  %v984 = vsel %vm981, %v972, %v974
  %v985 = vsel %vm981, %v974, %v976
  %v986 = vsel %vm981, %v976, %v978
  %v987 = vsel %vm981, %v978, %v980
  %v996 = vsel %vm981, %v980, %v968
  %997 = vrot.lane.b32.xlu0 %v412, 90
  %v998 = vpop.permute.xlu0 %997
  %999 = vrot.lane.b32.xlu0 %v413, 90
  %v1000 = vpop.permute.xlu0 %999
  %1001 = vrot.lane.b32.xlu0 %v414, 90
  %v1002 = vpop.permute.xlu0 %1001
  %1003 = vrot.lane.b32.xlu0 %v415, 90
  %v1004 = vpop.permute.xlu0 %1003
  %1005 = vrot.lane.b32.xlu0 %v416, 90
  %v1006 = vpop.permute.xlu0 %1005
  %1007 = vrot.lane.b32.xlu0 %v417, 90
  %v1008 = vpop.permute.xlu0 %1007
  %1009 = vrot.lane.b32.xlu0 %v418, 90
  %v1010 = vpop.permute.xlu0 %1009
  %vm1011 = vcmask 736256
  %v1012 = vsel %vm1011, %v998, %v1000
  %v1013 = vsel %vm1011, %v1000, %v1002
  %v1014 = vsel %vm1011, %v1002, %v1004
  %v1015 = vsel %vm1011, %v1004, %v1006
  %v1016 = vsel %vm1011, %v1006, %v1008
  %v1017 = vsel %vm1011, %v1008, %v1010
  %v1026 = vsel %vm1011, %v1010, %v998
  %1027 = vrot.lane.b32.xlu0 %v412, 89
  %v1028 = vpop.permute.xlu0 %1027
  %1029 = vrot.lane.b32.xlu0 %v413, 89
  %v1030 = vpop.permute.xlu0 %1029
  %1031 = vrot.lane.b32.xlu0 %v414, 89
  %v1032 = vpop.permute.xlu0 %1031
  %1033 = vrot.lane.b32.xlu0 %v415, 89
  %v1034 = vpop.permute.xlu0 %1033
  %1035 = vrot.lane.b32.xlu0 %v416, 89
  %v1036 = vpop.permute.xlu0 %1035
  %1037 = vrot.lane.b32.xlu0 %v417, 89
  %v1038 = vpop.permute.xlu0 %1037
  %1039 = vrot.lane.b32.xlu0 %v418, 89
  %v1040 = vpop.permute.xlu0 %1039
  %vm1041 = vcmask 728064
  %v1042 = vsel %vm1041, %v1028, %v1030
  %v1043 = vsel %vm1041, %v1030, %v1032
  %v1044 = vsel %vm1041, %v1032, %v1034
  %v1045 = vsel %vm1041, %v1034, %v1036
  %v1046 = vsel %vm1041, %v1036, %v1038
  %v1047 = vsel %vm1041, %v1038, %v1040
  %v1056 = vsel %vm1041, %v1040, %v1028
  %1057 = vrot.lane.b32.xlu0 %v412, 88
  %v1058 = vpop.permute.xlu0 %1057
  %1059 = vrot.lane.b32.xlu0 %v413, 88
  %v1060 = vpop.permute.xlu0 %1059
  %1061 = vrot.lane.b32.xlu0 %v414, 88
  %v1062 = vpop.permute.xlu0 %1061
  %1063 = vrot.lane.b32.xlu0 %v415, 88
  %v1064 = vpop.permute.xlu0 %1063
  %1065 = vrot.lane.b32.xlu0 %v416, 88
  %v1066 = vpop.permute.xlu0 %1065
  %1067 = vrot.lane.b32.xlu0 %v417, 88
  %v1068 = vpop.permute.xlu0 %1067
  %1069 = vrot.lane.b32.xlu0 %v418, 88
  %v1070 = vpop.permute.xlu0 %1069
  %vm1071 = vcmask 719872
  %v1072 = vsel %vm1071, %v1058, %v1060
  %v1073 = vsel %vm1071, %v1060, %v1062
  %v1074 = vsel %vm1071, %v1062, %v1064
  %v1075 = vsel %vm1071, %v1064, %v1066
  %v1076 = vsel %vm1071, %v1066, %v1068
  %v1077 = vsel %vm1071, %v1068, %v1070
  %v1086 = vsel %vm1071, %v1070, %v1058
  %1087 = vrot.lane.b32.xlu0 %v412, 87
  %v1088 = vpop.permute.xlu0 %1087
  %1089 = vrot.lane.b32.xlu0 %v413, 87
  %v1090 = vpop.permute.xlu0 %1089
  %1091 = vrot.lane.b32.xlu0 %v414, 87
  %v1092 = vpop.permute.xlu0 %1091
  %1093 = vrot.lane.b32.xlu0 %v415, 87
  %v1094 = vpop.permute.xlu0 %1093
  %1095 = vrot.lane.b32.xlu0 %v416, 87
  %v1096 = vpop.permute.xlu0 %1095
  %1097 = vrot.lane.b32.xlu0 %v417, 87
  %v1098 = vpop.permute.xlu0 %1097
  %1099 = vrot.lane.b32.xlu0 %v418, 87
  %v1100 = vpop.permute.xlu0 %1099
  %vm1101 = vcmask 711680
  %v1102 = vsel %vm1101, %v1088, %v1090
  %v1103 = vsel %vm1101, %v1090, %v1092
  %v1104 = vsel %vm1101, %v1092, %v1094
  %v1105 = vsel %vm1101, %v1094, %v1096
  %v1106 = vsel %vm1101, %v1096, %v1098
  %v1107 = vsel %vm1101, %v1098, %v1100
  %v1116 = vsel %vm1101, %v1100, %v1088
  %1117 = vrot.lane.b32.xlu0 %v412, 86
  %v1118 = vpop.permute.xlu0 %1117
  %1119 = vrot.lane.b32.xlu0 %v413, 86
  %v1120 = vpop.permute.xlu0 %1119
  %1121 = vrot.lane.b32.xlu0 %v414, 86
  %v1122 = vpop.permute.xlu0 %1121
  %1123 = vrot.lane.b32.xlu0 %v415, 86
  %v1124 = vpop.permute.xlu0 %1123
  %1125 = vrot.lane.b32.xlu0 %v416, 86
  %v1126 = vpop.permute.xlu0 %1125
  %1127 = vrot.lane.b32.xlu0 %v417, 86
  %v1128 = vpop.permute.xlu0 %1127
  %1129 = vrot.lane.b32.xlu0 %v418, 86
  %v1130 = vpop.permute.xlu0 %1129
  %vm1131 = vcmask 703488
  %v1132 = vsel %vm1131, %v1118, %v1120
  %v1133 = vsel %vm1131, %v1120, %v1122
  %v1134 = vsel %vm1131, %v1122, %v1124
  %v1135 = vsel %vm1131, %v1124, %v1126
  %v1136 = vsel %vm1131, %v1126, %v1128
  %v1137 = vsel %vm1131, %v1128, %v1130
  %v1146 = vsel %vm1131, %v1130, %v1118
  %v1147 = vpack.c.bf16 %v486, %v456
  %v1148 = vpack.c.bf16 %v473, %v443
  %v1149 = vpack.c.bf16 %v474, %v444
  %v1150 = vpack.c.bf16 %v475, %v445
  %v1151 = vpack.c.bf16 %v476, %v446
  %v1152 = vpack.c.bf16 %v477, %v447
  %v1153 = vpack.c.bf16 %v478, %v448
  %v1154 = vpack.c.bf16 %v546, %v516
  %v1155 = vpack.c.bf16 %v533, %v503
  %v1156 = vpack.c.bf16 %v534, %v504
  %v1157 = vpack.c.bf16 %v535, %v505
  %v1158 = vpack.c.bf16 %v536, %v506
  %v1159 = vpack.c.bf16 %v537, %v507
  %v1160 = vpack.c.bf16 %v538, %v508
  %v1161 = vpack.c.bf16 %v606, %v576
  %v1162 = vpack.c.bf16 %v593, %v563
  %v1163 = vpack.c.bf16 %v594, %v564
  %v1164 = vpack.c.bf16 %v595, %v565
  %v1165 = vpack.c.bf16 %v596, %v566
  %v1166 = vpack.c.bf16 %v597, %v567
  %v1167 = vpack.c.bf16 %v598, %v568
  %v1168 = vpack.c.bf16 %v666, %v636
  %v1169 = vpack.c.bf16 %v653, %v623
  %v1170 = vpack.c.bf16 %v654, %v624
  %v1171 = vpack.c.bf16 %v655, %v625
  %v1172 = vpack.c.bf16 %v656, %v626
  %v1173 = vpack.c.bf16 %v657, %v627
  %v1174 = vpack.c.bf16 %v658, %v628
  %v1175 = vpack.c.bf16 %v726, %v696
  %v1176 = vpack.c.bf16 %v713, %v683
  %v1177 = vpack.c.bf16 %v714, %v684
  %v1178 = vpack.c.bf16 %v715, %v685
  %v1179 = vpack.c.bf16 %v716, %v686
  %v1180 = vpack.c.bf16 %v717, %v687
  %v1181 = vpack.c.bf16 %v718, %v688
  %v1182 = vpack.c.bf16 %v786, %v756
  %v1183 = vpack.c.bf16 %v773, %v743
  %v1184 = vpack.c.bf16 %v774, %v744
  %v1185 = vpack.c.bf16 %v775, %v745
  %v1186 = vpack.c.bf16 %v776, %v746
  %v1187 = vpack.c.bf16 %v777, %v747
  %v1188 = vpack.c.bf16 %v778, %v748
  %v1189 = vpack.c.bf16 %v802, %v412
  %v1190 = vpack.c.bf16 %v803, %v413
  %v1191 = vpack.c.bf16 %v804, %v414
  %v1192 = vpack.c.bf16 %v805, %v415
  %v1193 = vpack.c.bf16 %v806, %v416
  %v1194 = vpack.c.bf16 %v807, %v417
  %v1195 = vpack.c.bf16 %v816, %v418
  %v1196 = vpack.c.bf16 %v862, %v832
  %v1197 = vpack.c.bf16 %v863, %v833
  %v1198 = vpack.c.bf16 %v864, %v834
  %v1199 = vpack.c.bf16 %v865, %v835
  %v1200 = vpack.c.bf16 %v866, %v836
  %v1201 = vpack.c.bf16 %v867, %v837
  %v1202 = vpack.c.bf16 %v876, %v846
  %v1203 = vpack.c.bf16 %v922, %v892
  %v1204 = vpack.c.bf16 %v923, %v893
  %v1205 = vpack.c.bf16 %v924, %v894
  %v1206 = vpack.c.bf16 %v925, %v895
  %v1207 = vpack.c.bf16 %v926, %v896
  %v1208 = vpack.c.bf16 %v927, %v897
  %v1209 = vpack.c.bf16 %v936, %v906
  %v1210 = vpack.c.bf16 %v982, %v952
  %v1211 = vpack.c.bf16 %v983, %v953
  %v1212 = vpack.c.bf16 %v984, %v954
  %v1213 = vpack.c.bf16 %v985, %v955
  %v1214 = vpack.c.bf16 %v986, %v956
  %v1215 = vpack.c.bf16 %v987, %v957
  %v1216 = vpack.c.bf16 %v996, %v966
  %v1217 = vpack.c.bf16 %v1042, %v1012
  %v1218 = vpack.c.bf16 %v1043, %v1013
  %v1219 = vpack.c.bf16 %v1044, %v1014
  %v1220 = vpack.c.bf16 %v1045, %v1015
  %v1221 = vpack.c.bf16 %v1046, %v1016
  %v1222 = vpack.c.bf16 %v1047, %v1017
  %v1223 = vpack.c.bf16 %v1056, %v1026
  %v1224 = vpack.c.bf16 %v1102, %v1072
  %v1225 = vpack.c.bf16 %v1103, %v1073
  %v1226 = vpack.c.bf16 %v1104, %v1074
  %v1227 = vpack.c.bf16 %v1105, %v1075
  %v1228 = vpack.c.bf16 %v1106, %v1076
  %v1229 = vpack.c.bf16 %v1107, %v1077
  %v1230 = vpack.c.bf16 %v1116, %v1086
  %v1231 = vpack.c.bf16 %v1132, %v1132
  %v1232 = vpack.c.bf16 %v1133, %v1133
  %v1233 = vpack.c.bf16 %v1134, %v1134
  %v1234 = vpack.c.bf16 %v1135, %v1135
  %v1235 = vpack.c.bf16 %v1136, %v1136
  %v1236 = vpack.c.bf16 %v1137, %v1137
  %v1237 = vpack.c.bf16 %v1146, %v1146
  %v1240 = vunpack.c.l.s4 1983009808
  %v1241 = vunpack.c.0.s8 %v1240
  %v1242 = vlaneseq
  %v1243 = vshrl.u32 %v1242, 7
  %v1244 = vsub.s32 %v1241, %v1243
  %v1245 = vrot.slane %v419, %v1244
  %v1246 = vcombine.high %v1245, %v1245
  %vm1248 = vcmask 588800
  %v1250 = vsel %vm1248, %v1246, 0
  %v1253 = vsel %vm59, %v1231, 0
  %v1256 = vsel %vm59, %v1232, 0
  %v1259 = vsel %vm59, %v1233, 0
  %v1262 = vsel %vm59, %v1234, 0
  %v1265 = vsel %vm59, %v1235, 0
  %v1268 = vsel %vm59, %v1236, 0
  %v1271 = vsel %vm59, %v1237, 0
  %1273 = vmatprep.subr.bf16.mxu0 %v1148
  %1274 = vmatpush1.bf16.msra.mxu0 %v1147
  %1275 = vmatprep.subr.bf16.mxu0 %v1155
  %1276 = vmatpush1.bf16.msra.mxu0 %v1154
  %1277 = vmatprep.subr.bf16.mxu0 %v1162
  %1278 = vmatpush1.bf16.msra.mxu0 %v1161
  %1279 = vmatprep.subr.bf16.mxu0 %v1169
  %1280 = vmatpush1.bf16.msra.mxu0 %v1168
  %1281 = vmatprep.subr.bf16.mxu0 %v1176
  %1282 = vmatpush1.bf16.msra.mxu0 %v1175
  %1283 = vmatprep.subr.bf16.mxu0 %v1183
  %1284 = vmatpush1.bf16.msra.mxu0 %v1182
  %1285 = vmatprep.subr.bf16.mxu0 %v1190
  %1286 = vmatpush1.bf16.msra.mxu0 %v1189
  %1287 = vmatprep.subr.bf16.mxu0 %v1197
  %1288 = vmatpush1.bf16.msra.mxu0 %v1196
  %1289 = vmatprep.subr.bf16.mxu0 %v1204
  %1290 = vmatpush1.bf16.msra.mxu0 %v1203
  %1291 = vmatprep.subr.bf16.mxu0 %v1211
  %1292 = vmatpush1.bf16.msra.mxu0 %v1210
  %1293 = vmatprep.subr.bf16.mxu0 %v1218
  %1294 = vmatpush1.bf16.msra.mxu0 %v1217
  %1295 = vmatprep.subr.bf16.mxu0 %v1225
  %1296 = vmatpush1.bf16.msra.mxu0 %v1224
  %1297 = vmatprep.subr.bf16.mxu0 %v1256
  %1298 = vmatpush1.bf16.msra.mxu0 %v1253
  %1299 = vmatprep.subr.bf16.mxu0 0
  %1300 = vmatpush1.bf16.msra.mxu0 0
  %1301 = vmatprep.subr.bf16.mxu0 0
  %1302 = vmatpush1.bf16.msra.mxu0 0
  %1303 = vmatprep.subr.bf16.mxu0 0
  %1304 = vmatpush1.bf16.msra.mxu0 0
  %1305 = vmatprep.mubr.bf16.mxu0 %v1250
  %1306 = vmatmul.mubr.bf16.gmra.mrb[0].mxu0 %v1245
  %v1307 = vpop.f32.mrb[0].mxu0
  %v1308 = vadd.f32 0.0, %v1307
  %v1309 = vpop.f32.mrb[0].mxu0
  %v1310 = vadd.f32 0.0, %v1309
  %v1311 = vpop.f32.mrb[0].mxu0
  %v1312 = vpop.f32.mrb[0].mxu0
  %1313 = vdwg.mxu0
  %1314 = vmatprep.subr.bf16.mxu0 %v1150
  %1315 = vmatpush1.bf16.msra.mxu0 %v1149
  %1316 = vmatprep.subr.bf16.mxu0 %v1157
  %1317 = vmatpush1.bf16.msra.mxu0 %v1156
  %1318 = vmatprep.subr.bf16.mxu0 %v1164
  %1319 = vmatpush1.bf16.msra.mxu0 %v1163
  %1320 = vmatprep.subr.bf16.mxu0 %v1171
  %1321 = vmatpush1.bf16.msra.mxu0 %v1170
  %1322 = vmatprep.subr.bf16.mxu0 %v1178
  %1323 = vmatpush1.bf16.msra.mxu0 %v1177
  %1324 = vmatprep.subr.bf16.mxu0 %v1185
  %1325 = vmatpush1.bf16.msra.mxu0 %v1184
  %1326 = vmatprep.subr.bf16.mxu0 %v1192
  %1327 = vmatpush1.bf16.msra.mxu0 %v1191
  %1328 = vmatprep.subr.bf16.mxu0 %v1199
  %1329 = vmatpush1.bf16.msra.mxu0 %v1198
  %1330 = vmatprep.subr.bf16.mxu0 %v1206
  %1331 = vmatpush1.bf16.msra.mxu0 %v1205
  %1332 = vmatprep.subr.bf16.mxu0 %v1213
  %1333 = vmatpush1.bf16.msra.mxu0 %v1212
  %1334 = vmatprep.subr.bf16.mxu0 %v1220
  %1335 = vmatpush1.bf16.msra.mxu0 %v1219
  %1336 = vmatprep.subr.bf16.mxu0 %v1227
  %1337 = vmatpush1.bf16.msra.mxu0 %v1226
  %1338 = vmatprep.subr.bf16.mxu0 %v1262
  %1339 = vmatpush1.bf16.msra.mxu0 %v1259
  %1340 = vmatprep.subr.bf16.mxu0 0
  %1341 = vmatpush1.bf16.msra.mxu0 0
  %1342 = vmatprep.subr.bf16.mxu0 0
  %1343 = vmatpush1.bf16.msra.mxu0 0
  %1344 = vmatprep.subr.bf16.mxu0 0
  %1345 = vmatpush1.bf16.msra.mxu0 0
  %1346 = vmatprep.mubr.bf16.mxu0 %v1250
  %1347 = vmatmul.mubr.bf16.gmra.mrb[0].mxu0 %v1245
  %v1348 = vpop.f32.mrb[0].mxu0
  %v1349 = vadd.f32 0.0, %v1348
  %v1350 = vpop.f32.mrb[0].mxu0
  %v1351 = vadd.f32 0.0, %v1350
  %v1352 = vpop.f32.mrb[0].mxu0
  %v1353 = vpop.f32.mrb[0].mxu0
  %1354 = vdwg.mxu0
  %1355 = vmatprep.subr.bf16.mxu0 %v1152
  %1356 = vmatpush1.bf16.msra.mxu0 %v1151
  %1357 = vmatprep.subr.bf16.mxu0 %v1159
  %1358 = vmatpush1.bf16.msra.mxu0 %v1158
  %1359 = vmatprep.subr.bf16.mxu0 %v1166
  %1360 = vmatpush1.bf16.msra.mxu0 %v1165
  %1361 = vmatprep.subr.bf16.mxu0 %v1173
  %1362 = vmatpush1.bf16.msra.mxu0 %v1172
  %1363 = vmatprep.subr.bf16.mxu0 %v1180
  %1364 = vmatpush1.bf16.msra.mxu0 %v1179
  %1365 = vmatprep.subr.bf16.mxu0 %v1187
  %1366 = vmatpush1.bf16.msra.mxu0 %v1186
  %1367 = vmatprep.subr.bf16.mxu0 %v1194
  %1368 = vmatpush1.bf16.msra.mxu0 %v1193
  %1369 = vmatprep.subr.bf16.mxu0 %v1201
  %1370 = vmatpush1.bf16.msra.mxu0 %v1200
  %1371 = vmatprep.subr.bf16.mxu0 %v1208
  %1372 = vmatpush1.bf16.msra.mxu0 %v1207
  %1373 = vmatprep.subr.bf16.mxu0 %v1215
  %1374 = vmatpush1.bf16.msra.mxu0 %v1214
  %1375 = vmatprep.subr.bf16.mxu0 %v1222
  %1376 = vmatpush1.bf16.msra.mxu0 %v1221
  %1377 = vmatprep.subr.bf16.mxu0 %v1229
  %1378 = vmatpush1.bf16.msra.mxu0 %v1228
  %1379 = vmatprep.subr.bf16.mxu0 %v1268
  %1380 = vmatpush1.bf16.msra.mxu0 %v1265
  %1381 = vmatprep.subr.bf16.mxu0 0
  %1382 = vmatpush1.bf16.msra.mxu0 0
  %1383 = vmatprep.subr.bf16.mxu0 0
  %1384 = vmatpush1.bf16.msra.mxu0 0
  %1385 = vmatprep.subr.bf16.mxu0 0
  %1386 = vmatpush1.bf16.msra.mxu0 0
  %1387 = vmatprep.mubr.bf16.mxu0 %v1250
  %1388 = vmatmul.mubr.bf16.gmra.mrb[0].mxu0 %v1245
  %v1389 = vpop.f32.mrb[0].mxu0
  %v1390 = vadd.f32 0.0, %v1389
  %v1391 = vpop.f32.mrb[0].mxu0
  %v1392 = vadd.f32 0.0, %v1391
  %v1393 = vpop.f32.mrb[0].mxu0
  %v1394 = vpop.f32.mrb[0].mxu0
  %1395 = vdwg.mxu0
  %1396 = vmatprep.subr.bf16.mxu0 0
  %1397 = vmatpush1.bf16.msra.mxu0 %v1153
  %1398 = vmatprep.subr.bf16.mxu0 0
  %1399 = vmatpush1.bf16.msra.mxu0 %v1160
  %1400 = vmatprep.subr.bf16.mxu0 0
  %1401 = vmatpush1.bf16.msra.mxu0 %v1167
  %1402 = vmatprep.subr.bf16.mxu0 0
  %1403 = vmatpush1.bf16.msra.mxu0 %v1174
  %1404 = vmatprep.subr.bf16.mxu0 0
  %1405 = vmatpush1.bf16.msra.mxu0 %v1181
  %1406 = vmatprep.subr.bf16.mxu0 0
  %1407 = vmatpush1.bf16.msra.mxu0 %v1188
  %1408 = vmatprep.subr.bf16.mxu0 0
  %1409 = vmatpush1.bf16.msra.mxu0 %v1195
  %1410 = vmatprep.subr.bf16.mxu0 0
  %1411 = vmatpush1.bf16.msra.mxu0 %v1202
  %1412 = vmatprep.subr.bf16.mxu0 0
  %1413 = vmatpush1.bf16.msra.mxu0 %v1209
  %1414 = vmatprep.subr.bf16.mxu0 0
  %1415 = vmatpush1.bf16.msra.mxu0 %v1216
  %1416 = vmatprep.subr.bf16.mxu0 0
  %1417 = vmatpush1.bf16.msra.mxu0 %v1223
  %1418 = vmatprep.subr.bf16.mxu0 0
  %1419 = vmatpush1.bf16.msra.mxu0 %v1230
  %1420 = vmatprep.subr.bf16.mxu0 0
  %1421 = vmatpush1.bf16.msra.mxu0 %v1271
  %1422 = vmatprep.subr.bf16.mxu0 0
  %1423 = vmatpush1.bf16.msra.mxu0 0
  %1424 = vmatprep.subr.bf16.mxu0 0
  %1425 = vmatpush1.bf16.msra.mxu0 0
  %1426 = vmatprep.subr.bf16.mxu0 0
  %1427 = vmatpush1.bf16.msra.mxu0 0
  %1428 = vmatprep.mubr.bf16.mxu0 %v1250
  %1429 = vmatmul.mubr.bf16.gmra.mrb[0].mxu0 %v1245
  %v1430 = vpop.f32.mrb[0].mxu0
  %v1431 = vadd.f32 0.0, %v1430
  %v1432 = vpop.f32.mrb[0].mxu0
  %v1433 = vpop.f32.mrb[0].mxu0
  %v1434 = vpop.f32.mrb[0].mxu0
  %1435 = vdwg.mxu0
  %v1443 = vrot.slane %v1308, 4
  %v1444 = vrot.slane %v1310, 4
  %v1445 = vrot.slane %v1349, 4
  %v1446 = vrot.slane %v1351, 4
  %v1447 = vrot.slane %v1390, 4
  %v1448 = vrot.slane %v1392, 4
  %v1449 = vrot.slane %v1431, 4
  %v1457 = vsel %vm59, %v120, %v1443
  %v1458 = vsel %vm59, %v122, %v1444
  %v1459 = vsel %vm59, %v163, %v1445
  %v1460 = vsel %vm59, %v165, %v1446
  %v1461 = vsel %vm59, %v206, %v1447
  %v1462 = vsel %vm59, %v208, %v1448
  %v1463 = vsel %vm59, %v248, %v1449
  %1465 = vset.pattern.permute.xlu0 0
  %1466 = vperm.xlu0 %1465, %v35
  %v1467 = vpop.permute.xlu0 %1466
  %v1469 = vadd.f32 %v1457, %v1467
  %v1470 = vadd.f32 %v1458, %v1467
  %v1471 = vadd.f32 %v1459, %v1467
  %v1472 = vadd.f32 %v1460, %v1467
  %v1473 = vadd.f32 %v1461, %v1467
  %v1474 = vadd.f32 %v1462, %v1467
  %v1475 = vadd.f32 %v1463, %v1467
  %v1476 = vmax.f32 %v1469, 0.0
  %v1477 = vmax.f32 %v1470, 0.0
  %v1478 = vmax.f32 %v1471, 0.0
  %v1479 = vmax.f32 %v1472, 0.0
  %v1480 = vmax.f32 %v1473, 0.0
  %v1481 = vmax.f32 %v1474, 0.0
  %v1482 = vmax.f32 %v1475, 0.0
  %v1483 = vmul.f32 %v1476, %v310
  %v1484 = vmul.f32 %v1477, %v314
  %v1485 = vmul.f32 %v1478, %v318
  %v1486 = vmul.f32 %v1479, %v322
  %v1487 = vmul.f32 %v1480, %v326
  %v1488 = vmul.f32 %v1481, %v330
  %v1489 = vmul.f32 %v1482, %v334
  %v1490 = vadd.f32 %v1483, %v1484
  %v1491 = vadd.f32 %v1490, %v1485
  %v1492 = vadd.f32 %v1491, %v1486
  %v1493 = vadd.f32 %v1492, %v1487
  %v1494 = vadd.f32 %v1493, %v1488
  %v1495 = vadd.f32 %v1494, %v1489
  %1496 = vadd.xlane.f32.xlu0 %v1495
  %v1497 = vpop.xlane.xlu0 %1496
  %v1498 = vmul.f32 %v1497, 0.001953125
  %v1499 = vsub.f32 %v1483, %v1498
  %v1500 = vsub.f32 %v1484, %v1498
  %v1501 = vsub.f32 %v1485, %v1498
  %v1502 = vsub.f32 %v1486, %v1498
  %v1503 = vsub.f32 %v1487, %v1498
  %v1504 = vsub.f32 %v1488, %v1498
  %v1505 = vsub.f32 %v1489, %v1498
  %v1506 = vmul.f32 %v1499, %v310
  %v1507 = vmul.f32 %v1500, %v314
  %v1508 = vmul.f32 %v1501, %v318
  %v1509 = vmul.f32 %v1502, %v322
  %v1510 = vmul.f32 %v1503, %v326
  %v1511 = vmul.f32 %v1504, %v330
  %v1512 = vmul.f32 %v1505, %v334
  %v1513 = vmul.f32 %v1506, %v1506
  %v1514 = vmul.f32 %v1507, %v1507
  %v1515 = vmul.f32 %v1508, %v1508
  %v1516 = vmul.f32 %v1509, %v1509
  %v1517 = vmul.f32 %v1510, %v1510
  %v1518 = vmul.f32 %v1511, %v1511
  %v1519 = vmul.f32 %v1512, %v1512
  %v1520 = vadd.f32 %v1513, %v1514
  %v1521 = vadd.f32 %v1520, %v1515
  %v1522 = vadd.f32 %v1521, %v1516
  %v1523 = vadd.f32 %v1522, %v1517
  %v1524 = vadd.f32 %v1523, %v1518
  %v1525 = vadd.f32 %v1524, %v1519
  %1526 = vadd.xlane.f32.xlu0 %v1525
  %v1527 = vpop.xlane.xlu0 %1526
  %v1528 = vmul.f32 %v1527, 0.001953125
  %v1529 = vadd.f32 %v1528, 1e-05
  %v1530 = vrsqrt.pop %v1529
  %v1531 = vmul.f32 %v1506, %v1530
  %v1532 = vmul.f32 %v1507, %v1530
  %v1533 = vmul.f32 %v1508, %v1530
  %v1534 = vmul.f32 %v1509, %v1530
  %v1535 = vmul.f32 %v1510, %v1530
  %v1536 = vmul.f32 %v1511, %v1530
  %v1537 = vmul.f32 %v1512, %v1530
  %1538 = vset.pattern.permute.xlu0 1
  %1539 = vperm.xlu0 %1538, %v35
  %v1540 = vpop.permute.xlu0 %1539
  %v1542 = vmul.f32 %v1531, %v1540
  %v1543 = vmul.f32 %v1532, %v1540
  %v1544 = vmul.f32 %v1533, %v1540
  %v1545 = vmul.f32 %v1534, %v1540
  %v1546 = vmul.f32 %v1535, %v1540
  %v1547 = vmul.f32 %v1536, %v1540
  %v1548 = vmul.f32 %v1537, %v1540
  %1549 = vset.pattern.permute.xlu0 2
  %1550 = vperm.xlu0 %1549, %v35
  %v1551 = vpop.permute.xlu0 %1550
  %v1553 = vadd.f32 %v1542, %v1551
  %v1554 = vadd.f32 %v1543, %v1551
  %v1555 = vadd.f32 %v1544, %v1551
  %v1556 = vadd.f32 %v1545, %v1551
  %v1557 = vadd.f32 %v1546, %v1551
  %v1558 = vadd.f32 %v1547, %v1551
  %v1559 = vadd.f32 %v1548, %v1551
  %v1560 = vmul.f32 %v1553, %v310
  %v1561 = vmul.f32 %v1554, %v314
  %v1562 = vmul.f32 %v1555, %v318
  %v1563 = vmul.f32 %v1556, %v322
  %v1564 = vmul.f32 %v1557, %v326
  %v1565 = vmul.f32 %v1558, %v330
  %v1566 = vmul.f32 %v1559, %v334
  %v1567 = vld [vmem:[%s3] sm:$0xf]
  %v1568 = vld [vmem:[%s3 + $0x4] sm:$0xf]
  %1576 = vrot.lane.b32.xlu0 %v1560, 127
  %v1577 = vpop.permute.xlu0 %1576
  %1578 = vrot.lane.b32.xlu0 %v1561, 127
  %v1579 = vpop.permute.xlu0 %1578
  %1580 = vrot.lane.b32.xlu0 %v1562, 127
  %v1581 = vpop.permute.xlu0 %1580
  %1582 = vrot.lane.b32.xlu0 %v1563, 127
  %v1583 = vpop.permute.xlu0 %1582
  %1584 = vrot.lane.b32.xlu0 %v1564, 127
  %v1585 = vpop.permute.xlu0 %1584
  %1586 = vrot.lane.b32.xlu0 %v1565, 127
  %v1587 = vpop.permute.xlu0 %1586
  %1588 = vrot.lane.b32.xlu0 %v1566, 127
  %v1589 = vpop.permute.xlu0 %1588
  %v1590 = vsel %vm801, %v1577, %v1579
  %v1591 = vsel %vm801, %v1579, %v1581
  %v1592 = vsel %vm801, %v1581, %v1583
  %v1593 = vsel %vm801, %v1583, %v1585
  %v1594 = vsel %vm801, %v1585, %v1587
  %v1595 = vsel %vm801, %v1587, %v1589
  %v1604 = vsel %vm801, %v1589, %v1577
  %1605 = vrot.lane.b32.xlu0 %v1560, 126
  %v1606 = vpop.permute.xlu0 %1605
  %1607 = vrot.lane.b32.xlu0 %v1561, 126
  %v1608 = vpop.permute.xlu0 %1607
  %1609 = vrot.lane.b32.xlu0 %v1562, 126
  %v1610 = vpop.permute.xlu0 %1609
  %1611 = vrot.lane.b32.xlu0 %v1563, 126
  %v1612 = vpop.permute.xlu0 %1611
  %1613 = vrot.lane.b32.xlu0 %v1564, 126
  %v1614 = vpop.permute.xlu0 %1613
  %1615 = vrot.lane.b32.xlu0 %v1565, 126
  %v1616 = vpop.permute.xlu0 %1615
  %1617 = vrot.lane.b32.xlu0 %v1566, 126
  %v1618 = vpop.permute.xlu0 %1617
  %v1619 = vsel %vm831, %v1606, %v1608
  %v1620 = vsel %vm831, %v1608, %v1610
  %v1621 = vsel %vm831, %v1610, %v1612
  %v1622 = vsel %vm831, %v1612, %v1614
  %v1623 = vsel %vm831, %v1614, %v1616
  %v1624 = vsel %vm831, %v1616, %v1618
  %v1633 = vsel %vm831, %v1618, %v1606
  %1634 = vrot.lane.b32.xlu0 %v1560, 108
  %v1635 = vpop.permute.xlu0 %1634
  %1636 = vrot.lane.b32.xlu0 %v1561, 108
  %v1637 = vpop.permute.xlu0 %1636
  %1638 = vrot.lane.b32.xlu0 %v1562, 108
  %v1639 = vpop.permute.xlu0 %1638
  %1640 = vrot.lane.b32.xlu0 %v1563, 108
  %v1641 = vpop.permute.xlu0 %1640
  %1642 = vrot.lane.b32.xlu0 %v1564, 108
  %v1643 = vpop.permute.xlu0 %1642
  %1644 = vrot.lane.b32.xlu0 %v1565, 108
  %v1645 = vpop.permute.xlu0 %1644
  %1646 = vrot.lane.b32.xlu0 %v1566, 108
  %v1647 = vpop.permute.xlu0 %1646
  %v1648 = vsel %vm921, %v1635, %v1637
  %v1649 = vsel %vm921, %v1637, %v1639
  %v1650 = vsel %vm921, %v1639, %v1641
  %v1651 = vsel %vm921, %v1641, %v1643
  %v1652 = vsel %vm921, %v1643, %v1645
  %v1653 = vsel %vm921, %v1645, %v1647
  %v1662 = vsel %vm921, %v1647, %v1635
  %1663 = vrot.lane.b32.xlu0 %v1560, 107
  %v1664 = vpop.permute.xlu0 %1663
  %1665 = vrot.lane.b32.xlu0 %v1561, 107
  %v1666 = vpop.permute.xlu0 %1665
  %1667 = vrot.lane.b32.xlu0 %v1562, 107
  %v1668 = vpop.permute.xlu0 %1667
  %1669 = vrot.lane.b32.xlu0 %v1563, 107
  %v1670 = vpop.permute.xlu0 %1669
  %1671 = vrot.lane.b32.xlu0 %v1564, 107
  %v1672 = vpop.permute.xlu0 %1671
  %1673 = vrot.lane.b32.xlu0 %v1565, 107
  %v1674 = vpop.permute.xlu0 %1673
  %1675 = vrot.lane.b32.xlu0 %v1566, 107
  %v1676 = vpop.permute.xlu0 %1675
  %v1677 = vsel %vm951, %v1664, %v1666
  %v1678 = vsel %vm951, %v1666, %v1668
  %v1679 = vsel %vm951, %v1668, %v1670
  %v1680 = vsel %vm951, %v1670, %v1672
  %v1681 = vsel %vm951, %v1672, %v1674
  %v1682 = vsel %vm951, %v1674, %v1676
  %v1691 = vsel %vm951, %v1676, %v1664
  %1692 = vrot.lane.b32.xlu0 %v1560, 106
  %v1693 = vpop.permute.xlu0 %1692
  %1694 = vrot.lane.b32.xlu0 %v1561, 106
  %v1695 = vpop.permute.xlu0 %1694
  %1696 = vrot.lane.b32.xlu0 %v1562, 106
  %v1697 = vpop.permute.xlu0 %1696
  %1698 = vrot.lane.b32.xlu0 %v1563, 106
  %v1699 = vpop.permute.xlu0 %1698
  %1700 = vrot.lane.b32.xlu0 %v1564, 106
  %v1701 = vpop.permute.xlu0 %1700
  %1702 = vrot.lane.b32.xlu0 %v1565, 106
  %v1703 = vpop.permute.xlu0 %1702
  %1704 = vrot.lane.b32.xlu0 %v1566, 106
  %v1705 = vpop.permute.xlu0 %1704
  %v1706 = vsel %vm981, %v1693, %v1695
  %v1707 = vsel %vm981, %v1695, %v1697
  %v1708 = vsel %vm981, %v1697, %v1699
  %v1709 = vsel %vm981, %v1699, %v1701
  %v1710 = vsel %vm981, %v1701, %v1703
  %v1711 = vsel %vm981, %v1703, %v1705
  %v1720 = vsel %vm981, %v1705, %v1693
  %1721 = vrot.lane.b32.xlu0 %v1560, 88
  %v1722 = vpop.permute.xlu0 %1721
  %1723 = vrot.lane.b32.xlu0 %v1561, 88
  %v1724 = vpop.permute.xlu0 %1723
  %1725 = vrot.lane.b32.xlu0 %v1562, 88
  %v1726 = vpop.permute.xlu0 %1725
  %1727 = vrot.lane.b32.xlu0 %v1563, 88
  %v1728 = vpop.permute.xlu0 %1727
  %1729 = vrot.lane.b32.xlu0 %v1564, 88
  %v1730 = vpop.permute.xlu0 %1729
  %1731 = vrot.lane.b32.xlu0 %v1565, 88
  %v1732 = vpop.permute.xlu0 %1731
  %1733 = vrot.lane.b32.xlu0 %v1566, 88
  %v1734 = vpop.permute.xlu0 %1733
  %v1735 = vsel %vm1071, %v1722, %v1724
  %v1736 = vsel %vm1071, %v1724, %v1726
  %v1737 = vsel %vm1071, %v1726, %v1728
  %v1738 = vsel %vm1071, %v1728, %v1730
  %v1739 = vsel %vm1071, %v1730, %v1732
  %v1740 = vsel %vm1071, %v1732, %v1734
  %v1749 = vsel %vm1071, %v1734, %v1722
  %1750 = vrot.lane.b32.xlu0 %v1560, 87
  %v1751 = vpop.permute.xlu0 %1750
  %1752 = vrot.lane.b32.xlu0 %v1561, 87
  %v1753 = vpop.permute.xlu0 %1752
  %1754 = vrot.lane.b32.xlu0 %v1562, 87
  %v1755 = vpop.permute.xlu0 %1754
  %1756 = vrot.lane.b32.xlu0 %v1563, 87
  %v1757 = vpop.permute.xlu0 %1756
  %1758 = vrot.lane.b32.xlu0 %v1564, 87
  %v1759 = vpop.permute.xlu0 %1758
  %1760 = vrot.lane.b32.xlu0 %v1565, 87
  %v1761 = vpop.permute.xlu0 %1760
  %1762 = vrot.lane.b32.xlu0 %v1566, 87
  %v1763 = vpop.permute.xlu0 %1762
  %v1764 = vsel %vm1101, %v1751, %v1753
  %v1765 = vsel %vm1101, %v1753, %v1755
  %v1766 = vsel %vm1101, %v1755, %v1757
  %v1767 = vsel %vm1101, %v1757, %v1759
  %v1768 = vsel %vm1101, %v1759, %v1761
  %v1769 = vsel %vm1101, %v1761, %v1763
  %v1778 = vsel %vm1101, %v1763, %v1751
  %1779 = vrot.lane.b32.xlu0 %v1560, 86
  %v1780 = vpop.permute.xlu0 %1779
  %1781 = vrot.lane.b32.xlu0 %v1561, 86
  %v1782 = vpop.permute.xlu0 %1781
  %1783 = vrot.lane.b32.xlu0 %v1562, 86
  %v1784 = vpop.permute.xlu0 %1783
  %1785 = vrot.lane.b32.xlu0 %v1563, 86
  %v1786 = vpop.permute.xlu0 %1785
  %1787 = vrot.lane.b32.xlu0 %v1564, 86
  %v1788 = vpop.permute.xlu0 %1787
  %1789 = vrot.lane.b32.xlu0 %v1565, 86
  %v1790 = vpop.permute.xlu0 %1789
  %1791 = vrot.lane.b32.xlu0 %v1566, 86
  %v1792 = vpop.permute.xlu0 %1791
  %v1793 = vsel %vm1131, %v1780, %v1782
  %v1794 = vsel %vm1131, %v1782, %v1784
  %v1795 = vsel %vm1131, %v1784, %v1786
  %v1796 = vsel %vm1131, %v1786, %v1788
  %v1797 = vsel %vm1131, %v1788, %v1790
  %v1798 = vsel %vm1131, %v1790, %v1792
  %v1807 = vsel %vm1131, %v1792, %v1780
  %v1808 = vpack.c.bf16 %v1590, %v1560
  %v1809 = vpack.c.bf16 %v1591, %v1561
  %v1810 = vpack.c.bf16 %v1592, %v1562
  %v1811 = vpack.c.bf16 %v1593, %v1563
  %v1812 = vpack.c.bf16 %v1594, %v1564
  %v1813 = vpack.c.bf16 %v1595, %v1565
  %v1814 = vpack.c.bf16 %v1604, %v1566
  %v1815 = vpack.c.bf16 %v1648, %v1619
  %v1816 = vpack.c.bf16 %v1649, %v1620
  %v1817 = vpack.c.bf16 %v1650, %v1621
  %v1818 = vpack.c.bf16 %v1651, %v1622
  %v1819 = vpack.c.bf16 %v1652, %v1623
  %v1820 = vpack.c.bf16 %v1653, %v1624
  %v1821 = vpack.c.bf16 %v1662, %v1633
  %v1822 = vpack.c.bf16 %v1706, %v1677
  %v1823 = vpack.c.bf16 %v1707, %v1678
  %v1824 = vpack.c.bf16 %v1708, %v1679
  %v1825 = vpack.c.bf16 %v1709, %v1680
  %v1826 = vpack.c.bf16 %v1710, %v1681
  %v1827 = vpack.c.bf16 %v1711, %v1682
  %v1828 = vpack.c.bf16 %v1720, %v1691
  %v1829 = vpack.c.bf16 %v1764, %v1735
  %v1830 = vpack.c.bf16 %v1765, %v1736
  %v1831 = vpack.c.bf16 %v1766, %v1737
  %v1832 = vpack.c.bf16 %v1767, %v1738
  %v1833 = vpack.c.bf16 %v1768, %v1739
  %v1834 = vpack.c.bf16 %v1769, %v1740
  %v1835 = vpack.c.bf16 %v1778, %v1749
  %v1836 = vpack.c.bf16 %v1793, %v1793
  %v1837 = vpack.c.bf16 %v1794, %v1794
  %v1838 = vpack.c.bf16 %v1795, %v1795
  %v1839 = vpack.c.bf16 %v1796, %v1796
  %v1840 = vpack.c.bf16 %v1797, %v1797
  %v1841 = vpack.c.bf16 %v1798, %v1798
  %v1842 = vpack.c.bf16 %v1807, %v1807
  %1844 = vset.pattern.permute.xlu0 0
  %1845 = vperm.xlu0 %1844, %v36
  %v1846 = vpop.permute.xlu0 %1845
  %1849 = vset.pattern.permute.xlu0 0
  %1850 = vperm.xlu0 %1849, %v37
  %v1851 = vpop.permute.xlu0 %1850
  %v1855 = vunpack.c.l.b16 %v1567
  %v1856 = vunpack.c.l.b16 %v1568
  %v1857 = vpack.c.b16 %v1856, %v1855
  %v1859 = vsel %vm1248, %v1857, 0
  %v1862 = vsel %vm59, %v1836, 0
  %v1865 = vsel %vm59, %v1837, 0
  %v1868 = vsel %vm59, %v1838, 0
  %v1871 = vsel %vm59, %v1839, 0
  %v1874 = vsel %vm59, %v1840, 0
  %v1877 = vsel %vm59, %v1841, 0
  %v1880 = vsel %vm59, %v1842, 0
  %1882 = vmatprep.subr.bf16.mxu0 %v1809
  %1883 = vmatpush1.bf16.msra.mxu0 %v1808
  %1884 = vmatprep.subr.bf16.mxu0 %v1816
  %1885 = vmatpush1.bf16.msra.mxu0 %v1815
  %1886 = vmatprep.subr.bf16.mxu0 %v1823
  %1887 = vmatpush1.bf16.msra.mxu0 %v1822
  %1888 = vmatprep.subr.bf16.mxu0 %v1830
  %1889 = vmatpush1.bf16.msra.mxu0 %v1829
  %1890 = vmatprep.subr.bf16.mxu0 %v1865
  %1891 = vmatpush1.bf16.msra.mxu0 %v1862
  %1892 = vmatprep.subr.bf16.mxu0 0
  %1893 = vmatpush1.bf16.msra.mxu0 0
  %1894 = vmatprep.subr.bf16.mxu0 0
  %1895 = vmatpush1.bf16.msra.mxu0 0
  %1896 = vmatprep.subr.bf16.mxu0 0
  %1897 = vmatpush1.bf16.msra.mxu0 0
  %1898 = vmatprep.subr.bf16.mxu0 0
  %1899 = vmatpush1.bf16.msra.mxu0 0
  %1900 = vmatprep.subr.bf16.mxu0 0
  %1901 = vmatpush1.bf16.msra.mxu0 0
  %1902 = vmatprep.subr.bf16.mxu0 0
  %1903 = vmatpush1.bf16.msra.mxu0 0
  %1904 = vmatprep.subr.bf16.mxu0 0
  %1905 = vmatpush1.bf16.msra.mxu0 0
  %1906 = vmatprep.subr.bf16.mxu0 0
  %1907 = vmatpush1.bf16.msra.mxu0 0
  %1908 = vmatprep.subr.bf16.mxu0 0
  %1909 = vmatpush1.bf16.msra.mxu0 0
  %1910 = vmatprep.subr.bf16.mxu0 0
  %1911 = vmatpush1.bf16.msra.mxu0 0
  %1912 = vmatprep.subr.bf16.mxu0 0
  %1913 = vmatpush1.bf16.msra.mxu0 0
  %1914 = vmatprep.mubr.bf16.mxu0 0
  %1915 = vmatmul.mubr.bf16.gmra.mrb[0].mxu0 %v1859
  %v1916 = vpop.f32.mrb[0].mxu0
  %v1917 = vadd.f32 %v1846, %v1916
  %v1918 = vpop.f32.mrb[0].mxu0
  %v1919 = vadd.f32 %v1846, %v1918
  %v1920 = vpop.f32.mrb[0].mxu0
  %v1921 = vadd.f32 %v1851, %v1920
  %v1922 = vpop.f32.mrb[0].mxu0
  %v1923 = vadd.f32 %v1851, %v1922
  %1924 = vdwg.mxu0
  %1925 = vmatprep.subr.bf16.mxu0 %v1811
  %1926 = vmatpush1.bf16.msra.mxu0 %v1810
  %1927 = vmatprep.subr.bf16.mxu0 %v1818
  %1928 = vmatpush1.bf16.msra.mxu0 %v1817
  %1929 = vmatprep.subr.bf16.mxu0 %v1825
  %1930 = vmatpush1.bf16.msra.mxu0 %v1824
  %1931 = vmatprep.subr.bf16.mxu0 %v1832
  %1932 = vmatpush1.bf16.msra.mxu0 %v1831
  %1933 = vmatprep.subr.bf16.mxu0 %v1871
  %1934 = vmatpush1.bf16.msra.mxu0 %v1868
  %1935 = vmatprep.subr.bf16.mxu0 0
  %1936 = vmatpush1.bf16.msra.mxu0 0
  %1937 = vmatprep.subr.bf16.mxu0 0
  %1938 = vmatpush1.bf16.msra.mxu0 0
  %1939 = vmatprep.subr.bf16.mxu0 0
  %1940 = vmatpush1.bf16.msra.mxu0 0
  %1941 = vmatprep.subr.bf16.mxu0 0
  %1942 = vmatpush1.bf16.msra.mxu0 0
  %1943 = vmatprep.subr.bf16.mxu0 0
  %1944 = vmatpush1.bf16.msra.mxu0 0
  %1945 = vmatprep.subr.bf16.mxu0 0
  %1946 = vmatpush1.bf16.msra.mxu0 0
  %1947 = vmatprep.subr.bf16.mxu0 0
  %1948 = vmatpush1.bf16.msra.mxu0 0
  %1949 = vmatprep.subr.bf16.mxu0 0
  %1950 = vmatpush1.bf16.msra.mxu0 0
  %1951 = vmatprep.subr.bf16.mxu0 0
  %1952 = vmatpush1.bf16.msra.mxu0 0
  %1953 = vmatprep.subr.bf16.mxu0 0
  %1954 = vmatpush1.bf16.msra.mxu0 0
  %1955 = vmatprep.subr.bf16.mxu0 0
  %1956 = vmatpush1.bf16.msra.mxu0 0
  %1957 = vmatprep.mubr.bf16.mxu0 0
  %1958 = vmatmul.mubr.bf16.gmra.mrb[0].mxu0 %v1859
  %v1959 = vpop.f32.mrb[0].mxu0
  %v1960 = vadd.f32 %v1846, %v1959
  %v1961 = vpop.f32.mrb[0].mxu0
  %v1962 = vadd.f32 %v1846, %v1961
  %v1963 = vpop.f32.mrb[0].mxu0
  %v1964 = vadd.f32 %v1851, %v1963
  %v1965 = vpop.f32.mrb[0].mxu0
  %v1966 = vadd.f32 %v1851, %v1965
  %1967 = vdwg.mxu0
  %1968 = vmatprep.subr.bf16.mxu0 %v1813
  %1969 = vmatpush1.bf16.msra.mxu0 %v1812
  %1970 = vmatprep.subr.bf16.mxu0 %v1820
  %1971 = vmatpush1.bf16.msra.mxu0 %v1819
  %1972 = vmatprep.subr.bf16.mxu0 %v1827
  %1973 = vmatpush1.bf16.msra.mxu0 %v1826
  %1974 = vmatprep.subr.bf16.mxu0 %v1834
  %1975 = vmatpush1.bf16.msra.mxu0 %v1833
  %1976 = vmatprep.subr.bf16.mxu0 %v1877
  %1977 = vmatpush1.bf16.msra.mxu0 %v1874
  %1978 = vmatprep.subr.bf16.mxu0 0
  %1979 = vmatpush1.bf16.msra.mxu0 0
  %1980 = vmatprep.subr.bf16.mxu0 0
  %1981 = vmatpush1.bf16.msra.mxu0 0
  %1982 = vmatprep.subr.bf16.mxu0 0
  %1983 = vmatpush1.bf16.msra.mxu0 0
  %1984 = vmatprep.subr.bf16.mxu0 0
  %1985 = vmatpush1.bf16.msra.mxu0 0
  %1986 = vmatprep.subr.bf16.mxu0 0
  %1987 = vmatpush1.bf16.msra.mxu0 0
  %1988 = vmatprep.subr.bf16.mxu0 0
  %1989 = vmatpush1.bf16.msra.mxu0 0
  %1990 = vmatprep.subr.bf16.mxu0 0
  %1991 = vmatpush1.bf16.msra.mxu0 0
  %1992 = vmatprep.subr.bf16.mxu0 0
  %1993 = vmatpush1.bf16.msra.mxu0 0
  %1994 = vmatprep.subr.bf16.mxu0 0
  %1995 = vmatpush1.bf16.msra.mxu0 0
  %1996 = vmatprep.subr.bf16.mxu0 0
  %1997 = vmatpush1.bf16.msra.mxu0 0
  %1998 = vmatprep.subr.bf16.mxu0 0
  %1999 = vmatpush1.bf16.msra.mxu0 0
  %2000 = vmatprep.mubr.bf16.mxu0 0
  %2001 = vmatmul.mubr.bf16.gmra.mrb[0].mxu0 %v1859
  %v2002 = vpop.f32.mrb[0].mxu0
  %v2003 = vadd.f32 %v1846, %v2002
  %v2004 = vpop.f32.mrb[0].mxu0
  %v2005 = vadd.f32 %v1846, %v2004
  %v2006 = vpop.f32.mrb[0].mxu0
  %v2007 = vadd.f32 %v1851, %v2006
  %v2008 = vpop.f32.mrb[0].mxu0
  %v2009 = vadd.f32 %v1851, %v2008
  %2010 = vdwg.mxu0
  %2011 = vmatprep.subr.bf16.mxu0 0
  %2012 = vmatpush1.bf16.msra.mxu0 %v1814
  %2013 = vmatprep.subr.bf16.mxu0 0
  %2014 = vmatpush1.bf16.msra.mxu0 %v1821
  %2015 = vmatprep.subr.bf16.mxu0 0
  %2016 = vmatpush1.bf16.msra.mxu0 %v1828
  %2017 = vmatprep.subr.bf16.mxu0 0
  %2018 = vmatpush1.bf16.msra.mxu0 %v1835
  %2019 = vmatprep.subr.bf16.mxu0 0
  %2020 = vmatpush1.bf16.msra.mxu0 %v1880
  %2021 = vmatprep.subr.bf16.mxu0 0
  %2022 = vmatpush1.bf16.msra.mxu0 0
  %2023 = vmatprep.subr.bf16.mxu0 0
  %2024 = vmatpush1.bf16.msra.mxu0 0
  %2025 = vmatprep.subr.bf16.mxu0 0
  %2026 = vmatpush1.bf16.msra.mxu0 0
  %2027 = vmatprep.subr.bf16.mxu0 0
  %2028 = vmatpush1.bf16.msra.mxu0 0
  %2029 = vmatprep.subr.bf16.mxu0 0
  %2030 = vmatpush1.bf16.msra.mxu0 0
  %2031 = vmatprep.subr.bf16.mxu0 0
  %2032 = vmatpush1.bf16.msra.mxu0 0
  %2033 = vmatprep.subr.bf16.mxu0 0
  %2034 = vmatpush1.bf16.msra.mxu0 0
  %2035 = vmatprep.subr.bf16.mxu0 0
  %2036 = vmatpush1.bf16.msra.mxu0 0
  %2037 = vmatprep.subr.bf16.mxu0 0
  %2038 = vmatpush1.bf16.msra.mxu0 0
  %2039 = vmatprep.subr.bf16.mxu0 0
  %2040 = vmatpush1.bf16.msra.mxu0 0
  %2041 = vmatprep.subr.bf16.mxu0 0
  %2042 = vmatpush1.bf16.msra.mxu0 0
  %2043 = vmatprep.mubr.bf16.mxu0 0
  %2044 = vmatmul.mubr.bf16.gmra.mrb[0].mxu0 %v1859
  %v2045 = vpop.f32.mrb[0].mxu0
  %v2046 = vadd.f32 %v1846, %v2045
  %v2047 = vpop.f32.mrb[0].mxu0
  %v2048 = vpop.f32.mrb[0].mxu0
  %v2049 = vadd.f32 %v1851, %v2048
  %v2050 = vpop.f32.mrb[0].mxu0
  %2051 = vdwg.mxu0
  %v2052 = vmax.f32 %v1917, 0.0
  %v2053 = vmax.f32 %v1919, 0.0
  %v2054 = vmax.f32 %v1960, 0.0
  %v2055 = vmax.f32 %v1962, 0.0
  %v2056 = vmax.f32 %v2003, 0.0
  %v2057 = vmax.f32 %v2005, 0.0
  %v2058 = vmax.f32 %v2046, 0.0
  %v2059 = vmax.f32 %v1921, 0.0
  %v2060 = vmax.f32 %v1923, 0.0
  %v2061 = vmax.f32 %v1964, 0.0
  %v2062 = vmax.f32 %v1966, 0.0
  %v2063 = vmax.f32 %v2007, 0.0
  %v2064 = vmax.f32 %v2009, 0.0
  %v2065 = vmax.f32 %v2049, 0.0
  %v2066 = vlaneseq
  %v2067 = vshrl.u32 %v2066, 7
  %v2068 = vsub.s32 1, %v2067
  %v2069 = vrot.slane %v39, %v2068
  %v2070 = vlaneseq
  %v2071 = vshrl.u32 %v2070, 7
  %v2072 = vsub.s32 3, %v2071
  %v2073 = vrot.slane %v39, %v2072
  %v2074 = vlaneseq
  %v2075 = vshrl.u32 %v2074, 7
  %v2076 = vsub.s32 5, %v2075
  %v2077 = vrot.slane %v39, %v2076
  %v2078 = vlaneseq
  %v2079 = vshrl.u32 %v2078, 7
  %v2080 = vsub.s32 7, %v2079
  %v2081 = vrot.slane %v39, %v2080
  %v2082 = vlaneseq
  %v2083 = vshrl.u32 %v2082, 7
  %v2084 = vsub.s32 1, %v2083
  %v2085 = vrot.slane %v40, %v2084
  %v2086 = vlaneseq
  %v2087 = vshrl.u32 %v2086, 7
  %v2088 = vsub.s32 3, %v2087
  %v2089 = vrot.slane %v40, %v2088
  %v2090 = vlaneseq
  %v2091 = vshrl.u32 %v2090, 7
  %v2092 = vsub.s32 5, %v2091
  %v2093 = vrot.slane %v40, %v2092
  %v2101 = vlaneseq
  %v2102 = vshrl.u32 %v2101, 7
  %v2103 = vsub.s32 1, %v2102
  %v2104 = vrot.slane %v2069, %v2103
  %v2105 = vlaneseq
  %v2106 = vshrl.u32 %v2105, 7
  %v2107 = vsub.s32 1, %v2106
  %v2108 = vrot.slane %v2073, %v2107
  %v2109 = vlaneseq
  %v2110 = vshrl.u32 %v2109, 7
  %v2111 = vsub.s32 1, %v2110
  %v2112 = vrot.slane %v2077, %v2111
  %v2113 = vlaneseq
  %v2114 = vshrl.u32 %v2113, 7
  %v2115 = vsub.s32 1, %v2114
  %v2116 = vrot.slane %v2081, %v2115
  %v2117 = vlaneseq
  %v2118 = vshrl.u32 %v2117, 7
  %v2119 = vsub.s32 1, %v2118
  %v2120 = vrot.slane %v2085, %v2119
  %v2121 = vlaneseq
  %v2122 = vshrl.u32 %v2121, 7
  %v2123 = vsub.s32 1, %v2122
  %v2124 = vrot.slane %v2089, %v2123
  %v2125 = vlaneseq
  %v2126 = vshrl.u32 %v2125, 7
  %v2127 = vsub.s32 1, %v2126
  %v2128 = vrot.slane %v2093, %v2127
  %v2129 = vmul.f32 %v2052, %v2104
  %v2130 = vmul.f32 %v2053, %v2108
  %v2131 = vmul.f32 %v2054, %v2112
  %v2132 = vmul.f32 %v2055, %v2116
  %v2133 = vmul.f32 %v2056, %v2120
  %v2134 = vmul.f32 %v2057, %v2124
  %v2135 = vmul.f32 %v2058, %v2128
  %v2136 = vmul.f32 %v2059, %v2104
  %v2137 = vmul.f32 %v2060, %v2108
  %v2138 = vmul.f32 %v2061, %v2112
  %v2139 = vmul.f32 %v2062, %v2116
  %v2140 = vmul.f32 %v2063, %v2120
  %v2141 = vmul.f32 %v2064, %v2124
  %v2142 = vmul.f32 %v2065, %v2128
  %v2143 = vadd.f32 %v2129, %v2130
  %v2144 = vadd.f32 %v2143, %v2131
  %v2145 = vadd.f32 %v2144, %v2132
  %v2146 = vadd.f32 %v2145, %v2133
  %v2147 = vadd.f32 %v2146, %v2134
  %v2148 = vadd.f32 %v2147, %v2135
  %2149 = vadd.xlane.f32.xlu0 %v2148
  %v2150 = vpop.xlane.xlu0 %2149
  %v2151 = vadd.f32 %v2136, %v2137
  %v2152 = vadd.f32 %v2151, %v2138
  %v2153 = vadd.f32 %v2152, %v2139
  %v2154 = vadd.f32 %v2153, %v2140
  %v2155 = vadd.f32 %v2154, %v2141
  %v2156 = vadd.f32 %v2155, %v2142
  %2157 = vadd.xlane.f32.xlu0 %v2156
  %v2158 = vpop.xlane.xlu0 %2157
  %v2159 = vmul.f32 %v2150, 0.0025510204
  %v2160 = vmul.f32 %v2158, 0.0025510204
  %v2161 = vsub.f32 %v2129, %v2159
  %v2162 = vsub.f32 %v2130, %v2159
  %v2163 = vsub.f32 %v2131, %v2159
  %v2164 = vsub.f32 %v2132, %v2159
  %v2165 = vsub.f32 %v2133, %v2159
  %v2166 = vsub.f32 %v2134, %v2159
  %v2167 = vsub.f32 %v2135, %v2159
  %v2168 = vsub.f32 %v2136, %v2160
  %v2169 = vsub.f32 %v2137, %v2160
  %v2170 = vsub.f32 %v2138, %v2160
  %v2171 = vsub.f32 %v2139, %v2160
  %v2172 = vsub.f32 %v2140, %v2160
  %v2173 = vsub.f32 %v2141, %v2160
  %v2174 = vsub.f32 %v2142, %v2160
  %v2175 = vmul.f32 %v2161, %v2104
  %v2176 = vmul.f32 %v2162, %v2108
  %v2177 = vmul.f32 %v2163, %v2112
  %v2178 = vmul.f32 %v2164, %v2116
  %v2179 = vmul.f32 %v2165, %v2120
  %v2180 = vmul.f32 %v2166, %v2124
  %v2181 = vmul.f32 %v2167, %v2128
  %v2182 = vmul.f32 %v2168, %v2104
  %v2183 = vmul.f32 %v2169, %v2108
  %v2184 = vmul.f32 %v2170, %v2112
  %v2185 = vmul.f32 %v2171, %v2116
  %v2186 = vmul.f32 %v2172, %v2120
  %v2187 = vmul.f32 %v2173, %v2124
  %v2188 = vmul.f32 %v2174, %v2128
  %v2189 = vmul.f32 %v2175, %v2175
  %v2190 = vmul.f32 %v2176, %v2176
  %v2191 = vmul.f32 %v2177, %v2177
  %v2192 = vmul.f32 %v2178, %v2178
  %v2193 = vmul.f32 %v2179, %v2179
  %v2194 = vmul.f32 %v2180, %v2180
  %v2195 = vmul.f32 %v2181, %v2181
  %v2196 = vmul.f32 %v2182, %v2182
  %v2197 = vmul.f32 %v2183, %v2183
  %v2198 = vmul.f32 %v2184, %v2184
  %v2199 = vmul.f32 %v2185, %v2185
  %v2200 = vmul.f32 %v2186, %v2186
  %v2201 = vmul.f32 %v2187, %v2187
  %v2202 = vmul.f32 %v2188, %v2188
  %v2203 = vadd.f32 %v2189, %v2190
  %v2204 = vadd.f32 %v2203, %v2191
  %v2205 = vadd.f32 %v2204, %v2192
  %v2206 = vadd.f32 %v2205, %v2193
  %v2207 = vadd.f32 %v2206, %v2194
  %v2208 = vadd.f32 %v2207, %v2195
  %2209 = vadd.xlane.f32.xlu0 %v2208
  %v2210 = vpop.xlane.xlu0 %2209
  %v2211 = vadd.f32 %v2196, %v2197
  %v2212 = vadd.f32 %v2211, %v2198
  %v2213 = vadd.f32 %v2212, %v2199
  %v2214 = vadd.f32 %v2213, %v2200
  %v2215 = vadd.f32 %v2214, %v2201
  %v2216 = vadd.f32 %v2215, %v2202
  %2217 = vadd.xlane.f32.xlu0 %v2216
  %v2218 = vpop.xlane.xlu0 %2217
  %v2219 = vmul.f32 %v2210, 0.0025510204
  %v2220 = vmul.f32 %v2218, 0.0025510204
  %v2221 = vadd.f32 %v2219, 1e-05
  %v2222 = vadd.f32 %v2220, 1e-05
  %v2223 = vrsqrt.pop %v2221
  %v2224 = vrsqrt.pop %v2222
  %v2225 = vmul.f32 %v2175, %v2223
  %v2226 = vmul.f32 %v2176, %v2223
  %v2227 = vmul.f32 %v2177, %v2223
  %v2228 = vmul.f32 %v2178, %v2223
  %v2229 = vmul.f32 %v2179, %v2223
  %v2230 = vmul.f32 %v2180, %v2223
  %v2231 = vmul.f32 %v2181, %v2223
  %v2232 = vmul.f32 %v2182, %v2224
  %v2233 = vmul.f32 %v2183, %v2224
  %v2234 = vmul.f32 %v2184, %v2224
  %v2235 = vmul.f32 %v2185, %v2224
  %v2236 = vmul.f32 %v2186, %v2224
  %v2237 = vmul.f32 %v2187, %v2224
  %v2238 = vmul.f32 %v2188, %v2224
  %2239 = vset.pattern.permute.xlu0 1
  %2240 = vperm.xlu0 %2239, %v36
  %v2241 = vpop.permute.xlu0 %2240
  %2243 = vset.pattern.permute.xlu0 1
  %2244 = vperm.xlu0 %2243, %v37
  %v2245 = vpop.permute.xlu0 %2244
  %v2247 = vmul.f32 %v2225, %v2241
  %v2248 = vmul.f32 %v2226, %v2241
  %v2249 = vmul.f32 %v2227, %v2241
  %v2250 = vmul.f32 %v2228, %v2241
  %v2251 = vmul.f32 %v2229, %v2241
  %v2252 = vmul.f32 %v2230, %v2241
  %v2253 = vmul.f32 %v2231, %v2241
  %v2254 = vmul.f32 %v2232, %v2245
  %v2255 = vmul.f32 %v2233, %v2245
  %v2256 = vmul.f32 %v2234, %v2245
  %v2257 = vmul.f32 %v2235, %v2245
  %v2258 = vmul.f32 %v2236, %v2245
  %v2259 = vmul.f32 %v2237, %v2245
  %v2260 = vmul.f32 %v2238, %v2245
  %2261 = vset.pattern.permute.xlu0 2
  %2262 = vperm.xlu0 %2261, %v36
  %v2263 = vpop.permute.xlu0 %2262
  %2265 = vset.pattern.permute.xlu0 2
  %2266 = vperm.xlu0 %2265, %v37
  %v2267 = vpop.permute.xlu0 %2266
  %v2269 = vadd.f32 %v2247, %v2263
  %v2270 = vadd.f32 %v2248, %v2263
  %v2271 = vadd.f32 %v2249, %v2263
  %v2272 = vadd.f32 %v2250, %v2263
  %v2273 = vadd.f32 %v2251, %v2263
  %v2274 = vadd.f32 %v2252, %v2263
  %v2275 = vadd.f32 %v2253, %v2263
  %v2276 = vadd.f32 %v2254, %v2267
  %v2277 = vadd.f32 %v2255, %v2267
  %v2278 = vadd.f32 %v2256, %v2267
  %v2279 = vadd.f32 %v2257, %v2267
  %v2280 = vadd.f32 %v2258, %v2267
  %v2281 = vadd.f32 %v2259, %v2267
  %v2282 = vadd.f32 %v2260, %v2267
  %v2283 = vmul.f32 %v2269, %v2104
  %v2284 = vmul.f32 %v2270, %v2108
  %v2285 = vmul.f32 %v2271, %v2112
  %v2286 = vmul.f32 %v2272, %v2116
  %v2287 = vmul.f32 %v2273, %v2120
  %v2288 = vmul.f32 %v2274, %v2124
  %v2289 = vmul.f32 %v2275, %v2128
  %v2290 = vmul.f32 %v2276, %v2104
  %v2291 = vmul.f32 %v2277, %v2108
  %v2292 = vmul.f32 %v2278, %v2112
  %v2293 = vmul.f32 %v2279, %v2116
  %v2294 = vmul.f32 %v2280, %v2120
  %v2295 = vmul.f32 %v2281, %v2124
  %v2296 = vmul.f32 %v2282, %v2128
  %v2297 = vld [vmem:[%s4] sm:$0xff]
  %2300 = vrot.lane.b32.xlu0 %v2289, 21
  %v2301 = vpop.permute.xlu0 %2300
  %2302 = vrot.lane.b32.xlu0 %v2296, 21
  %v2303 = vpop.permute.xlu0 %2302
  %2318 = vrot.lane.b32.xlu0 %v2283, 21
  %v2319 = vpop.permute.xlu0 %2318
  %2320 = vrot.lane.b32.xlu0 %v2284, 21
  %v2321 = vpop.permute.xlu0 %2320
  %2322 = vrot.lane.b32.xlu0 %v2285, 21
  %v2323 = vpop.permute.xlu0 %2322
  %2324 = vrot.lane.b32.xlu0 %v2286, 21
  %v2325 = vpop.permute.xlu0 %2324
  %2326 = vrot.lane.b32.xlu0 %v2287, 21
  %v2327 = vpop.permute.xlu0 %2326
  %2328 = vrot.lane.b32.xlu0 %v2288, 21
  %v2329 = vpop.permute.xlu0 %2328
  %2330 = vrot.lane.b32.xlu0 %v2290, 21
  %v2331 = vpop.permute.xlu0 %2330
  %2332 = vrot.lane.b32.xlu0 %v2291, 21
  %v2333 = vpop.permute.xlu0 %2332
  %2334 = vrot.lane.b32.xlu0 %v2292, 21
  %v2335 = vpop.permute.xlu0 %2334
  %2336 = vrot.lane.b32.xlu0 %v2293, 21
  %v2337 = vpop.permute.xlu0 %2336
  %2338 = vrot.lane.b32.xlu0 %v2294, 21
  %v2339 = vpop.permute.xlu0 %2338
  %2340 = vrot.lane.b32.xlu0 %v2295, 21
  %v2341 = vpop.permute.xlu0 %2340
  %v2342 = vsel %vm622, %v2319, %v2321
  %v2343 = vsel %vm622, %v2321, %v2323
  %v2344 = vsel %vm622, %v2323, %v2325
  %v2345 = vsel %vm622, %v2325, %v2327
  %v2346 = vsel %vm622, %v2327, %v2329
  %v2347 = vsel %vm622, %v2329, %v2301
  %v2348 = vsel %vm622, %v2331, %v2333
  %v2349 = vsel %vm622, %v2333, %v2335
  %v2350 = vsel %vm622, %v2335, %v2337
  %v2351 = vsel %vm622, %v2337, %v2339
  %v2352 = vsel %vm622, %v2339, %v2341
  %v2353 = vsel %vm622, %v2341, %v2303
  %v2368 = vsel %vm622, %v2301, %v2319
  %v2369 = vsel %vm622, %v2303, %v2331
  %2370 = vrot.lane.b32.xlu0 %v2289, 20
  %v2371 = vpop.permute.xlu0 %2370
  %2372 = vrot.lane.b32.xlu0 %v2296, 20
  %v2373 = vpop.permute.xlu0 %2372
  %2376 = vrot.lane.b32.xlu0 %v2283, 20
  %v2377 = vpop.permute.xlu0 %2376
  %2378 = vrot.lane.b32.xlu0 %v2284, 20
  %v2379 = vpop.permute.xlu0 %2378
  %2380 = vrot.lane.b32.xlu0 %v2285, 20
  %v2381 = vpop.permute.xlu0 %2380
  %2382 = vrot.lane.b32.xlu0 %v2286, 20
  %v2383 = vpop.permute.xlu0 %2382
  %2384 = vrot.lane.b32.xlu0 %v2287, 20
  %v2385 = vpop.permute.xlu0 %2384
  %2386 = vrot.lane.b32.xlu0 %v2288, 20
  %v2387 = vpop.permute.xlu0 %2386
  %2388 = vrot.lane.b32.xlu0 %v2290, 20
  %v2389 = vpop.permute.xlu0 %2388
  %2390 = vrot.lane.b32.xlu0 %v2291, 20
  %v2391 = vpop.permute.xlu0 %2390
  %2392 = vrot.lane.b32.xlu0 %v2292, 20
  %v2393 = vpop.permute.xlu0 %2392
  %2394 = vrot.lane.b32.xlu0 %v2293, 20
  %v2395 = vpop.permute.xlu0 %2394
  %2396 = vrot.lane.b32.xlu0 %v2294, 20
  %v2397 = vpop.permute.xlu0 %2396
  %2398 = vrot.lane.b32.xlu0 %v2295, 20
  %v2399 = vpop.permute.xlu0 %2398
  %v2400 = vsel %vm652, %v2377, %v2379
  %v2401 = vsel %vm652, %v2379, %v2381
  %v2402 = vsel %vm652, %v2381, %v2383
  %v2403 = vsel %vm652, %v2383, %v2385
  %v2404 = vsel %vm652, %v2385, %v2387
  %v2405 = vsel %vm652, %v2387, %v2371
  %v2406 = vsel %vm652, %v2389, %v2391
  %v2407 = vsel %vm652, %v2391, %v2393
  %v2408 = vsel %vm652, %v2393, %v2395
  %v2409 = vsel %vm652, %v2395, %v2397
  %v2410 = vsel %vm652, %v2397, %v2399
  %v2411 = vsel %vm652, %v2399, %v2373
  %v2426 = vsel %vm652, %v2371, %v2377
  %v2427 = vsel %vm652, %v2373, %v2389
  %2428 = vrot.lane.b32.xlu0 %v2289, 19
  %v2429 = vpop.permute.xlu0 %2428
  %2430 = vrot.lane.b32.xlu0 %v2296, 19
  %v2431 = vpop.permute.xlu0 %2430
  %2434 = vrot.lane.b32.xlu0 %v2283, 19
  %v2435 = vpop.permute.xlu0 %2434
  %2436 = vrot.lane.b32.xlu0 %v2284, 19
  %v2437 = vpop.permute.xlu0 %2436
  %2438 = vrot.lane.b32.xlu0 %v2285, 19
  %v2439 = vpop.permute.xlu0 %2438
  %2440 = vrot.lane.b32.xlu0 %v2286, 19
  %v2441 = vpop.permute.xlu0 %2440
  %2442 = vrot.lane.b32.xlu0 %v2287, 19
  %v2443 = vpop.permute.xlu0 %2442
  %2444 = vrot.lane.b32.xlu0 %v2288, 19
  %v2445 = vpop.permute.xlu0 %2444
  %2446 = vrot.lane.b32.xlu0 %v2290, 19
  %v2447 = vpop.permute.xlu0 %2446
  %2448 = vrot.lane.b32.xlu0 %v2291, 19
  %v2449 = vpop.permute.xlu0 %2448
  %2450 = vrot.lane.b32.xlu0 %v2292, 19
  %v2451 = vpop.permute.xlu0 %2450
  %2452 = vrot.lane.b32.xlu0 %v2293, 19
  %v2453 = vpop.permute.xlu0 %2452
  %2454 = vrot.lane.b32.xlu0 %v2294, 19
  %v2455 = vpop.permute.xlu0 %2454
  %2456 = vrot.lane.b32.xlu0 %v2295, 19
  %v2457 = vpop.permute.xlu0 %2456
  %v2458 = vsel %vm682, %v2435, %v2437
  %v2459 = vsel %vm682, %v2437, %v2439
  %v2460 = vsel %vm682, %v2439, %v2441
  %v2461 = vsel %vm682, %v2441, %v2443
  %v2462 = vsel %vm682, %v2443, %v2445
  %v2463 = vsel %vm682, %v2445, %v2429
  %v2464 = vsel %vm682, %v2447, %v2449
  %v2465 = vsel %vm682, %v2449, %v2451
  %v2466 = vsel %vm682, %v2451, %v2453
  %v2467 = vsel %vm682, %v2453, %v2455
  %v2468 = vsel %vm682, %v2455, %v2457
  %v2469 = vsel %vm682, %v2457, %v2431
  %v2484 = vsel %vm682, %v2429, %v2435
  %v2485 = vsel %vm682, %v2431, %v2447
  %2486 = vrot.lane.b32.xlu0 %v2289, 1
  %v2487 = vpop.permute.xlu0 %2486
  %2488 = vrot.lane.b32.xlu0 %v2296, 1
  %v2489 = vpop.permute.xlu0 %2488
  %2492 = vrot.lane.b32.xlu0 %v2283, 1
  %v2493 = vpop.permute.xlu0 %2492
  %2494 = vrot.lane.b32.xlu0 %v2284, 1
  %v2495 = vpop.permute.xlu0 %2494
  %2496 = vrot.lane.b32.xlu0 %v2285, 1
  %v2497 = vpop.permute.xlu0 %2496
  %2498 = vrot.lane.b32.xlu0 %v2286, 1
  %v2499 = vpop.permute.xlu0 %2498
  %2500 = vrot.lane.b32.xlu0 %v2287, 1
  %v2501 = vpop.permute.xlu0 %2500
  %2502 = vrot.lane.b32.xlu0 %v2288, 1
  %v2503 = vpop.permute.xlu0 %2502
  %2504 = vrot.lane.b32.xlu0 %v2290, 1
  %v2505 = vpop.permute.xlu0 %2504
  %2506 = vrot.lane.b32.xlu0 %v2291, 1
  %v2507 = vpop.permute.xlu0 %2506
  %2508 = vrot.lane.b32.xlu0 %v2292, 1
  %v2509 = vpop.permute.xlu0 %2508
  %2510 = vrot.lane.b32.xlu0 %v2293, 1
  %v2511 = vpop.permute.xlu0 %2510
  %2512 = vrot.lane.b32.xlu0 %v2294, 1
  %v2513 = vpop.permute.xlu0 %2512
  %2514 = vrot.lane.b32.xlu0 %v2295, 1
  %v2515 = vpop.permute.xlu0 %2514
  %v2516 = vsel %vm772, %v2493, %v2495
  %v2517 = vsel %vm772, %v2495, %v2497
  %v2518 = vsel %vm772, %v2497, %v2499
  %v2519 = vsel %vm772, %v2499, %v2501
  %v2520 = vsel %vm772, %v2501, %v2503
  %v2521 = vsel %vm772, %v2503, %v2487
  %v2522 = vsel %vm772, %v2505, %v2507
  %v2523 = vsel %vm772, %v2507, %v2509
  %v2524 = vsel %vm772, %v2509, %v2511
  %v2525 = vsel %vm772, %v2511, %v2513
  %v2526 = vsel %vm772, %v2513, %v2515
  %v2527 = vsel %vm772, %v2515, %v2489
  %v2542 = vsel %vm772, %v2487, %v2493
  %v2543 = vsel %vm772, %v2489, %v2505
  %2544 = vrot.lane.b32.xlu0 %v2283, 127
  %v2545 = vpop.permute.xlu0 %2544
  %2546 = vrot.lane.b32.xlu0 %v2284, 127
  %v2547 = vpop.permute.xlu0 %2546
  %2548 = vrot.lane.b32.xlu0 %v2285, 127
  %v2549 = vpop.permute.xlu0 %2548
  %2550 = vrot.lane.b32.xlu0 %v2286, 127
  %v2551 = vpop.permute.xlu0 %2550
  %2552 = vrot.lane.b32.xlu0 %v2287, 127
  %v2553 = vpop.permute.xlu0 %2552
  %2554 = vrot.lane.b32.xlu0 %v2288, 127
  %v2555 = vpop.permute.xlu0 %2554
  %2556 = vrot.lane.b32.xlu0 %v2289, 127
  %v2557 = vpop.permute.xlu0 %2556
  %2558 = vrot.lane.b32.xlu0 %v2290, 127
  %v2559 = vpop.permute.xlu0 %2558
  %2560 = vrot.lane.b32.xlu0 %v2291, 127
  %v2561 = vpop.permute.xlu0 %2560
  %2562 = vrot.lane.b32.xlu0 %v2292, 127
  %v2563 = vpop.permute.xlu0 %2562
  %2564 = vrot.lane.b32.xlu0 %v2293, 127
  %v2565 = vpop.permute.xlu0 %2564
  %2566 = vrot.lane.b32.xlu0 %v2294, 127
  %v2567 = vpop.permute.xlu0 %2566
  %2568 = vrot.lane.b32.xlu0 %v2295, 127
  %v2569 = vpop.permute.xlu0 %2568
  %2570 = vrot.lane.b32.xlu0 %v2296, 127
  %v2571 = vpop.permute.xlu0 %2570
  %v2572 = vsel %vm801, %v2545, %v2547
  %v2573 = vsel %vm801, %v2547, %v2549
  %v2574 = vsel %vm801, %v2549, %v2551
  %v2575 = vsel %vm801, %v2551, %v2553
  %v2576 = vsel %vm801, %v2553, %v2555
  %v2577 = vsel %vm801, %v2555, %v2557
  %v2578 = vsel %vm801, %v2559, %v2561
  %v2579 = vsel %vm801, %v2561, %v2563
  %v2580 = vsel %vm801, %v2563, %v2565
  %v2581 = vsel %vm801, %v2565, %v2567
  %v2582 = vsel %vm801, %v2567, %v2569
  %v2583 = vsel %vm801, %v2569, %v2571
  %v2600 = vsel %vm801, %v2557, %v2545
  %v2601 = vsel %vm801, %v2571, %v2559
  %2602 = vrot.lane.b32.xlu0 %v2283, 109
  %v2603 = vpop.permute.xlu0 %2602
  %2604 = vrot.lane.b32.xlu0 %v2284, 109
  %v2605 = vpop.permute.xlu0 %2604
  %2606 = vrot.lane.b32.xlu0 %v2285, 109
  %v2607 = vpop.permute.xlu0 %2606
  %2608 = vrot.lane.b32.xlu0 %v2286, 109
  %v2609 = vpop.permute.xlu0 %2608
  %2610 = vrot.lane.b32.xlu0 %v2287, 109
  %v2611 = vpop.permute.xlu0 %2610
  %2612 = vrot.lane.b32.xlu0 %v2288, 109
  %v2613 = vpop.permute.xlu0 %2612
  %2614 = vrot.lane.b32.xlu0 %v2289, 109
  %v2615 = vpop.permute.xlu0 %2614
  %2616 = vrot.lane.b32.xlu0 %v2290, 109
  %v2617 = vpop.permute.xlu0 %2616
  %2618 = vrot.lane.b32.xlu0 %v2291, 109
  %v2619 = vpop.permute.xlu0 %2618
  %2620 = vrot.lane.b32.xlu0 %v2292, 109
  %v2621 = vpop.permute.xlu0 %2620
  %2622 = vrot.lane.b32.xlu0 %v2293, 109
  %v2623 = vpop.permute.xlu0 %2622
  %2624 = vrot.lane.b32.xlu0 %v2294, 109
  %v2625 = vpop.permute.xlu0 %2624
  %2626 = vrot.lane.b32.xlu0 %v2295, 109
  %v2627 = vpop.permute.xlu0 %2626
  %2628 = vrot.lane.b32.xlu0 %v2296, 109
  %v2629 = vpop.permute.xlu0 %2628
  %v2630 = vsel %vm891, %v2603, %v2605
  %v2631 = vsel %vm891, %v2605, %v2607
  %v2632 = vsel %vm891, %v2607, %v2609
  %v2633 = vsel %vm891, %v2609, %v2611
  %v2634 = vsel %vm891, %v2611, %v2613
  %v2635 = vsel %vm891, %v2613, %v2615
  %v2636 = vsel %vm891, %v2617, %v2619
  %v2637 = vsel %vm891, %v2619, %v2621
  %v2638 = vsel %vm891, %v2621, %v2623
  %v2639 = vsel %vm891, %v2623, %v2625
  %v2640 = vsel %vm891, %v2625, %v2627
  %v2641 = vsel %vm891, %v2627, %v2629
  %v2658 = vsel %vm891, %v2615, %v2603
  %v2659 = vsel %vm891, %v2629, %v2617
  %2660 = vrot.lane.b32.xlu0 %v2283, 108
  %v2661 = vpop.permute.xlu0 %2660
  %2662 = vrot.lane.b32.xlu0 %v2284, 108
  %v2663 = vpop.permute.xlu0 %2662
  %2664 = vrot.lane.b32.xlu0 %v2285, 108
  %v2665 = vpop.permute.xlu0 %2664
  %2666 = vrot.lane.b32.xlu0 %v2286, 108
  %v2667 = vpop.permute.xlu0 %2666
  %2668 = vrot.lane.b32.xlu0 %v2287, 108
  %v2669 = vpop.permute.xlu0 %2668
  %2670 = vrot.lane.b32.xlu0 %v2288, 108
  %v2671 = vpop.permute.xlu0 %2670
  %2672 = vrot.lane.b32.xlu0 %v2289, 108
  %v2673 = vpop.permute.xlu0 %2672
  %2674 = vrot.lane.b32.xlu0 %v2290, 108
  %v2675 = vpop.permute.xlu0 %2674
  %2676 = vrot.lane.b32.xlu0 %v2291, 108
  %v2677 = vpop.permute.xlu0 %2676
  %2678 = vrot.lane.b32.xlu0 %v2292, 108
  %v2679 = vpop.permute.xlu0 %2678
  %2680 = vrot.lane.b32.xlu0 %v2293, 108
  %v2681 = vpop.permute.xlu0 %2680
  %2682 = vrot.lane.b32.xlu0 %v2294, 108
  %v2683 = vpop.permute.xlu0 %2682
  %2684 = vrot.lane.b32.xlu0 %v2295, 108
  %v2685 = vpop.permute.xlu0 %2684
  %2686 = vrot.lane.b32.xlu0 %v2296, 108
  %v2687 = vpop.permute.xlu0 %2686
  %v2688 = vsel %vm921, %v2661, %v2663
  %v2689 = vsel %vm921, %v2663, %v2665
  %v2690 = vsel %vm921, %v2665, %v2667
  %v2691 = vsel %vm921, %v2667, %v2669
  %v2692 = vsel %vm921, %v2669, %v2671
  %v2693 = vsel %vm921, %v2671, %v2673
  %v2694 = vsel %vm921, %v2675, %v2677
  %v2695 = vsel %vm921, %v2677, %v2679
  %v2696 = vsel %vm921, %v2679, %v2681
  %v2697 = vsel %vm921, %v2681, %v2683
  %v2698 = vsel %vm921, %v2683, %v2685
  %v2699 = vsel %vm921, %v2685, %v2687
  %v2716 = vsel %vm921, %v2673, %v2661
  %v2717 = vsel %vm921, %v2687, %v2675
  %2718 = vrot.lane.b32.xlu0 %v2283, 107
  %v2719 = vpop.permute.xlu0 %2718
  %2720 = vrot.lane.b32.xlu0 %v2284, 107
  %v2721 = vpop.permute.xlu0 %2720
  %2722 = vrot.lane.b32.xlu0 %v2285, 107
  %v2723 = vpop.permute.xlu0 %2722
  %2724 = vrot.lane.b32.xlu0 %v2286, 107
  %v2725 = vpop.permute.xlu0 %2724
  %2726 = vrot.lane.b32.xlu0 %v2287, 107
  %v2727 = vpop.permute.xlu0 %2726
  %2728 = vrot.lane.b32.xlu0 %v2288, 107
  %v2729 = vpop.permute.xlu0 %2728
  %2730 = vrot.lane.b32.xlu0 %v2289, 107
  %v2731 = vpop.permute.xlu0 %2730
  %2732 = vrot.lane.b32.xlu0 %v2290, 107
  %v2733 = vpop.permute.xlu0 %2732
  %2734 = vrot.lane.b32.xlu0 %v2291, 107
  %v2735 = vpop.permute.xlu0 %2734
  %2736 = vrot.lane.b32.xlu0 %v2292, 107
  %v2737 = vpop.permute.xlu0 %2736
  %2738 = vrot.lane.b32.xlu0 %v2293, 107
  %v2739 = vpop.permute.xlu0 %2738
  %2740 = vrot.lane.b32.xlu0 %v2294, 107
  %v2741 = vpop.permute.xlu0 %2740
  %2742 = vrot.lane.b32.xlu0 %v2295, 107
  %v2743 = vpop.permute.xlu0 %2742
  %2744 = vrot.lane.b32.xlu0 %v2296, 107
  %v2745 = vpop.permute.xlu0 %2744
  %v2746 = vsel %vm951, %v2719, %v2721
  %v2747 = vsel %vm951, %v2721, %v2723
  %v2748 = vsel %vm951, %v2723, %v2725
  %v2749 = vsel %vm951, %v2725, %v2727
  %v2750 = vsel %vm951, %v2727, %v2729
  %v2751 = vsel %vm951, %v2729, %v2731
  %v2752 = vsel %vm951, %v2733, %v2735
  %v2753 = vsel %vm951, %v2735, %v2737
  %v2754 = vsel %vm951, %v2737, %v2739
  %v2755 = vsel %vm951, %v2739, %v2741
  %v2756 = vsel %vm951, %v2741, %v2743
  %v2757 = vsel %vm951, %v2743, %v2745
  %v2774 = vsel %vm951, %v2731, %v2719
  %v2775 = vsel %vm951, %v2745, %v2733
  %v2776 = vpack.c.bf16 %v2369, %v2368
  %v2777 = vpack.c.bf16 %v2348, %v2342
  %v2778 = vpack.c.bf16 %v2349, %v2343
  %v2779 = vpack.c.bf16 %v2350, %v2344
  %v2780 = vpack.c.bf16 %v2351, %v2345
  %v2781 = vpack.c.bf16 %v2352, %v2346
  %v2782 = vpack.c.bf16 %v2353, %v2347
  %v2783 = vpack.c.bf16 %v2427, %v2426
  %v2784 = vpack.c.bf16 %v2406, %v2400
  %v2785 = vpack.c.bf16 %v2407, %v2401
  %v2786 = vpack.c.bf16 %v2408, %v2402
  %v2787 = vpack.c.bf16 %v2409, %v2403
  %v2788 = vpack.c.bf16 %v2410, %v2404
  %v2789 = vpack.c.bf16 %v2411, %v2405
  %v2790 = vpack.c.bf16 %v2485, %v2484
  %v2791 = vpack.c.bf16 %v2464, %v2458
  %v2792 = vpack.c.bf16 %v2465, %v2459
  %v2793 = vpack.c.bf16 %v2466, %v2460
  %v2794 = vpack.c.bf16 %v2467, %v2461
  %v2795 = vpack.c.bf16 %v2468, %v2462
  %v2796 = vpack.c.bf16 %v2469, %v2463
  %v2797 = vpack.c.bf16 %v2543, %v2542
  %v2798 = vpack.c.bf16 %v2522, %v2516
  %v2799 = vpack.c.bf16 %v2523, %v2517
  %v2800 = vpack.c.bf16 %v2524, %v2518
  %v2801 = vpack.c.bf16 %v2525, %v2519
  %v2802 = vpack.c.bf16 %v2526, %v2520
  %v2803 = vpack.c.bf16 %v2527, %v2521
  %v2804 = vpack.c.bf16 %v2290, %v2283
  %v2805 = vpack.c.bf16 %v2291, %v2284
  %v2806 = vpack.c.bf16 %v2292, %v2285
  %v2807 = vpack.c.bf16 %v2293, %v2286
  %v2808 = vpack.c.bf16 %v2294, %v2287
  %v2809 = vpack.c.bf16 %v2295, %v2288
  %v2810 = vpack.c.bf16 %v2296, %v2289
  %v2811 = vpack.c.bf16 %v2578, %v2572
  %v2812 = vpack.c.bf16 %v2579, %v2573
  %v2813 = vpack.c.bf16 %v2580, %v2574
  %v2814 = vpack.c.bf16 %v2581, %v2575
  %v2815 = vpack.c.bf16 %v2582, %v2576
  %v2816 = vpack.c.bf16 %v2583, %v2577
  %v2817 = vpack.c.bf16 %v2601, %v2600
  %v2818 = vpack.c.bf16 %v2636, %v2630
  %v2819 = vpack.c.bf16 %v2637, %v2631
  %v2820 = vpack.c.bf16 %v2638, %v2632
  %v2821 = vpack.c.bf16 %v2639, %v2633
  %v2822 = vpack.c.bf16 %v2640, %v2634
  %v2823 = vpack.c.bf16 %v2641, %v2635
  %v2824 = vpack.c.bf16 %v2659, %v2658
  %v2825 = vpack.c.bf16 %v2694, %v2688
  %v2826 = vpack.c.bf16 %v2695, %v2689
  %v2827 = vpack.c.bf16 %v2696, %v2690
  %v2828 = vpack.c.bf16 %v2697, %v2691
  %v2829 = vpack.c.bf16 %v2698, %v2692
  %v2830 = vpack.c.bf16 %v2699, %v2693
  %v2831 = vpack.c.bf16 %v2717, %v2716
  %v2832 = vpack.c.bf16 %v2752, %v2746
  %v2833 = vpack.c.bf16 %v2753, %v2747
  %v2834 = vpack.c.bf16 %v2754, %v2748
  %v2835 = vpack.c.bf16 %v2755, %v2749
  %v2836 = vpack.c.bf16 %v2756, %v2750
  %v2837 = vpack.c.bf16 %v2757, %v2751
  %v2838 = vpack.c.bf16 %v2775, %v2774
  %2840 = vset.pattern.permute.xlu0 0
  %2841 = vperm.xlu0 %2840, %v38
  %v2842 = vpop.permute.xlu0 %2841
  %v2845 = vunpack.c.l.b16 %v2297
  %v2846 = vunpack.c.h.b16 %v2297
  %v2847 = vpack.c.b16 %v2845, %v2845
  %v2848 = vpack.c.b16 %v2846, %v2846
  %vm2850 = vcmask 130048
  %v2852 = vsel %vm2850, %v2848, 0
  %2854 = vmatprep.subr.bf16.mxu0 %v2777
  %2855 = vmatpush1.bf16.msra.mxu0 %v2776
  %2856 = vmatprep.subr.bf16.mxu0 %v2784
  %2857 = vmatpush1.bf16.msra.mxu0 %v2783
  %2858 = vmatprep.subr.bf16.mxu0 %v2791
  %2859 = vmatpush1.bf16.msra.mxu0 %v2790
  %2860 = vmatprep.subr.bf16.mxu0 %v2798
  %2861 = vmatpush1.bf16.msra.mxu0 %v2797
  %2862 = vmatprep.subr.bf16.mxu0 %v2805
  %2863 = vmatpush1.bf16.msra.mxu0 %v2804
  %2864 = vmatprep.subr.bf16.mxu0 %v2812
  %2865 = vmatpush1.bf16.msra.mxu0 %v2811
  %2866 = vmatprep.subr.bf16.mxu0 %v2819
  %2867 = vmatpush1.bf16.msra.mxu0 %v2818
  %2868 = vmatprep.subr.bf16.mxu0 %v2826
  %2869 = vmatpush1.bf16.msra.mxu0 %v2825
  %2870 = vmatprep.subr.bf16.mxu0 %v2833
  %2871 = vmatpush1.bf16.msra.mxu0 %v2832
  %2872 = vmatprep.subr.bf16.mxu0 0
  %2873 = vmatpush1.bf16.msra.mxu0 0
  %2874 = vmatprep.subr.bf16.mxu0 0
  %2875 = vmatpush1.bf16.msra.mxu0 0
  %2876 = vmatprep.subr.bf16.mxu0 0
  %2877 = vmatpush1.bf16.msra.mxu0 0
  %2878 = vmatprep.subr.bf16.mxu0 0
  %2879 = vmatpush1.bf16.msra.mxu0 0
  %2880 = vmatprep.subr.bf16.mxu0 0
  %2881 = vmatpush1.bf16.msra.mxu0 0
  %2882 = vmatprep.subr.bf16.mxu0 0
  %2883 = vmatpush1.bf16.msra.mxu0 0
  %2884 = vmatprep.subr.bf16.mxu0 0
  %2885 = vmatpush1.bf16.msra.mxu0 0
  %2886 = vmatprep.mubr.bf16.mxu0 %v2852
  %2887 = vmatmul.mubr.bf16.gmra.mrb[0].mxu0 %v2847
  %v2888 = vpop.f32.mrb[0].mxu0
  %v2889 = vadd.f32 %v2842, %v2888
  %v2890 = vpop.f32.mrb[0].mxu0
  %v2891 = vadd.f32 %v2842, %v2890
  %v2892 = vpop.f32.mrb[0].mxu0
  %v2893 = vpop.f32.mrb[0].mxu0
  %2894 = vdwg.mxu0
  %2895 = vmatprep.subr.bf16.mxu0 %v2779
  %2896 = vmatpush1.bf16.msra.mxu0 %v2778
  %2897 = vmatprep.subr.bf16.mxu0 %v2786
  %2898 = vmatpush1.bf16.msra.mxu0 %v2785
  %2899 = vmatprep.subr.bf16.mxu0 %v2793
  %2900 = vmatpush1.bf16.msra.mxu0 %v2792
  %2901 = vmatprep.subr.bf16.mxu0 %v2800
  %2902 = vmatpush1.bf16.msra.mxu0 %v2799
  %2903 = vmatprep.subr.bf16.mxu0 %v2807
  %2904 = vmatpush1.bf16.msra.mxu0 %v2806
  %2905 = vmatprep.subr.bf16.mxu0 %v2814
  %2906 = vmatpush1.bf16.msra.mxu0 %v2813
  %2907 = vmatprep.subr.bf16.mxu0 %v2821
  %2908 = vmatpush1.bf16.msra.mxu0 %v2820
  %2909 = vmatprep.subr.bf16.mxu0 %v2828
  %2910 = vmatpush1.bf16.msra.mxu0 %v2827
  %2911 = vmatprep.subr.bf16.mxu0 %v2835
  %2912 = vmatpush1.bf16.msra.mxu0 %v2834
  %2913 = vmatprep.subr.bf16.mxu0 0
  %2914 = vmatpush1.bf16.msra.mxu0 0
  %2915 = vmatprep.subr.bf16.mxu0 0
  %2916 = vmatpush1.bf16.msra.mxu0 0
  %2917 = vmatprep.subr.bf16.mxu0 0
  %2918 = vmatpush1.bf16.msra.mxu0 0
  %2919 = vmatprep.subr.bf16.mxu0 0
  %2920 = vmatpush1.bf16.msra.mxu0 0
  %2921 = vmatprep.subr.bf16.mxu0 0
  %2922 = vmatpush1.bf16.msra.mxu0 0
  %2923 = vmatprep.subr.bf16.mxu0 0
  %2924 = vmatpush1.bf16.msra.mxu0 0
  %2925 = vmatprep.subr.bf16.mxu0 0
  %2926 = vmatpush1.bf16.msra.mxu0 0
  %2927 = vmatprep.mubr.bf16.mxu0 %v2852
  %2928 = vmatmul.mubr.bf16.gmra.mrb[0].mxu0 %v2847
  %v2929 = vpop.f32.mrb[0].mxu0
  %v2930 = vadd.f32 %v2842, %v2929
  %v2931 = vpop.f32.mrb[0].mxu0
  %v2932 = vadd.f32 %v2842, %v2931
  %v2933 = vpop.f32.mrb[0].mxu0
  %v2934 = vpop.f32.mrb[0].mxu0
  %2935 = vdwg.mxu0
  %2936 = vmatprep.subr.bf16.mxu0 %v2781
  %2937 = vmatpush1.bf16.msra.mxu0 %v2780
  %2938 = vmatprep.subr.bf16.mxu0 %v2788
  %2939 = vmatpush1.bf16.msra.mxu0 %v2787
  %2940 = vmatprep.subr.bf16.mxu0 %v2795
  %2941 = vmatpush1.bf16.msra.mxu0 %v2794
  %2942 = vmatprep.subr.bf16.mxu0 %v2802
  %2943 = vmatpush1.bf16.msra.mxu0 %v2801
  %2944 = vmatprep.subr.bf16.mxu0 %v2809
  %2945 = vmatpush1.bf16.msra.mxu0 %v2808
  %2946 = vmatprep.subr.bf16.mxu0 %v2816
  %2947 = vmatpush1.bf16.msra.mxu0 %v2815
  %2948 = vmatprep.subr.bf16.mxu0 %v2823
  %2949 = vmatpush1.bf16.msra.mxu0 %v2822
  %2950 = vmatprep.subr.bf16.mxu0 %v2830
  %2951 = vmatpush1.bf16.msra.mxu0 %v2829
  %2952 = vmatprep.subr.bf16.mxu0 %v2837
  %2953 = vmatpush1.bf16.msra.mxu0 %v2836
  %2954 = vmatprep.subr.bf16.mxu0 0
  %2955 = vmatpush1.bf16.msra.mxu0 0
  %2956 = vmatprep.subr.bf16.mxu0 0
  %2957 = vmatpush1.bf16.msra.mxu0 0
  %2958 = vmatprep.subr.bf16.mxu0 0
  %2959 = vmatpush1.bf16.msra.mxu0 0
  %2960 = vmatprep.subr.bf16.mxu0 0
  %2961 = vmatpush1.bf16.msra.mxu0 0
  %2962 = vmatprep.subr.bf16.mxu0 0
  %2963 = vmatpush1.bf16.msra.mxu0 0
  %2964 = vmatprep.subr.bf16.mxu0 0
  %2965 = vmatpush1.bf16.msra.mxu0 0
  %2966 = vmatprep.subr.bf16.mxu0 0
  %2967 = vmatpush1.bf16.msra.mxu0 0
  %2968 = vmatprep.mubr.bf16.mxu0 %v2852
  %2969 = vmatmul.mubr.bf16.gmra.mrb[0].mxu0 %v2847
  %v2970 = vpop.f32.mrb[0].mxu0
  %v2971 = vadd.f32 %v2842, %v2970
  %v2972 = vpop.f32.mrb[0].mxu0
  %v2973 = vadd.f32 %v2842, %v2972
  %v2974 = vpop.f32.mrb[0].mxu0
  %v2975 = vpop.f32.mrb[0].mxu0
  %2976 = vdwg.mxu0
  %2977 = vmatprep.subr.bf16.mxu0 0
  %2978 = vmatpush1.bf16.msra.mxu0 %v2782
  %2979 = vmatprep.subr.bf16.mxu0 0
  %2980 = vmatpush1.bf16.msra.mxu0 %v2789
  %2981 = vmatprep.subr.bf16.mxu0 0
  %2982 = vmatpush1.bf16.msra.mxu0 %v2796
  %2983 = vmatprep.subr.bf16.mxu0 0
  %2984 = vmatpush1.bf16.msra.mxu0 %v2803
  %2985 = vmatprep.subr.bf16.mxu0 0
  %2986 = vmatpush1.bf16.msra.mxu0 %v2810
  %2987 = vmatprep.subr.bf16.mxu0 0
  %2988 = vmatpush1.bf16.msra.mxu0 %v2817
  %2989 = vmatprep.subr.bf16.mxu0 0
  %2990 = vmatpush1.bf16.msra.mxu0 %v2824
  %2991 = vmatprep.subr.bf16.mxu0 0
  %2992 = vmatpush1.bf16.msra.mxu0 %v2831
  %2993 = vmatprep.subr.bf16.mxu0 0
  %2994 = vmatpush1.bf16.msra.mxu0 %v2838
  %2995 = vmatprep.subr.bf16.mxu0 0
  %2996 = vmatpush1.bf16.msra.mxu0 0
  %2997 = vmatprep.subr.bf16.mxu0 0
  %2998 = vmatpush1.bf16.msra.mxu0 0
  %2999 = vmatprep.subr.bf16.mxu0 0
  %3000 = vmatpush1.bf16.msra.mxu0 0
  %3001 = vmatprep.subr.bf16.mxu0 0
  %3002 = vmatpush1.bf16.msra.mxu0 0
  %3003 = vmatprep.subr.bf16.mxu0 0
  %3004 = vmatpush1.bf16.msra.mxu0 0
  %3005 = vmatprep.subr.bf16.mxu0 0
  %3006 = vmatpush1.bf16.msra.mxu0 0
  %3007 = vmatprep.subr.bf16.mxu0 0
  %3008 = vmatpush1.bf16.msra.mxu0 0
  %3009 = vmatprep.mubr.bf16.mxu0 %v2852
  %3010 = vmatmul.mubr.bf16.gmra.mrb[0].mxu0 %v2847
  %v3011 = vpop.f32.mrb[0].mxu0
  %v3012 = vadd.f32 %v2842, %v3011
  %v3013 = vpop.f32.mrb[0].mxu0
  %v3014 = vpop.f32.mrb[0].mxu0
  %v3015 = vpop.f32.mrb[0].mxu0
  %3016 = vdwg.mxu0
  %v3017 = vmax.f32 %v2889, 0.0
  %v3018 = vmax.f32 %v2891, 0.0
  %v3019 = vmax.f32 %v2930, 0.0
  %v3020 = vmax.f32 %v2932, 0.0
  %v3021 = vmax.f32 %v2971, 0.0
  %v3022 = vmax.f32 %v2973, 0.0
  %v3023 = vmax.f32 %v3012, 0.0
  %v3024 = vmul.f32 %v3017, %v2104
  %v3025 = vmul.f32 %v3018, %v2108
  %v3026 = vmul.f32 %v3019, %v2112
  %v3027 = vmul.f32 %v3020, %v2116
  %v3028 = vmul.f32 %v3021, %v2120
  %v3029 = vmul.f32 %v3022, %v2124
  %v3030 = vmul.f32 %v3023, %v2128
  %v3031 = vadd.f32 %v3024, %v3025
  %v3032 = vadd.f32 %v3031, %v3026
  %v3033 = vadd.f32 %v3032, %v3027
  %v3034 = vadd.f32 %v3033, %v3028
  %v3035 = vadd.f32 %v3034, %v3029
  %v3036 = vadd.f32 %v3035, %v3030
  %3037 = vadd.xlane.f32.xlu0 %v3036
  %v3038 = vpop.xlane.xlu0 %3037
  %v3039 = vmul.f32 %v3038, 0.0025510204
  %v3040 = vsub.f32 %v3024, %v3039
  %v3041 = vsub.f32 %v3025, %v3039
  %v3042 = vsub.f32 %v3026, %v3039
  %v3043 = vsub.f32 %v3027, %v3039
  %v3044 = vsub.f32 %v3028, %v3039
  %v3045 = vsub.f32 %v3029, %v3039
  %v3046 = vsub.f32 %v3030, %v3039
  %v3047 = vmul.f32 %v3040, %v2104
  %v3048 = vmul.f32 %v3041, %v2108
  %v3049 = vmul.f32 %v3042, %v2112
  %v3050 = vmul.f32 %v3043, %v2116
  %v3051 = vmul.f32 %v3044, %v2120
  %v3052 = vmul.f32 %v3045, %v2124
  %v3053 = vmul.f32 %v3046, %v2128
  %v3054 = vmul.f32 %v3047, %v3047
  %v3055 = vmul.f32 %v3048, %v3048
  %v3056 = vmul.f32 %v3049, %v3049
  %v3057 = vmul.f32 %v3050, %v3050
  %v3058 = vmul.f32 %v3051, %v3051
  %v3059 = vmul.f32 %v3052, %v3052
  %v3060 = vmul.f32 %v3053, %v3053
  %v3061 = vadd.f32 %v3054, %v3055
  %v3062 = vadd.f32 %v3061, %v3056
  %v3063 = vadd.f32 %v3062, %v3057
  %v3064 = vadd.f32 %v3063, %v3058
  %v3065 = vadd.f32 %v3064, %v3059
  %v3066 = vadd.f32 %v3065, %v3060
  %3067 = vadd.xlane.f32.xlu0 %v3066
  %v3068 = vpop.xlane.xlu0 %3067
  %v3069 = vmul.f32 %v3068, 0.0025510204
  %v3070 = vadd.f32 %v3069, 1e-05
  %v3071 = vrsqrt.pop %v3070
  %v3072 = vmul.f32 %v3047, %v3071
  %v3073 = vmul.f32 %v3048, %v3071
  %v3074 = vmul.f32 %v3049, %v3071
  %v3075 = vmul.f32 %v3050, %v3071
  %v3076 = vmul.f32 %v3051, %v3071
  %v3077 = vmul.f32 %v3052, %v3071
  %v3078 = vmul.f32 %v3053, %v3071
  %3079 = vset.pattern.permute.xlu0 1
  %3080 = vperm.xlu0 %3079, %v38
  %v3081 = vpop.permute.xlu0 %3080
  %v3083 = vmul.f32 %v3072, %v3081
  %v3084 = vmul.f32 %v3073, %v3081
  %v3085 = vmul.f32 %v3074, %v3081
  %v3086 = vmul.f32 %v3075, %v3081
  %v3087 = vmul.f32 %v3076, %v3081
  %v3088 = vmul.f32 %v3077, %v3081
  %v3089 = vmul.f32 %v3078, %v3081
  %3090 = vset.pattern.permute.xlu0 2
  %3091 = vperm.xlu0 %3090, %v38
  %v3092 = vpop.permute.xlu0 %3091
  %v3094 = vadd.f32 %v3083, %v3092
  %v3095 = vadd.f32 %v3084, %v3092
  %v3096 = vadd.f32 %v3085, %v3092
  %v3097 = vadd.f32 %v3086, %v3092
  %v3098 = vadd.f32 %v3087, %v3092
  %v3099 = vadd.f32 %v3088, %v3092
  %v3100 = vadd.f32 %v3089, %v3092
  %3108 = vrot.lane.b32.xlu0 %v3094, 127
  %v3109 = vpop.permute.xlu0 %3108
  %3110 = vrot.lane.b32.xlu0 %v3095, 127
  %v3111 = vpop.permute.xlu0 %3110
  %3112 = vrot.lane.b32.xlu0 %v3096, 127
  %v3113 = vpop.permute.xlu0 %3112
  %3114 = vrot.lane.b32.xlu0 %v3097, 127
  %v3115 = vpop.permute.xlu0 %3114
  %3116 = vrot.lane.b32.xlu0 %v3098, 127
  %v3117 = vpop.permute.xlu0 %3116
  %3118 = vrot.lane.b32.xlu0 %v3099, 127
  %v3119 = vpop.permute.xlu0 %3118
  %3120 = vrot.lane.b32.xlu0 %v3100, 127
  %v3121 = vpop.permute.xlu0 %3120
  %v3122 = vsel %vm801, %v3109, %v3111
  %v3123 = vsel %vm801, %v3111, %v3113
  %v3124 = vsel %vm801, %v3113, %v3115
  %v3125 = vsel %vm801, %v3115, %v3117
  %v3126 = vsel %vm801, %v3117, %v3119
  %v3127 = vsel %vm801, %v3119, %v3121
  %v3136 = vsel %vm801, %v3121, %v3109
  %v3137 = vmax.f32 %v3094, %v3122
  %v3138 = vmax.f32 %v3095, %v3123
  %v3139 = vmax.f32 %v3096, %v3124
  %v3140 = vmax.f32 %v3097, %v3125
  %v3141 = vmax.f32 %v3098, %v3126
  %v3142 = vmax.f32 %v3099, %v3127
  %v3143 = vmax.f32 %v3100, %v3136
  %3144 = vrot.lane.b32.xlu0 %v3094, 126
  %v3145 = vpop.permute.xlu0 %3144
  %3146 = vrot.lane.b32.xlu0 %v3095, 126
  %v3147 = vpop.permute.xlu0 %3146
  %3148 = vrot.lane.b32.xlu0 %v3096, 126
  %v3149 = vpop.permute.xlu0 %3148
  %3150 = vrot.lane.b32.xlu0 %v3097, 126
  %v3151 = vpop.permute.xlu0 %3150
  %3152 = vrot.lane.b32.xlu0 %v3098, 126
  %v3153 = vpop.permute.xlu0 %3152
  %3154 = vrot.lane.b32.xlu0 %v3099, 126
  %v3155 = vpop.permute.xlu0 %3154
  %3156 = vrot.lane.b32.xlu0 %v3100, 126
  %v3157 = vpop.permute.xlu0 %3156
  %v3158 = vsel %vm831, %v3145, %v3147
  %v3159 = vsel %vm831, %v3147, %v3149
  %v3160 = vsel %vm831, %v3149, %v3151
  %v3161 = vsel %vm831, %v3151, %v3153
  %v3162 = vsel %vm831, %v3153, %v3155
  %v3163 = vsel %vm831, %v3155, %v3157
  %v3172 = vsel %vm831, %v3157, %v3145
  %v3173 = vmax.f32 %v3137, %v3158
  %v3174 = vmax.f32 %v3138, %v3159
  %v3175 = vmax.f32 %v3139, %v3160
  %v3176 = vmax.f32 %v3140, %v3161
  %v3177 = vmax.f32 %v3141, %v3162
  %v3178 = vmax.f32 %v3142, %v3163
  %v3179 = vmax.f32 %v3143, %v3172
  %3187 = vrot.lane.b32.xlu0 %v3173, 108
  %v3188 = vpop.permute.xlu0 %3187
  %3189 = vrot.lane.b32.xlu0 %v3174, 108
  %v3190 = vpop.permute.xlu0 %3189
  %3191 = vrot.lane.b32.xlu0 %v3175, 108
  %v3192 = vpop.permute.xlu0 %3191
  %3193 = vrot.lane.b32.xlu0 %v3176, 108
  %v3194 = vpop.permute.xlu0 %3193
  %3195 = vrot.lane.b32.xlu0 %v3177, 108
  %v3196 = vpop.permute.xlu0 %3195
  %3197 = vrot.lane.b32.xlu0 %v3178, 108
  %v3198 = vpop.permute.xlu0 %3197
  %3199 = vrot.lane.b32.xlu0 %v3179, 108
  %v3200 = vpop.permute.xlu0 %3199
  %v3201 = vsel %vm921, %v3188, %v3190
  %v3202 = vsel %vm921, %v3190, %v3192
  %v3203 = vsel %vm921, %v3192, %v3194
  %v3204 = vsel %vm921, %v3194, %v3196
  %v3205 = vsel %vm921, %v3196, %v3198
  %v3206 = vsel %vm921, %v3198, %v3200
  %v3215 = vsel %vm921, %v3200, %v3188
  %v3216 = vmax.f32 %v3173, %v3201
  %v3217 = vmax.f32 %v3174, %v3202
  %v3218 = vmax.f32 %v3175, %v3203
  %v3219 = vmax.f32 %v3176, %v3204
  %v3220 = vmax.f32 %v3177, %v3205
  %v3221 = vmax.f32 %v3178, %v3206
  %v3222 = vmax.f32 %v3179, %v3215
  %3223 = vrot.lane.b32.xlu0 %v3173, 88
  %v3224 = vpop.permute.xlu0 %3223
  %3225 = vrot.lane.b32.xlu0 %v3174, 88
  %v3226 = vpop.permute.xlu0 %3225
  %3227 = vrot.lane.b32.xlu0 %v3175, 88
  %v3228 = vpop.permute.xlu0 %3227
  %3229 = vrot.lane.b32.xlu0 %v3176, 88
  %v3230 = vpop.permute.xlu0 %3229
  %3231 = vrot.lane.b32.xlu0 %v3177, 88
  %v3232 = vpop.permute.xlu0 %3231
  %3233 = vrot.lane.b32.xlu0 %v3178, 88
  %v3234 = vpop.permute.xlu0 %3233
  %3235 = vrot.lane.b32.xlu0 %v3179, 88
  %v3236 = vpop.permute.xlu0 %3235
  %v3237 = vsel %vm1071, %v3224, %v3226
  %v3238 = vsel %vm1071, %v3226, %v3228
  %v3239 = vsel %vm1071, %v3228, %v3230
  %v3240 = vsel %vm1071, %v3230, %v3232
  %v3241 = vsel %vm1071, %v3232, %v3234
  %v3242 = vsel %vm1071, %v3234, %v3236
  %v3251 = vsel %vm1071, %v3236, %v3224
  %v3252 = vmax.f32 %v3216, %v3237
  %v3253 = vmax.f32 %v3217, %v3238
  %v3254 = vmax.f32 %v3218, %v3239
  %v3255 = vmax.f32 %v3219, %v3240
  %v3256 = vmax.f32 %v3220, %v3241
  %v3257 = vmax.f32 %v3221, %v3242
  %v3258 = vmax.f32 %v3222, %v3251
  %3259 = vst [vmem:[%s7] sm:$0xff] %v3252
  %3260 = vst [vmem:[%s7 + $0x8] sm:$0xff] %v3253
  %3261 = vst [vmem:[%s7 + $0x10] sm:$0xff] %v3254
  %3262 = vst [vmem:[%s7 + $0x18] sm:$0xff] %v3255
  %3263 = vst [vmem:[%s7 + $0x20] sm:$0xff] %v3256
  %3264 = vst [vmem:[%s7 + $0x28] sm:$0xff] %v3257
  %3265 = vst [vmem:[%s7 + $0x30] sm:$0xff] %v3258
  // Predicated region
  $region30: #{global_branch_forward.1} parent=0 // pred_check
    _
  $region31: #{global_branch_forward.1} parent=0 // pred_check_branch
    %3267 = sbr.rel (0) target = $region33
  $region32: #{global_branch_forward.1} parent=0 // pred_region
    _
  $region33: #{global_branch_forward.1} parent=0 // pred_fallthru
    _
  // Predicated region
  $region34: #{global_branch_forward.1} parent=0 // pred_check
    _
  $region35: #{global_branch_forward.1} parent=0 // pred_check_branch
    %3269 = sbr.rel (0) target = $region37
  $region36: #{global_branch_forward.1} parent=0 // pred_region
    _
  $region37: #{global_branch_forward.1} parent=0 // pred_fallthru
    _

</llo_original>
